<compile_context>
chip_gen: v5e
topology: v5e:2x2
jax: 0.10.0
libtpu: 0.0.40
codegen_flags: <defaults>
</compile_context>

<pallas_src>
import functools

import jax
import jax.numpy as jnp
from jax.experimental import pallas as pl
from jax.experimental.pallas import tpu as pltpu


# ----------------------------------------------------------------------------
# Kernel
# ----------------------------------------------------------------------------
def _conv_taps_kernel(x_ref, w_ref, b_ref, o_ref, acc_ref, *,
                      kh_size, kw_size, stride, toh, ow_p, cin):
    """One (batch, row-tile) grid step of the reflection-padded conv.

    x_ref:   (toh_in, wp_ext, cin)   halo'd input row tile (compute dtype)
    w_ref:   (KH*KW, cin, cout_p)    per-tap weight matrices (compute dtype)
    b_ref:   (1, cout_p)             bias (f32)
    o_ref:   (toh*ow_p, cout_p)      lane-dense output rows (compute dtype)
    acc_ref: (toh*ow_p, cout_p) f32  VMEM scratch accumulator (keeps the
                                     accumulation out of vregs across the
                                     unrolled taps -> no spills)
    """
    m = toh * ow_p
    for idx in range(kh_size * kw_size):
        kh, kw = divmod(idx, kw_size)
        if stride == 1:
            # Static ref slice: only the tap's window is loaded.
            patch = x_ref[kh:kh + toh, kw:kw + ow_p, :]
        else:
            # TODO(synk): use ref-level strided slices (pl.ds(..., stride=stride))
            # or a pre-strided wrapper layout instead of a value-level strided
            # slice of the tap window.
            win = x_ref[kh:kh + (toh - 1) * stride + 1,
                        kw:kw + (ow_p - 1) * stride + 1, :]
            patch = win[::stride, ::stride, :]
        # (toh, ow_p, cin) -> (toh*ow_p, cin): ow_p is a multiple of 16, so this
        # collapse is a pure sublane relabeling (no relayout copy).
        contrib = jnp.dot(patch.reshape(m, cin), w_ref[idx],
                          preferred_element_type=jnp.float32)
        if idx == 0:
            acc_ref[...] = contrib
        else:
            acc_ref[...] += contrib
    o_ref[...] = (acc_ref[...] + b_ref[...]).astype(o_ref.dtype)


# ----------------------------------------------------------------------------
# Sizing helpers
# ----------------------------------------------------------------------------
def _round_up(x, m):
    return ((x + m - 1) // m) * m


def _padded_vmem_bytes(shape, dtype):
    """VMEM footprint of one buffer of `shape`, including (sublane, lane) padding."""
    itemsize = jnp.dtype(dtype).itemsize
    if len(shape) == 0:
        return 4
    lane = _round_up(int(shape[-1]), 128)
    if len(shape) == 1:
        return lane * itemsize
    sub_tile = max(8, 32 // itemsize)            # 8 for f32, 16 for bf16
    sub = _round_up(int(shape[-2]), sub_tile)
    outer = 1
    for d in shape[:-2]:
        outer *= int(d)
    return outer * sub * lane * itemsize


def _resolve_vmem_budget(requested):
    """Generation-aware VMEM budget (item 2), with a conservative fallback."""
    if requested is not None:
        return int(requested)
    cap = None
    try:
        info_fn = getattr(pltpu, "get_tpu_info", None)
        if info_fn is not None:
            cap = int(info_fn().vmem_capacity_bytes)
    except Exception:
        cap = None
    if cap is None:
        return 48 * 1024 * 1024                          # safe default
    if cap >= 96 * 1024 * 1024:                          # v5e/v6e 128 MiB parts
        return cap - 32 * 1024 * 1024                    # ~96 MiB
    # v7x-style 64 MiB part: leave headroom for Mosaic internal scratch.
    return max(32 * 1024 * 1024, min(cap - 20 * 1024 * 1024, (cap * 2) // 3))


def _pick_row_tile(oh, ow_p, target_rows, tile_bytes_fn, vmem_budget, min_row_tiles):
    """Pick an output-row tile `toh` (divisor of OH) respecting VMEM + megacore."""
    divisors = [d for d in range(1, oh + 1) if oh % d == 0]
    fitting = [d for d in divisors if tile_bytes_fn(d) <= vmem_budget]
    if not fitting:
        # TODO(synk): also tile along OW for extremely wide rows / huge Cout.
        raise ValueError(
            "ConvNorm Pallas kernel: a single-output-row tile "
            f"({tile_bytes_fn(1)} B) exceeds the VMEM budget ({vmem_budget} B); "
            "reduce channels/width or add OW tiling.")
    constrained = [d for d in fitting if oh // d >= min_row_tiles] or fitting
    reaching = [d for d in constrained if d * ow_p >= target_rows]
    # Smallest tile that reaches the MXU M target, else the largest that fits.
    return min(reaching) if reaching else max(constrained)


# ----------------------------------------------------------------------------
# Wrapper
# ----------------------------------------------------------------------------
def conv_norm_forward(x_nchw, weight_oihw, bias, *, kernel_size, stride=1,
                      norm=False, compute_dtype=jnp.bfloat16, target_rows=512,
                      vmem_budget_bytes=None, output_layout="NCHW"):
    """ConvNorm.forward: ReflectionPad2d(k//2) -> Conv2d(bias=True) [-> norm].

    PyTorch layouts in/out (NCHW / OIHW / NCHW); set output_layout='NHWC' to
    skip the final transpose.  `target_rows` ~ MXU M per tile (512 suits
    v6e/v7x's 256-wide MXU; ~256 is enough on v5e).
    """
    if norm:
        # TODO(synk): InstanceNorm2d ('IN') / BatchNorm2d ('BN') branches are
        # not implemented in this Pallas port.
        raise NotImplementedError("ConvNorm norm='IN'/'BN' is not implemented")

    n, cin, h, w = x_nchw.shape
    cout, cin_w, kh_size, kw_size = weight_oihw.shape
    assert cin_w == cin and kh_size == kernel_size and kw_size == kernel_size
    assert stride >= 1
    pad = kernel_size // 2
    assert pad < h and pad < w, "ReflectionPad2d requires pad < spatial size"

    cdt = jnp.dtype(compute_dtype) if compute_dtype is not None else jnp.dtype(x_nchw.dtype)
    out_dtype = x_nchw.dtype

    hp, wp = h + 2 * pad, w + 2 * pad
    oh = (hp - kh_size) // stride + 1                # PyTorch conv arithmetic
    ow = (wp - kw_size) // stride + 1
    ktaps = kh_size * kw_size
    cout_p = _round_up(cout, 128)                    # lane-dense output channels
    ow_p = _round_up(ow, 16)                         # keeps in-kernel reshapes copy-free
    wp_ext = max(wp, (ow_p - 1) * stride + kw_size)

    # ---- layout glue (cast to the MXU dtype early) --------------------------
    x_nhwc = jnp.transpose(x_nchw, (0, 2, 3, 1)).astype(cdt)            # (N,H,W,Cin)
    x_pad = jnp.pad(x_nhwc, ((0, 0), (pad, pad), (pad, pad), (0, 0)),
                    mode="reflect")                                      # (N,Hp,Wp,Cin)
    if wp_ext > wp:
        x_pad = jnp.pad(x_pad, ((0, 0), (0, 0), (0, wp_ext - wp), (0, 0)))

    # Weights as (KH*KW, Cin, Cout_p): tap idx = kh*KW + kw; leading-dim indexed
    # in the kernel (cheap address offset, no unaligned sublane slices).
    w_taps = jnp.transpose(weight_oihw, (2, 3, 1, 0)).reshape(ktaps, cin, cout)
    w_taps = jnp.pad(w_taps.astype(cdt), ((0, 0), (0, 0), (0, cout_p - cout)))
    b_col = jnp.pad(bias.astype(jnp.float32), (0, cout_p - cout)).reshape(1, cout_p)

    vmem_budget = _resolve_vmem_budget(vmem_budget_bytes)

    def tile_bytes(toh):
        toh_in = (toh - 1) * stride + kh_size
        m = toh * ow_p
        return (2 * _padded_vmem_bytes((toh_in, wp_ext, cin), cdt)       # input (dbl-buf)
                + 2 * _padded_vmem_bytes((m, cout_p), cdt)               # output (dbl-buf)
                + _padded_vmem_bytes((m, cout_p), jnp.float32)           # f32 accumulator
                # Grid-invariant weights/bias are still double-buffered by the
                # pipeline -> count both copies (item 3).
                # TODO(synk): pipeline_mode=pl.Buffered(1) to single-buffer them.
                + 2 * _padded_vmem_bytes((ktaps, cin, cout_p), cdt)
                + 2 * _padded_vmem_bytes((1, cout_p), jnp.float32))

    # Megacore occupancy: guarantee >= 2 grid steps when the batch alone can't.
    min_row_tiles = 1 if n >= 2 else (2 if oh >= 2 else 1)
    toh = _pick_row_tile(oh, ow_p, target_rows, tile_bytes, vmem_budget, min_row_tiles)
    n_row_tiles = oh // toh
    toh_in = (toh - 1) * stride + kh_size

    # ---- halo'd row tiles ----------------------------------------------------
    if n_row_tiles == 1:
        x_tiles = x_pad[:, None]                     # (N,1,Hp,Wp_ext,Cin), no copy
    else:
        # Only the (KH - stride)-row halo per tile is duplicated.
        # TODO(synk): manual DMA (memory_space=pl.ANY + make_async_copy on a row
        # offset) would fetch the overlapping windows straight from x_pad.
        x_tiles = jnp.stack(
            [jax.lax.slice_in_dim(x_pad, t * toh * stride,
                                  t * toh * stride + toh_in, axis=1)
             for t in range(n_row_tiles)], axis=1)   # (N,T,toh_in,Wp_ext,Cin)

    kernel = functools.partial(_conv_taps_kernel, kh_size=kh_size, kw_size=kw_size,
                               stride=stride, toh=toh, ow_p=ow_p, cin=cin)

    m_tile = toh * ow_p
    flops = 2 * n * oh * ow * cout * ktaps * cin
    bytes_accessed = (int(x_tiles.size) * cdt.itemsize
                      + int(w_taps.size) * cdt.itemsize
                      + int(b_col.size) * 4
                      + n * oh * ow_p * cout_p * cdt.itemsize)

    out_flat = pl.pallas_call(
        kernel,
        out_shape=jax.ShapeDtypeStruct((n, oh * ow_p, cout_p), cdt),
        grid_spec=pltpu.PrefetchScalarGridSpec(
            num_scalar_prefetch=0,
            grid=(n, n_row_tiles),
            in_specs=[
                pl.BlockSpec((None, None, toh_in, wp_ext, cin),
                             lambda b, t: (b, t, 0, 0, 0)),
                pl.BlockSpec((ktaps, cin, cout_p), lambda b, t: (0, 0, 0)),
                pl.BlockSpec((1, cout_p), lambda b, t: (0, 0)),
            ],
            out_specs=pl.BlockSpec((None, m_tile, cout_p), lambda b, t: (b, t, 0)),
            scratch_shapes=[pltpu.VMEM((m_tile, cout_p), jnp.float32)],
        ),
        compiler_params=pltpu.CompilerParams(
            dimension_semantics=("parallel", "parallel"),   # megacore-friendly
            vmem_limit_bytes=int(vmem_budget),
        ),
        cost_estimate=pl.CostEstimate(flops=flops, transcendentals=0,
                                      bytes_accessed=int(bytes_accessed)),
    )(x_tiles, w_taps, b_col)

    # Drop OW/Cout padding; fuse the dtype cast into the layout epilogue.
    out_nhwc = out_flat.reshape(n, oh, ow_p, cout_p)[:, :, :ow, :cout]
    if output_layout == "NHWC":
        return out_nhwc.astype(out_dtype)
    return jnp.transpose(out_nhwc, (0, 3, 1, 2)).astype(out_dtype)


# ----------------------------------------------------------------------------
# Demo / correctness check
# ----------------------------------------------------------------------------
if __name__ == "__main__":
    # batch=2, in_channel=4, out_channel=8, spatial 16x16, kernel_size=3,
    # stride=1, norm=False (module defaults).
    N, CIN, COUT, H, W, K = 2, 4, 8, 16, 16, 3

    key = jax.random.PRNGKey(0)
    kx, kw_, kb = jax.random.split(key, 3)
    x = jax.random.normal(kx, (N, CIN, H, W), dtype=jnp.float32)
    fan_in = CIN * K * K
    weight = jax.random.normal(kw_, (COUT, CIN, K, K), dtype=jnp.float32) / jnp.sqrt(fan_in)
    bias = jax.random.normal(kb, (COUT,), dtype=jnp.float32) * 0.1

    out = conv_norm_forward(x, weight, bias, kernel_size=K, stride=1, norm=False)
    out = jax.block_until_ready(out)
    assert out.shape == (N, COUT, H, W), out.shape

    # Plain-JAX reference: same bf16-rounded inputs, f32 accumulation, then
    # bf16 output quantization (matching the kernel's bf16 writeback).
    xr = x.astype(jnp.bfloat16).astype(jnp.float32)
    wr = weight.astype(jnp.bfloat16).astype(jnp.float32)
    pad = K // 2
    x_pad_ref = jnp.pad(xr, ((0, 0), (0, 0), (pad, pad), (pad, pad)), mode="reflect")
    ref = jax.lax.conv_general_dilated(
        x_pad_ref, wr, window_strides=(1, 1), padding="VALID",
        dimension_numbers=("NCHW", "OIHW", "NCHW"),
        precision=jax.lax.Precision.HIGHEST,
    ) + bias.reshape(1, COUT, 1, 1)
    ref = ref.astype(jnp.bfloat16).astype(jnp.float32)

    max_err = float(jnp.max(jnp.abs(out - ref)))
    assert jnp.allclose(out, ref, rtol=1e-2, atol=1e-2), max_err
    print("KERNEL_OK")
</pallas_src>

<mosaic_0001>
module attributes {stable_mosaic.version = 11 : i64} {
  func.func @_conv_taps_kernel(%arg0: i32, %arg1: i32, %arg2: memref<1x1x18x18x4xbf16, #tpu.memory_space<vmem>>, %arg3: memref<9x4x128xbf16, #tpu.memory_space<vmem>>, %arg4: memref<1x128xf32, #tpu.memory_space<vmem>>, %arg5: memref<1x256x128xbf16, #tpu.memory_space<vmem>>, %arg6: memref<256x128xf32, #tpu.memory_space<vmem>>) attributes {dimension_semantics = [#tpu.dimension_semantics<parallel>, #tpu.dimension_semantics<parallel>], iteration_bounds = array<i64: 2, 1>, scalar_prefetch = 0 : i64, scratch_operands = 1 : i64, tpu.core_type = #tpu.core_type<tc>, window_params = [{transform_indices = @transform_0, window_bounds = array<i64: 1, 1, 18, 18, 4>}, {pipeline_mode = #tpu.pipeline_mode<synchronous>, transform_indices = @transform_1, window_bounds = array<i64: 9, 4, 128>}, {pipeline_mode = #tpu.pipeline_mode<synchronous>, transform_indices = @transform_2, window_bounds = array<i64: 1, 128>}, {transform_indices = @transform_3, window_bounds = array<i64: 1, 256, 128>}]} {
    %c0 = arith.constant 0 : index
    %c0_0 = arith.constant 0 : index
    %c0_1 = arith.constant 0 : index
    %c0_2 = arith.constant 0 : index
    %c0_3 = arith.constant 0 : index
    %0 = vector.load %arg2[%c0, %c0_0, %c0_1, %c0_2, %c0_3] : memref<1x1x18x18x4xbf16, #tpu.memory_space<vmem>>, vector<1x1x16x16x4xbf16>
    %1 = vector.shape_cast %0 : vector<1x1x16x16x4xbf16> to vector<16x16x4xbf16>
    %2 = vector.shape_cast %1 : vector<16x16x4xbf16> to vector<256x4xbf16>
    %c0_4 = arith.constant 0 : index
    %c0_5 = arith.constant 0 : index
    %c0_6 = arith.constant 0 : index
    %3 = vector.load %arg3[%c0_4, %c0_5, %c0_6] : memref<9x4x128xbf16, #tpu.memory_space<vmem>>, vector<1x4x128xbf16>
    %4 = vector.shape_cast %3 : vector<1x4x128xbf16> to vector<4x128xbf16>
    %cst = arith.constant dense<0.000000e+00> : vector<256x128xf32>
    %5 = tpu.matmul %2, %4, %cst {dimension_numbers = #tpu.dot_dimension_numbers<[1], [0], [0], [1], [0, 0, 1, 1], [], []>} : vector<256x4xbf16>, vector<4x128xbf16>, vector<256x128xf32> -> vector<256x128xf32>
    %c0_7 = arith.constant 0 : index
    %c0_8 = arith.constant 0 : index
    %6 = vector.load %arg6[%c0_7, %c0_8] : memref<256x128xf32, #tpu.memory_space<vmem>>, vector<256x128xf32>
    tpu.vector_store %arg6[%c0_7, %c0_8], %5 {strides = array<i32>} : memref<256x128xf32, #tpu.memory_space<vmem>>, vector<256x128xf32>,
    %c0_9 = arith.constant 0 : index
    %c0_10 = arith.constant 0 : index
    %c0_11 = arith.constant 0 : index
    %c1 = arith.constant 1 : index
    %c0_12 = arith.constant 0 : index
    %7 = vector.load %arg2[%c0_9, %c0_10, %c0_11, %c1, %c0_12] : memref<1x1x18x18x4xbf16, #tpu.memory_space<vmem>>, vector<1x1x16x16x4xbf16>
    %8 = vector.shape_cast %7 : vector<1x1x16x16x4xbf16> to vector<16x16x4xbf16>
    %9 = vector.shape_cast %8 : vector<16x16x4xbf16> to vector<256x4xbf16>
    %c1_13 = arith.constant 1 : index
    %c0_14 = arith.constant 0 : index
    %c0_15 = arith.constant 0 : index
    %10 = vector.load %arg3[%c1_13, %c0_14, %c0_15] : memref<9x4x128xbf16, #tpu.memory_space<vmem>>, vector<1x4x128xbf16>
    %11 = vector.shape_cast %10 : vector<1x4x128xbf16> to vector<4x128xbf16>
    %cst_16 = arith.constant dense<0.000000e+00> : vector<256x128xf32>
    %12 = tpu.matmul %9, %11, %cst_16 {dimension_numbers = #tpu.dot_dimension_numbers<[1], [0], [0], [1], [0, 0, 1, 1], [], []>} : vector<256x4xbf16>, vector<4x128xbf16>, vector<256x128xf32> -> vector<256x128xf32>
    %c0_17 = arith.constant 0 : index
    %c0_18 = arith.constant 0 : index
    %13 = vector.load %arg6[%c0_17, %c0_18] : memref<256x128xf32, #tpu.memory_space<vmem>>, vector<256x128xf32>
    %14 = arith.addf %13, %12 : vector<256x128xf32>
    %c0_19 = arith.constant 0 : index
    %c0_20 = arith.constant 0 : index
    %15 = vector.load %arg6[%c0_19, %c0_20] : memref<256x128xf32, #tpu.memory_space<vmem>>, vector<256x128xf32>
    tpu.vector_store %arg6[%c0_19, %c0_20], %14 {strides = array<i32>} : memref<256x128xf32, #tpu.memory_space<vmem>>, vector<256x128xf32>,
    %c0_21 = arith.constant 0 : index
    %c0_22 = arith.constant 0 : index
    %c0_23 = arith.constant 0 : index
    %c2 = arith.constant 2 : index
    %c0_24 = arith.constant 0 : index
    %16 = vector.load %arg2[%c0_21, %c0_22, %c0_23, %c2, %c0_24] : memref<1x1x18x18x4xbf16, #tpu.memory_space<vmem>>, vector<1x1x16x16x4xbf16>
    %17 = vector.shape_cast %16 : vector<1x1x16x16x4xbf16> to vector<16x16x4xbf16>
    %18 = vector.shape_cast %17 : vector<16x16x4xbf16> to vector<256x4xbf16>
    %c2_25 = arith.constant 2 : index
    %c0_26 = arith.constant 0 : index
    %c0_27 = arith.constant 0 : index
    %19 = vector.load %arg3[%c2_25, %c0_26, %c0_27] : memref<9x4x128xbf16, #tpu.memory_space<vmem>>, vector<1x4x128xbf16>
    %20 = vector.shape_cast %19 : vector<1x4x128xbf16> to vector<4x128xbf16>
    %cst_28 = arith.constant dense<0.000000e+00> : vector<256x128xf32>
    %21 = tpu.matmul %18, %20, %cst_28 {dimension_numbers = #tpu.dot_dimension_numbers<[1], [0], [0], [1], [0, 0, 1, 1], [], []>} : vector<256x4xbf16>, vector<4x128xbf16>, vector<256x128xf32> -> vector<256x128xf32>
    %c0_29 = arith.constant 0 : index
    %c0_30 = arith.constant 0 : index
    %22 = vector.load %arg6[%c0_29, %c0_30] : memref<256x128xf32, #tpu.memory_space<vmem>>, vector<256x128xf32>
    %23 = arith.addf %22, %21 : vector<256x128xf32>
    %c0_31 = arith.constant 0 : index
    %c0_32 = arith.constant 0 : index
    %24 = vector.load %arg6[%c0_31, %c0_32] : memref<256x128xf32, #tpu.memory_space<vmem>>, vector<256x128xf32>
    tpu.vector_store %arg6[%c0_31, %c0_32], %23 {strides = array<i32>} : memref<256x128xf32, #tpu.memory_space<vmem>>, vector<256x128xf32>,
    %c0_33 = arith.constant 0 : index
    %c0_34 = arith.constant 0 : index
    %c1_35 = arith.constant 1 : index
    %c0_36 = arith.constant 0 : index
    %c0_37 = arith.constant 0 : index
    %25 = vector.load %arg2[%c0_33, %c0_34, %c1_35, %c0_36, %c0_37] : memref<1x1x18x18x4xbf16, #tpu.memory_space<vmem>>, vector<1x1x16x16x4xbf16>
    %26 = vector.shape_cast %25 : vector<1x1x16x16x4xbf16> to vector<16x16x4xbf16>
    %27 = vector.shape_cast %26 : vector<16x16x4xbf16> to vector<256x4xbf16>
    %c3 = arith.constant 3 : index
    %c0_38 = arith.constant 0 : index
    %c0_39 = arith.constant 0 : index
    %28 = vector.load %arg3[%c3, %c0_38, %c0_39] : memref<9x4x128xbf16, #tpu.memory_space<vmem>>, vector<1x4x128xbf16>
    %29 = vector.shape_cast %28 : vector<1x4x128xbf16> to vector<4x128xbf16>
    %cst_40 = arith.constant dense<0.000000e+00> : vector<256x128xf32>
    %30 = tpu.matmul %27, %29, %cst_40 {dimension_numbers = #tpu.dot_dimension_numbers<[1], [0], [0], [1], [0, 0, 1, 1], [], []>} : vector<256x4xbf16>, vector<4x128xbf16>, vector<256x128xf32> -> vector<256x128xf32>
    %c0_41 = arith.constant 0 : index
    %c0_42 = arith.constant 0 : index
    %31 = vector.load %arg6[%c0_41, %c0_42] : memref<256x128xf32, #tpu.memory_space<vmem>>, vector<256x128xf32>
    %32 = arith.addf %31, %30 : vector<256x128xf32>
    %c0_43 = arith.constant 0 : index
    %c0_44 = arith.constant 0 : index
    %33 = vector.load %arg6[%c0_43, %c0_44] : memref<256x128xf32, #tpu.memory_space<vmem>>, vector<256x128xf32>
    tpu.vector_store %arg6[%c0_43, %c0_44], %32 {strides = array<i32>} : memref<256x128xf32, #tpu.memory_space<vmem>>, vector<256x128xf32>,
    %c0_45 = arith.constant 0 : index
    %c0_46 = arith.constant 0 : index
    %c1_47 = arith.constant 1 : index
    %c1_48 = arith.constant 1 : index
    %c0_49 = arith.constant 0 : index
    %34 = vector.load %arg2[%c0_45, %c0_46, %c1_47, %c1_48, %c0_49] : memref<1x1x18x18x4xbf16, #tpu.memory_space<vmem>>, vector<1x1x16x16x4xbf16>
    %35 = vector.shape_cast %34 : vector<1x1x16x16x4xbf16> to vector<16x16x4xbf16>
    %36 = vector.shape_cast %35 : vector<16x16x4xbf16> to vector<256x4xbf16>
    %c4 = arith.constant 4 : index
    %c0_50 = arith.constant 0 : index
    %c0_51 = arith.constant 0 : index
    %37 = vector.load %arg3[%c4, %c0_50, %c0_51] : memref<9x4x128xbf16, #tpu.memory_space<vmem>>, vector<1x4x128xbf16>
    %38 = vector.shape_cast %37 : vector<1x4x128xbf16> to vector<4x128xbf16>
    %cst_52 = arith.constant dense<0.000000e+00> : vector<256x128xf32>
    %39 = tpu.matmul %36, %38, %cst_52 {dimension_numbers = #tpu.dot_dimension_numbers<[1], [0], [0], [1], [0, 0, 1, 1], [], []>} : vector<256x4xbf16>, vector<4x128xbf16>, vector<256x128xf32> -> vector<256x128xf32>
    %c0_53 = arith.constant 0 : index
    %c0_54 = arith.constant 0 : index
    %40 = vector.load %arg6[%c0_53, %c0_54] : memref<256x128xf32, #tpu.memory_space<vmem>>, vector<256x128xf32>
    %41 = arith.addf %40, %39 : vector<256x128xf32>
    %c0_55 = arith.constant 0 : index
    %c0_56 = arith.constant 0 : index
    %42 = vector.load %arg6[%c0_55, %c0_56] : memref<256x128xf32, #tpu.memory_space<vmem>>, vector<256x128xf32>
    tpu.vector_store %arg6[%c0_55, %c0_56], %41 {strides = array<i32>} : memref<256x128xf32, #tpu.memory_space<vmem>>, vector<256x128xf32>,
    %c0_57 = arith.constant 0 : index
    %c0_58 = arith.constant 0 : index
    %c1_59 = arith.constant 1 : index
    %c2_60 = arith.constant 2 : index
    %c0_61 = arith.constant 0 : index
    %43 = vector.load %arg2[%c0_57, %c0_58, %c1_59, %c2_60, %c0_61] : memref<1x1x18x18x4xbf16, #tpu.memory_space<vmem>>, vector<1x1x16x16x4xbf16>
    %44 = vector.shape_cast %43 : vector<1x1x16x16x4xbf16> to vector<16x16x4xbf16>
    %45 = vector.shape_cast %44 : vector<16x16x4xbf16> to vector<256x4xbf16>
    %c5 = arith.constant 5 : index
    %c0_62 = arith.constant 0 : index
    %c0_63 = arith.constant 0 : index
    %46 = vector.load %arg3[%c5, %c0_62, %c0_63] : memref<9x4x128xbf16, #tpu.memory_space<vmem>>, vector<1x4x128xbf16>
    %47 = vector.shape_cast %46 : vector<1x4x128xbf16> to vector<4x128xbf16>
    %cst_64 = arith.constant dense<0.000000e+00> : vector<256x128xf32>
    %48 = tpu.matmul %45, %47, %cst_64 {dimension_numbers = #tpu.dot_dimension_numbers<[1], [0], [0], [1], [0, 0, 1, 1], [], []>} : vector<256x4xbf16>, vector<4x128xbf16>, vector<256x128xf32> -> vector<256x128xf32>
    %c0_65 = arith.constant 0 : index
    %c0_66 = arith.constant 0 : index
    %49 = vector.load %arg6[%c0_65, %c0_66] : memref<256x128xf32, #tpu.memory_space<vmem>>, vector<256x128xf32>
    %50 = arith.addf %49, %48 : vector<256x128xf32>
    %c0_67 = arith.constant 0 : index
    %c0_68 = arith.constant 0 : index
    %51 = vector.load %arg6[%c0_67, %c0_68] : memref<256x128xf32, #tpu.memory_space<vmem>>, vector<256x128xf32>
    tpu.vector_store %arg6[%c0_67, %c0_68], %50 {strides = array<i32>} : memref<256x128xf32, #tpu.memory_space<vmem>>, vector<256x128xf32>,
    %c0_69 = arith.constant 0 : index
    %c0_70 = arith.constant 0 : index
    %c2_71 = arith.constant 2 : index
    %c0_72 = arith.constant 0 : index
    %c0_73 = arith.constant 0 : index
    %52 = vector.load %arg2[%c0_69, %c0_70, %c2_71, %c0_72, %c0_73] : memref<1x1x18x18x4xbf16, #tpu.memory_space<vmem>>, vector<1x1x16x16x4xbf16>
    %53 = vector.shape_cast %52 : vector<1x1x16x16x4xbf16> to vector<16x16x4xbf16>
    %54 = vector.shape_cast %53 : vector<16x16x4xbf16> to vector<256x4xbf16>
    %c6 = arith.constant 6 : index
    %c0_74 = arith.constant 0 : index
    %c0_75 = arith.constant 0 : index
    %55 = vector.load %arg3[%c6, %c0_74, %c0_75] : memref<9x4x128xbf16, #tpu.memory_space<vmem>>, vector<1x4x128xbf16>
    %56 = vector.shape_cast %55 : vector<1x4x128xbf16> to vector<4x128xbf16>
    %cst_76 = arith.constant dense<0.000000e+00> : vector<256x128xf32>
    %57 = tpu.matmul %54, %56, %cst_76 {dimension_numbers = #tpu.dot_dimension_numbers<[1], [0], [0], [1], [0, 0, 1, 1], [], []>} : vector<256x4xbf16>, vector<4x128xbf16>, vector<256x128xf32> -> vector<256x128xf32>
    %c0_77 = arith.constant 0 : index
    %c0_78 = arith.constant 0 : index
    %58 = vector.load %arg6[%c0_77, %c0_78] : memref<256x128xf32, #tpu.memory_space<vmem>>, vector<256x128xf32>
    %59 = arith.addf %58, %57 : vector<256x128xf32>
    %c0_79 = arith.constant 0 : index
    %c0_80 = arith.constant 0 : index
    %60 = vector.load %arg6[%c0_79, %c0_80] : memref<256x128xf32, #tpu.memory_space<vmem>>, vector<256x128xf32>
    tpu.vector_store %arg6[%c0_79, %c0_80], %59 {strides = array<i32>} : memref<256x128xf32, #tpu.memory_space<vmem>>, vector<256x128xf32>,
    %c0_81 = arith.constant 0 : index
    %c0_82 = arith.constant 0 : index
    %c2_83 = arith.constant 2 : index
    %c1_84 = arith.constant 1 : index
    %c0_85 = arith.constant 0 : index
    %61 = vector.load %arg2[%c0_81, %c0_82, %c2_83, %c1_84, %c0_85] : memref<1x1x18x18x4xbf16, #tpu.memory_space<vmem>>, vector<1x1x16x16x4xbf16>
    %62 = vector.shape_cast %61 : vector<1x1x16x16x4xbf16> to vector<16x16x4xbf16>
    %63 = vector.shape_cast %62 : vector<16x16x4xbf16> to vector<256x4xbf16>
    %c7 = arith.constant 7 : index
    %c0_86 = arith.constant 0 : index
    %c0_87 = arith.constant 0 : index
    %64 = vector.load %arg3[%c7, %c0_86, %c0_87] : memref<9x4x128xbf16, #tpu.memory_space<vmem>>, vector<1x4x128xbf16>
    %65 = vector.shape_cast %64 : vector<1x4x128xbf16> to vector<4x128xbf16>
    %cst_88 = arith.constant dense<0.000000e+00> : vector<256x128xf32>
    %66 = tpu.matmul %63, %65, %cst_88 {dimension_numbers = #tpu.dot_dimension_numbers<[1], [0], [0], [1], [0, 0, 1, 1], [], []>} : vector<256x4xbf16>, vector<4x128xbf16>, vector<256x128xf32> -> vector<256x128xf32>
    %c0_89 = arith.constant 0 : index
    %c0_90 = arith.constant 0 : index
    %67 = vector.load %arg6[%c0_89, %c0_90] : memref<256x128xf32, #tpu.memory_space<vmem>>, vector<256x128xf32>
    %68 = arith.addf %67, %66 : vector<256x128xf32>
    %c0_91 = arith.constant 0 : index
    %c0_92 = arith.constant 0 : index
    %69 = vector.load %arg6[%c0_91, %c0_92] : memref<256x128xf32, #tpu.memory_space<vmem>>, vector<256x128xf32>
    tpu.vector_store %arg6[%c0_91, %c0_92], %68 {strides = array<i32>} : memref<256x128xf32, #tpu.memory_space<vmem>>, vector<256x128xf32>,
    %c0_93 = arith.constant 0 : index
    %c0_94 = arith.constant 0 : index
    %c2_95 = arith.constant 2 : index
    %c2_96 = arith.constant 2 : index
    %c0_97 = arith.constant 0 : index
    %70 = vector.load %arg2[%c0_93, %c0_94, %c2_95, %c2_96, %c0_97] : memref<1x1x18x18x4xbf16, #tpu.memory_space<vmem>>, vector<1x1x16x16x4xbf16>
    %71 = vector.shape_cast %70 : vector<1x1x16x16x4xbf16> to vector<16x16x4xbf16>
    %72 = vector.shape_cast %71 : vector<16x16x4xbf16> to vector<256x4xbf16>
    %c8 = arith.constant 8 : index
    %c0_98 = arith.constant 0 : index
    %c0_99 = arith.constant 0 : index
    %73 = vector.load %arg3[%c8, %c0_98, %c0_99] : memref<9x4x128xbf16, #tpu.memory_space<vmem>>, vector<1x4x128xbf16>
    %74 = vector.shape_cast %73 : vector<1x4x128xbf16> to vector<4x128xbf16>
    %cst_100 = arith.constant dense<0.000000e+00> : vector<256x128xf32>
    %75 = tpu.matmul %72, %74, %cst_100 {dimension_numbers = #tpu.dot_dimension_numbers<[1], [0], [0], [1], [0, 0, 1, 1], [], []>} : vector<256x4xbf16>, vector<4x128xbf16>, vector<256x128xf32> -> vector<256x128xf32>
    %c0_101 = arith.constant 0 : index
    %c0_102 = arith.constant 0 : index
    %76 = vector.load %arg6[%c0_101, %c0_102] : memref<256x128xf32, #tpu.memory_space<vmem>>, vector<256x128xf32>
    %77 = arith.addf %76, %75 : vector<256x128xf32>
    %c0_103 = arith.constant 0 : index
    %c0_104 = arith.constant 0 : index
    %78 = vector.load %arg6[%c0_103, %c0_104] : memref<256x128xf32, #tpu.memory_space<vmem>>, vector<256x128xf32>
    tpu.vector_store %arg6[%c0_103, %c0_104], %77 {strides = array<i32>} : memref<256x128xf32, #tpu.memory_space<vmem>>, vector<256x128xf32>,
    %c0_105 = arith.constant 0 : index
    %c0_106 = arith.constant 0 : index
    %79 = vector.load %arg6[%c0_105, %c0_106] : memref<256x128xf32, #tpu.memory_space<vmem>>, vector<256x128xf32>
    %c0_107 = arith.constant 0 : index
    %c0_108 = arith.constant 0 : index
    %80 = vector.load %arg4[%c0_107, %c0_108] : memref<1x128xf32, #tpu.memory_space<vmem>>, vector<1x128xf32>
    %81 = vector.broadcast %80 : vector<1x128xf32> to vector<256x128xf32>
    %82 = arith.addf %79, %81 : vector<256x128xf32>
    %83 = arith.truncf %82 : vector<256x128xf32> to vector<256x128xbf16>
    %c0_109 = arith.constant 0 : index
    %c0_110 = arith.constant 0 : index
    %c0_111 = arith.constant 0 : index
    %84 = vector.load %arg5[%c0_109, %c0_110, %c0_111] : memref<1x256x128xbf16, #tpu.memory_space<vmem>>, vector<1x256x128xbf16>
    %85 = vector.shape_cast %84 : vector<1x256x128xbf16> to vector<256x128xbf16>
    %86 = vector.shape_cast %83 : vector<256x128xbf16> to vector<1x256x128xbf16>
    tpu.vector_store %arg5[%c0_109, %c0_110, %c0_111], %86 {strides = array<i32>} : memref<1x256x128xbf16, #tpu.memory_space<vmem>>, vector<1x256x128xbf16>,
    return
  }
  func.func @transform_0(%arg0: i32, %arg1: i32) -> (i32, i32, i32, i32, i32) {
    %c0_i32 = arith.constant 0 : i32
    %c0_i32_0 = arith.constant 0 : i32
    %c0_i32_1 = arith.constant 0 : i32
    %c0_i32_2 = arith.constant 0 : i32
    return %arg0, %arg1, %c0_i32, %c0_i32_0, %c0_i32_1 : i32, i32, i32, i32, i32
  }
  func.func @transform_1(%arg0: i32, %arg1: i32) -> (i32, i32, i32) {
    %c0_i32 = arith.constant 0 : i32
    %c0_i32_0 = arith.constant 0 : i32
    %c0_i32_1 = arith.constant 0 : i32
    %c0_i32_2 = arith.constant 0 : i32
    return %c0_i32, %c0_i32_0, %c0_i32_1 : i32, i32, i32
  }
  func.func @transform_2(%arg0: i32, %arg1: i32) -> (i32, i32) {
    %c0_i32 = arith.constant 0 : i32
    %c0_i32_0 = arith.constant 0 : i32
    %c0_i32_1 = arith.constant 0 : i32
    return %c0_i32, %c0_i32_0 : i32, i32
  }
  func.func @transform_3(%arg0: i32, %arg1: i32) -> (i32, i32, i32) {
    %c0_i32 = arith.constant 0 : i32
    %c0_i32_0 = arith.constant 0 : i32
    return %arg0, %arg1, %c0_i32 : i32, i32, i32
  }
}

</mosaic_0001>

<llo_original>
// kernel: tpu_custom_call.1
$region0: #{tpu_custom_call.1}
  #allocation0 [shape = 'u32[]', space=smem, size = 0x4, offset = 0x4, fixed_abs, tag = 'smem constant byte address 0x4 - core index']
  #allocation1 [shape = 'u32[72,128]{1,0:T(1,128)}', space=vmem, size = 0x9000, scoped, tag = 'internal scratch']
  #allocation2 [shape = 'f32[256,128]{1,0:T(8,128)}', space=vmem, size = 0x20000, scoped, tag = 'scratch operand']
  %s0 = inlined_call_operand.vmem [shape: bf16[2,1,18,18,4], index: 0, kind: input, shape index: {}]
  %s1 = inlined_call_operand.vmem [shape: bf16[9,4,128], index: 1, kind: input, shape index: {}]
  %s2 = inlined_call_operand.vmem [shape: f32[1,128], index: 2, kind: input, shape index: {}]
  %s3 = inlined_call_operand.hbm [shape: bf16[2,256,128], index: 3, kind: output, shape index: {}]
  %s4 = sld [smem:[#allocation0]]
  $region45: #{tpu_custom_call.1} parent=0
    _
  %s6 = ssub.s32 1, %s4
  %s7 = scalar_select 0, %s6, %s4
  $region1: #{tpu_custom_call.1} parent=0
    #allocation3 [shape = 'u8[131072]{0}', space=vmem, size = 0x20000, scoped, tag = 'output window, operand 0']
    #allocation4 [shape = 's32[2]{0}', space=sflag, size = 0x8, scoped, tag = 'scoped memory for tpu_custom_call.1']
    %8 = vsyncpa [#allocation4], 0
    %s9 = scalar_lea.sflag [#allocation4], 1
    %10 = vsyncpa %s9, 0
    loop: start=0, step=1, limit=4
    $region2: #{tpu_custom_call.1} parent=1 // loop_pre_header
      _
    $region3: #{tpu_custom_call.1} parent=1 // loop_header
      %s12 = sphi 0, %s16
      %p13 = scmp.ge.s32.totalorder %s12, 4
      %s19 = sphi 0, %s31
      %s20 = sphi 0, %s27
      %s21 = sphi 0, %s19
      %s22 = sphi 0, %s20
      %s23 = sphi 0, %s21
      %s24 = sphi 0, %s22
      %s36 = sphi 0, %s38
      %s39 = sphi 0, %s36
      %s40 = sphi 0, %s39
      %s56 = sphi 0, %s40
      %s60 = sphi 0, %s60
      %s62 = sphi 0, %s60
      %s63 = sphi 0, %s62
      %s77 = sphi 0, %s63
      %s81 = sphi 0, %s81
      %s83 = sphi 0, %s81
      %s84 = sphi 0, %s83
      %s98 = sphi 0, %s84
      %s106 = sphi 0, %s108
      %s109 = sphi 0, %s106
      %s110 = sphi 0, %s109
      %s126 = sphi 0, %s110
    $region4: #{tpu_custom_call.1} parent=1 // loop_header_branch
      %15 = sbr.rel (%p13) target = $region8
    $region5: #{tpu_custom_call.1} parent=1 // loop_body
      %s17 = ssub.s32 %s12, 1
      %s18 = ssub.s32 %s12, 2
      %s25 = sadd.s32 1, %s20
      %p26 = scmp.ge.s32.totalorder %s25, 1
      %s27 = scalar_select %p26, 0, %s25
      %s28 = sadd.s32 1, %s19
      %s29 = scalar_select %p26, %s28, %s19
      %p30 = scmp.ge.s32.totalorder %s29, 2
      %s31 = scalar_select %p30, 0, %s29
      %s32 = ssub.s32 %s19, %s31
      %s33 = ssub.s32 %s20, %s27
      %s34 = sor.u32 %s32, %s33
      %p35 = scmp.eq.s32.totalorder %s34, 0
      %s37 = sadd.s32 %s36, 1
      %s38 = scalar_select %p35, %s36, %s37
      %p41 = pneg %p35
      %p42 = scmp.eq.s32.totalorder %s12, 1
      %p43 = por %p41, %p42
      %p44 = scmp.ne.s32.totalorder %s36, %s39
      %p45 = scmp.eq.s32.totalorder %s12, 0
      %p46 = por %p44, %p45
      %p47 = scmp.ne.s32.totalorder %s36, %s39
      %p48 = scmp.eq.s32.totalorder %s17, 1
      %p49 = por %p47, %p48
      %p50 = scmp.ne.s32.totalorder %s39, %s40
      %p51 = scmp.eq.s32.totalorder %s17, 0
      %p52 = por %p50, %p51
      %p53 = scmp.ne.s32.totalorder %s39, %s40
      %p54 = scmp.eq.s32.totalorder %s18, 1
      %p55 = por %p53, %p54
      %p57 = scmp.ne.s32.totalorder %s40, %s56
      %p58 = scmp.eq.s32.totalorder %s18, 0
      %p59 = por %p57, %p58
      %s61 = sadd.s32 %s60, 1
      %p64 = scmp.eq.s32.totalorder %s12, 1
      %p65 = scmp.ne.s32.totalorder %s60, %s62
      %p66 = scmp.eq.s32.totalorder %s12, 0
      %p67 = por %p65, %p66
      %p68 = scmp.ne.s32.totalorder %s60, %s62
      %p69 = scmp.eq.s32.totalorder %s17, 1
      %p70 = por %p68, %p69
      %p71 = scmp.ne.s32.totalorder %s62, %s63
      %p72 = scmp.eq.s32.totalorder %s17, 0
      %p73 = por %p71, %p72
      %p74 = scmp.ne.s32.totalorder %s62, %s63
      %p75 = scmp.eq.s32.totalorder %s18, 1
      %p76 = por %p74, %p75
      %p78 = scmp.ne.s32.totalorder %s63, %s77
      %p79 = scmp.eq.s32.totalorder %s18, 0
      %p80 = por %p78, %p79
      %s82 = sadd.s32 %s81, 1
      %p85 = scmp.eq.s32.totalorder %s12, 1
      %p86 = scmp.ne.s32.totalorder %s81, %s83
      %p87 = scmp.eq.s32.totalorder %s12, 0
      %p88 = por %p86, %p87
      %p89 = scmp.ne.s32.totalorder %s81, %s83
      %p90 = scmp.eq.s32.totalorder %s17, 1
      %p91 = por %p89, %p90
      %p92 = scmp.ne.s32.totalorder %s83, %s84
      %p93 = scmp.eq.s32.totalorder %s17, 0
      %p94 = por %p92, %p93
      %p95 = scmp.ne.s32.totalorder %s83, %s84
      %p96 = scmp.eq.s32.totalorder %s18, 1
      %p97 = por %p95, %p96
      %p99 = scmp.ne.s32.totalorder %s84, %s98
      %p100 = scmp.eq.s32.totalorder %s18, 0
      %p101 = por %p99, %p100
      %s102 = ssub.s32 %s19, %s31
      %s103 = ssub.s32 %s20, %s27
      %s104 = sor.u32 %s102, %s103
      %p105 = scmp.eq.s32.totalorder %s104, 0
      %s107 = sadd.s32 %s106, 1
      %s108 = scalar_select %p105, %s106, %s107
      %p111 = pneg %p105
      %p112 = scmp.eq.s32.totalorder %s12, 1
      %p113 = por %p111, %p112
      %p114 = scmp.ne.s32.totalorder %s106, %s109
      %p115 = scmp.eq.s32.totalorder %s12, 0
      %p116 = por %p114, %p115
      %p117 = scmp.ne.s32.totalorder %s106, %s109
      %p118 = scmp.eq.s32.totalorder %s17, 1
      %p119 = por %p117, %p118
      %p120 = scmp.ne.s32.totalorder %s109, %s110
      %p121 = scmp.eq.s32.totalorder %s17, 0
      %p122 = por %p120, %p121
      %p123 = scmp.ne.s32.totalorder %s109, %s110
      %p124 = scmp.eq.s32.totalorder %s18, 1
      %p125 = por %p123, %p124
      %p127 = scmp.ne.s32.totalorder %s110, %s126
      %p128 = scmp.eq.s32.totalorder %s18, 0
      %p129 = por %p127, %p128
      %p130 = scmp.le.s32.totalorder 1, %s12
      %p131 = scmp.lt.s32.totalorder %s12, 3
      %p132 = pnand %p130, %p131
      %p133 = pneg %p132
      // Predicated region
      $region9: #{tpu_custom_call.1} parent=5 // pred_check
        _
      $region10: #{tpu_custom_call.1} parent=5 // pred_check_branch
        %135 = sbr.rel (%p132) target = $region12
      $region11: #{tpu_custom_call.1} parent=5 // pred_region
        %s136 = ssub.s32 %s12, 1
        // Predicated region
        $region13: #{tpu_custom_call.1} parent=11 // pred_check
          %p137 = pneg %p73
        $region14: #{tpu_custom_call.1} parent=11 // pred_check_branch
          %139 = sbr.rel (%p137) target = $region16
        $region15: #{tpu_custom_call.1} parent=11 // pred_region
          _
        $region16: #{tpu_custom_call.1} parent=11 // pred_fallthru
          _
        // Predicated region
        $region17: #{tpu_custom_call.1} parent=11 // pred_check
          %p140 = pneg %p94
        $region18: #{tpu_custom_call.1} parent=11 // pred_check_branch
          %142 = sbr.rel (%p140) target = $region20
        $region19: #{tpu_custom_call.1} parent=11 // pred_region
          _
        $region20: #{tpu_custom_call.1} parent=11 // pred_fallthru
          _
      $region12: #{tpu_custom_call.1} parent=5 // pred_fallthru
        _
      %p143 = scmp.lt.s32.totalorder %s12, 2
      // Predicated region
      $region21: #{tpu_custom_call.1} parent=5 // pred_check
        %p144 = pneg %p143
      $region22: #{tpu_custom_call.1} parent=5 // pred_check_branch
        %146 = sbr.rel (%p144) target = $region24
      $region23: #{tpu_custom_call.1} parent=5 // pred_region
        // Predicated region
        $region25: #{tpu_custom_call.1} parent=23 // pred_check
          %p147 = pneg %p46
        $region26: #{tpu_custom_call.1} parent=23 // pred_check_branch
          %149 = sbr.rel (%p147) target = $region28
        $region27: #{tpu_custom_call.1} parent=23 // pred_region
          %p150 = scmp.lt.s32.totalorder %s19, 1
          %s151 = scalar_select %p150, %s19, 1
          %p152 = scmp.lt.s32.totalorder %s20, 0
          %s153 = scalar_select %p152, %s20, 0
          %s154 = smul.addr %s153, 54
          %s155 = smul.addr %s151, 54
          %s156 = sadd.s32 %s154, %s155
          %s157 = smul.addr %s156, 4
          %s158 = scalar_lea.vmem %s0, %s157
        $region28: #{tpu_custom_call.1} parent=23 // pred_fallthru
          _
      $region24: #{tpu_custom_call.1} parent=5 // pred_fallthru
        _
      %p159 = scmp.le.s32.totalorder 1, %s12
      %p160 = scmp.lt.s32.totalorder %s12, 3
      %p161 = pnand %p159, %p160
      %p162 = pneg %p161
      // Predicated region
      $region29: #{tpu_custom_call.1} parent=5 // pred_check
        _
      $region30: #{tpu_custom_call.1} parent=5 // pred_check_branch
        %164 = sbr.rel (%p161) target = $region32
      $region31: #{tpu_custom_call.1} parent=5 // pred_region
        %s165 = ssub.s32 %s12, 1
        %p166 = scmp.lt.s32.totalorder %s21, 1
        %s167 = scalar_select %p166, %s21, 1
        %p168 = scmp.lt.s32.totalorder %s22, 0
        %s169 = scalar_select %p168, %s22, 0
        %s170 = smul.addr %s169, 54
        %s171 = smul.addr %s167, 54
        %s172 = sadd.s32 %s170, %s171
        %s173 = smul.addr %s172, 4
        %s174 = scalar_lea.vmem %s0, %s173
        %p175 = pneg %p52
        %p176 = pneg %p49
        %p177 = pneg %p73
        %p178 = pneg %p70
        %p179 = pneg %p94
        %p180 = pneg %p91
        %p181 = pneg %p122
        %p182 = pneg %p119
        %s183 = sand.u32 %s109, 1
        %s184 = scalar_lea.sflag [#allocation4], %s183
        %s185 = sand.u32 %s109, 1
        %s186 = smul.addr %s185, 128
        %s187 = scalar_lea.vmem [#allocation3], %s186
        %p188 = scmp.lt.s32.totalorder %s21, 1
        %s189 = scalar_select %p188, %s21, 1
        %p190 = scmp.lt.s32.totalorder %s22, 0
        %s191 = scalar_select %p190, %s22, 0
        %s192 = smul.addr %s191, 54
        %s193 = smul.addr %s189, 54
        %s194 = sadd.s32 %s192, %s193
        %s195 = smul.addr %s194, 4
        %s196 = scalar_lea.vmem %s0, %s195
        %s197 = smul.u32 32, %s22
        %v199 = vld [vmem:[%s196] sm:$0xf]
        %v200 = vld [vmem:[%s196 + $0x4] sm:$0xf]
        %v201 = vld [vmem:[%s196 + $0xc] sm:$0xf]
        %v202 = vld [vmem:[%s196 + $0x10] sm:$0xf]
        %v203 = vld [vmem:[%s196 + $0x18] sm:$0xf]
        %v204 = vld [vmem:[%s196 + $0x1c] sm:$0xf]
        %v205 = vld [vmem:[%s196 + $0x24] sm:$0xf]
        %v206 = vld [vmem:[%s196 + $0x28] sm:$0xf]
        %v207 = vld [vmem:[%s196 + $0x30] sm:$0xf]
        %v208 = vld [vmem:[%s196 + $0x34] sm:$0xf]
        %v209 = vld [vmem:[%s196 + $0x3c] sm:$0xf]
        %v210 = vld [vmem:[%s196 + $0x40] sm:$0xf]
        %v211 = vld [vmem:[%s196 + $0x48] sm:$0xf]
        %v212 = vld [vmem:[%s196 + $0x4c] sm:$0xf]
        %v213 = vld [vmem:[%s196 + $0x54] sm:$0xf]
        %v214 = vld [vmem:[%s196 + $0x58] sm:$0xf]
        %v215 = vld [vmem:[%s196 + $0x60] sm:$0xf]
        %v216 = vld [vmem:[%s196 + $0x64] sm:$0xf]
        %v217 = vld [vmem:[%s196 + $0x6c] sm:$0xf]
        %v218 = vld [vmem:[%s196 + $0x70] sm:$0xf]
        %v219 = vld [vmem:[%s196 + $0x78] sm:$0xf]
        %v220 = vld [vmem:[%s196 + $0x7c] sm:$0xf]
        %v221 = vld [vmem:[%s196 + $0x84] sm:$0xf]
        %v222 = vld [vmem:[%s196 + $0x88] sm:$0xf]
        %v223 = vld [vmem:[%s196 + $0x90] sm:$0xf]
        %v224 = vld [vmem:[%s196 + $0x94] sm:$0xf]
        %v225 = vld [vmem:[%s196 + $0x9c] sm:$0xf]
        %v226 = vld [vmem:[%s196 + $0xa0] sm:$0xf]
        %v227 = vld [vmem:[%s196 + $0xa8] sm:$0xf]
        %v228 = vld [vmem:[%s196 + $0xac] sm:$0xf]
        %v229 = vld [vmem:[%s196 + $0xb4] sm:$0xf]
        %v230 = vld [vmem:[%s196 + $0xb8] sm:$0xf]
        %v231 = vld [vmem:[%s1] sm:$0x3]
        %v264 = vunpack.c.l.b16 %v199
        %v265 = vunpack.c.l.b16 %v200
        %v266 = vunpack.c.l.b16 %v201
        %v267 = vunpack.c.l.b16 %v202
        %v268 = vunpack.c.l.b16 %v203
        %v269 = vunpack.c.l.b16 %v204
        %v270 = vunpack.c.l.b16 %v205
        %v271 = vunpack.c.l.b16 %v206
        %v272 = vunpack.c.l.b16 %v207
        %v273 = vunpack.c.l.b16 %v208
        %v274 = vunpack.c.l.b16 %v209
        %v275 = vunpack.c.l.b16 %v210
        %v276 = vunpack.c.l.b16 %v211
        %v277 = vunpack.c.l.b16 %v212
        %v278 = vunpack.c.l.b16 %v213
        %v279 = vunpack.c.l.b16 %v214
        %v280 = vunpack.c.l.b16 %v215
        %v281 = vunpack.c.l.b16 %v216
        %v282 = vunpack.c.l.b16 %v217
        %v283 = vunpack.c.l.b16 %v218
        %v284 = vunpack.c.l.b16 %v219
        %v285 = vunpack.c.l.b16 %v220
        %v286 = vunpack.c.l.b16 %v221
        %v287 = vunpack.c.l.b16 %v222
        %v288 = vunpack.c.l.b16 %v223
        %v289 = vunpack.c.l.b16 %v224
        %v290 = vunpack.c.l.b16 %v225
        %v291 = vunpack.c.l.b16 %v226
        %v292 = vunpack.c.l.b16 %v227
        %v293 = vunpack.c.l.b16 %v228
        %v294 = vunpack.c.l.b16 %v229
        %v295 = vunpack.c.l.b16 %v230
        %v296 = vpack.c.b16 %v265, %v264
        %v297 = vpack.c.b16 %v267, %v266
        %v298 = vpack.c.b16 %v269, %v268
        %v299 = vpack.c.b16 %v271, %v270
        %v300 = vpack.c.b16 %v273, %v272
        %v301 = vpack.c.b16 %v275, %v274
        %v302 = vpack.c.b16 %v277, %v276
        %v303 = vpack.c.b16 %v279, %v278
        %v304 = vpack.c.b16 %v281, %v280
        %v305 = vpack.c.b16 %v283, %v282
        %v306 = vpack.c.b16 %v285, %v284
        %v307 = vpack.c.b16 %v287, %v286
        %v308 = vpack.c.b16 %v289, %v288
        %v309 = vpack.c.b16 %v291, %v290
        %v310 = vpack.c.b16 %v293, %v292
        %v311 = vpack.c.b16 %v295, %v294
        %vm312 = vcmask 31744
        %v314 = vsel %vm312, %v296, 0
        %v317 = vsel %vm312, %v297, 0
        %v320 = vsel %vm312, %v298, 0
        %v323 = vsel %vm312, %v299, 0
        %v326 = vsel %vm312, %v300, 0
        %v329 = vsel %vm312, %v301, 0
        %v332 = vsel %vm312, %v302, 0
        %v335 = vsel %vm312, %v303, 0
        %v338 = vsel %vm312, %v304, 0
        %v341 = vsel %vm312, %v305, 0
        %v344 = vsel %vm312, %v306, 0
        %v347 = vsel %vm312, %v307, 0
        %v350 = vsel %vm312, %v308, 0
        %v353 = vsel %vm312, %v309, 0
        %v356 = vsel %vm312, %v310, 0
        %v359 = vsel %vm312, %v311, 0
        %vm361 = vcmask 1041408
        %v363 = vsel %vm361, %v231, 0
        %365 = vmatpush.bf16.msra.mxu0 0
        %366 = vmatpush.bf16.msra.mxu0 0
        %367 = vmatpush.bf16.msra.mxu0 0
        %368 = vmatpush.bf16.msra.mxu0 0
        %369 = vmatpush.bf16.msra.mxu0 0
        %370 = vmatpush.bf16.msra.mxu0 0
        %371 = vmatpush.bf16.msra.mxu0 0
        %372 = vmatpush.bf16.msra.mxu0 %v363
        %373 = vmatmul.bf16.gmra.mxu0 %v314
        %v374 = vpop.f32.mrf.mxu0
        %v375 = vadd.f32 0.0, %v374
        %v376 = vpop.f32.mrf.mxu0
        %v377 = vadd.f32 0.0, %v376
        %378 = vmatmul.bf16.gmra.mxu0 %v317
        %v379 = vpop.f32.mrf.mxu0
        %v380 = vadd.f32 0.0, %v379
        %v381 = vpop.f32.mrf.mxu0
        %v382 = vadd.f32 0.0, %v381
        %383 = vmatmul.bf16.gmra.mxu0 %v320
        %v384 = vpop.f32.mrf.mxu0
        %v385 = vadd.f32 0.0, %v384
        %v386 = vpop.f32.mrf.mxu0
        %v387 = vadd.f32 0.0, %v386
        %388 = vmatmul.bf16.gmra.mxu0 %v323
        %v389 = vpop.f32.mrf.mxu0
        %v390 = vadd.f32 0.0, %v389
        %v391 = vpop.f32.mrf.mxu0
        %v392 = vadd.f32 0.0, %v391
        %393 = vmatmul.bf16.gmra.mxu0 %v326
        %v394 = vpop.f32.mrf.mxu0
        %v395 = vadd.f32 0.0, %v394
        %v396 = vpop.f32.mrf.mxu0
        %v397 = vadd.f32 0.0, %v396
        %398 = vmatmul.bf16.gmra.mxu0 %v329
        %v399 = vpop.f32.mrf.mxu0
        %v400 = vadd.f32 0.0, %v399
        %v401 = vpop.f32.mrf.mxu0
        %v402 = vadd.f32 0.0, %v401
        %403 = vmatmul.bf16.gmra.mxu0 %v332
        %v404 = vpop.f32.mrf.mxu0
        %v405 = vadd.f32 0.0, %v404
        %v406 = vpop.f32.mrf.mxu0
        %v407 = vadd.f32 0.0, %v406
        %408 = vmatmul.bf16.gmra.mxu0 %v335
        %v409 = vpop.f32.mrf.mxu0
        %v410 = vadd.f32 0.0, %v409
        %v411 = vpop.f32.mrf.mxu0
        %v412 = vadd.f32 0.0, %v411
        %413 = vmatmul.bf16.gmra.mxu0 %v338
        %v414 = vpop.f32.mrf.mxu0
        %v415 = vadd.f32 0.0, %v414
        %v416 = vpop.f32.mrf.mxu0
        %v417 = vadd.f32 0.0, %v416
        %418 = vmatmul.bf16.gmra.mxu0 %v341
        %v419 = vpop.f32.mrf.mxu0
        %v420 = vadd.f32 0.0, %v419
        %v421 = vpop.f32.mrf.mxu0
        %v422 = vadd.f32 0.0, %v421
        %423 = vmatmul.bf16.gmra.mxu0 %v344
        %v424 = vpop.f32.mrf.mxu0
        %v425 = vadd.f32 0.0, %v424
        %v426 = vpop.f32.mrf.mxu0
        %v427 = vadd.f32 0.0, %v426
        %428 = vmatmul.bf16.gmra.mxu0 %v347
        %v429 = vpop.f32.mrf.mxu0
        %v430 = vadd.f32 0.0, %v429
        %v431 = vpop.f32.mrf.mxu0
        %v432 = vadd.f32 0.0, %v431
        %433 = vmatmul.bf16.gmra.mxu0 %v350
        %v434 = vpop.f32.mrf.mxu0
        %v435 = vadd.f32 0.0, %v434
        %v436 = vpop.f32.mrf.mxu0
        %v437 = vadd.f32 0.0, %v436
        %438 = vmatmul.bf16.gmra.mxu0 %v353
        %v439 = vpop.f32.mrf.mxu0
        %v440 = vadd.f32 0.0, %v439
        %v441 = vpop.f32.mrf.mxu0
        %v442 = vadd.f32 0.0, %v441
        %443 = vmatmul.bf16.gmra.mxu0 %v356
        %v444 = vpop.f32.mrf.mxu0
        %v445 = vadd.f32 0.0, %v444
        %v446 = vpop.f32.mrf.mxu0
        %v447 = vadd.f32 0.0, %v446
        %448 = vmatmul.bf16.gmra.mxu0 %v359
        %v449 = vpop.f32.mrf.mxu0
        %v450 = vadd.f32 0.0, %v449
        %v451 = vpop.f32.mrf.mxu0
        %v452 = vadd.f32 0.0, %v451
        %453 = vdwg.mxu0
        %454 = vst [vmem:[#allocation2] sm:$0xff] %v375
        %455 = vst [vmem:[#allocation2 + $0x8] sm:$0xff] %v377
        %456 = vst [vmem:[#allocation2 + $0x10] sm:$0xff] %v380
        %457 = vst [vmem:[#allocation2 + $0x18] sm:$0xff] %v382
        %458 = vst [vmem:[#allocation2 + $0x20] sm:$0xff] %v385
        %459 = vst [vmem:[#allocation2 + $0x28] sm:$0xff] %v387
        %460 = vst [vmem:[#allocation2 + $0x30] sm:$0xff] %v390
        %461 = vst [vmem:[#allocation2 + $0x38] sm:$0xff] %v392
        %462 = vst [vmem:[#allocation2 + $0x40] sm:$0xff] %v395
        %463 = vst [vmem:[#allocation2 + $0x48] sm:$0xff] %v397
        %464 = vst [vmem:[#allocation2 + $0x50] sm:$0xff] %v400
        %465 = vst [vmem:[#allocation2 + $0x58] sm:$0xff] %v402
        %466 = vst [vmem:[#allocation2 + $0x60] sm:$0xff] %v405
        %467 = vst [vmem:[#allocation2 + $0x68] sm:$0xff] %v407
        %468 = vst [vmem:[#allocation2 + $0x70] sm:$0xff] %v410
        %469 = vst [vmem:[#allocation2 + $0x78] sm:$0xff] %v412
        %470 = vst [vmem:[#allocation2 + $0x80] sm:$0xff] %v415
        %471 = vst [vmem:[#allocation2 + $0x88] sm:$0xff] %v417
        %472 = vst [vmem:[#allocation2 + $0x90] sm:$0xff] %v420
        %473 = vst [vmem:[#allocation2 + $0x98] sm:$0xff] %v422
        %474 = vst [vmem:[#allocation2 + $0xa0] sm:$0xff] %v425
        %475 = vst [vmem:[#allocation2 + $0xa8] sm:$0xff] %v427
        %476 = vst [vmem:[#allocation2 + $0xb0] sm:$0xff] %v430
        %477 = vst [vmem:[#allocation2 + $0xb8] sm:$0xff] %v432
        %478 = vst [vmem:[#allocation2 + $0xc0] sm:$0xff] %v435
        %479 = vst [vmem:[#allocation2 + $0xc8] sm:$0xff] %v437
        %480 = vst [vmem:[#allocation2 + $0xd0] sm:$0xff] %v440
        %481 = vst [vmem:[#allocation2 + $0xd8] sm:$0xff] %v442
        %482 = vst [vmem:[#allocation2 + $0xe0] sm:$0xff] %v445
        %483 = vst [vmem:[#allocation2 + $0xe8] sm:$0xff] %v447
        %484 = vst [vmem:[#allocation2 + $0xf0] sm:$0xff] %v450
        %485 = vst [vmem:[#allocation2 + $0xf8] sm:$0xff] %v452
        %v486 = vld [vmem:[%s196] sm:$0xf]
        %v487 = vld [vmem:[%s196 + $0x4] sm:$0xf]
        %v488 = vld [vmem:[%s196 + $0x8] sm:$0x1]
        %v489 = vld [vmem:[%s196 + $0xc] sm:$0xf]
        %v490 = vld [vmem:[%s196 + $0x10] sm:$0xf]
        %v491 = vld [vmem:[%s196 + $0x14] sm:$0x1]
        %v492 = vld [vmem:[%s196 + $0x18] sm:$0xf]
        %v493 = vld [vmem:[%s196 + $0x1c] sm:$0xf]
        %v494 = vld [vmem:[%s196 + $0x20] sm:$0x1]
        %v495 = vld [vmem:[%s196 + $0x24] sm:$0xf]
        %v496 = vld [vmem:[%s196 + $0x28] sm:$0xf]
        %v497 = vld [vmem:[%s196 + $0x2c] sm:$0x1]
        %v498 = vld [vmem:[%s196 + $0x30] sm:$0xf]
        %v499 = vld [vmem:[%s196 + $0x34] sm:$0xf]
        %v500 = vld [vmem:[%s196 + $0x38] sm:$0x1]
        %v501 = vld [vmem:[%s196 + $0x3c] sm:$0xf]
        %v502 = vld [vmem:[%s196 + $0x40] sm:$0xf]
        %v503 = vld [vmem:[%s196 + $0x44] sm:$0x1]
        %v504 = vld [vmem:[%s196 + $0x48] sm:$0xf]
        %v505 = vld [vmem:[%s196 + $0x4c] sm:$0xf]
        %v506 = vld [vmem:[%s196 + $0x50] sm:$0x1]
        %v507 = vld [vmem:[%s196 + $0x54] sm:$0xf]
        %v508 = vld [vmem:[%s196 + $0x58] sm:$0xf]
        %v509 = vld [vmem:[%s196 + $0x5c] sm:$0x1]
        %v510 = vld [vmem:[%s196 + $0x60] sm:$0xf]
        %v511 = vld [vmem:[%s196 + $0x64] sm:$0xf]
        %v512 = vld [vmem:[%s196 + $0x68] sm:$0x1]
        %v513 = vld [vmem:[%s196 + $0x6c] sm:$0xf]
        %v514 = vld [vmem:[%s196 + $0x70] sm:$0xf]
        %v515 = vld [vmem:[%s196 + $0x74] sm:$0x1]
        %v516 = vld [vmem:[%s196 + $0x78] sm:$0xf]
        %v517 = vld [vmem:[%s196 + $0x7c] sm:$0xf]
        %v518 = vld [vmem:[%s196 + $0x80] sm:$0x1]
        %v519 = vld [vmem:[%s196 + $0x84] sm:$0xf]
        %v520 = vld [vmem:[%s196 + $0x88] sm:$0xf]
        %v521 = vld [vmem:[%s196 + $0x8c] sm:$0x1]
        %v522 = vld [vmem:[%s196 + $0x90] sm:$0xf]
        %v523 = vld [vmem:[%s196 + $0x94] sm:$0xf]
        %v524 = vld [vmem:[%s196 + $0x98] sm:$0x1]
        %v525 = vld [vmem:[%s196 + $0x9c] sm:$0xf]
        %v526 = vld [vmem:[%s196 + $0xa0] sm:$0xf]
        %v527 = vld [vmem:[%s196 + $0xa4] sm:$0x1]
        %v528 = vld [vmem:[%s196 + $0xa8] sm:$0xf]
        %v529 = vld [vmem:[%s196 + $0xac] sm:$0xf]
        %v530 = vld [vmem:[%s196 + $0xb0] sm:$0x1]
        %v531 = vld [vmem:[%s196 + $0xb4] sm:$0xf]
        %v532 = vld [vmem:[%s196 + $0xb8] sm:$0xf]
        %v533 = vld [vmem:[%s196 + $0xbc] sm:$0x1]
        %vm534 = vsmask.f32 3328
        %vm535 = vsmask.f32 7440
        %vm536 = vmor %vm534, %vm535
        %v538 = vshrl.u32 %v486, 16
        %v540 = vrot.slane %v538, 4
        %v541 = vshll.u32 %v486, 16
        %v543 = vrot.slane %v541, 5
        %v544 = vor.u32 %v540, %v543
        %v545 = vrot.slane %v544, 4
        %v547 = vshll.u32 %v487, 16
        %v549 = vrot.slane %v547, 5
        %v550 = vsel %vm536, %v545, %v549
        %v551 = vshrl.u32 %v487, 16
        %v553 = vrot.slane %v551, 4
        %v554 = vor.u32 %v553, %v549
        %v555 = vrot.slane %v554, 4
        %v557 = vshll.u32 %v488, 16
        %v559 = vrot.slane %v557, 5
        %v560 = vsel %vm536, %v555, %v559
        %v562 = vshrl.u32 %v489, 16
        %v564 = vrot.slane %v562, 4
        %v565 = vshll.u32 %v489, 16
        %v567 = vrot.slane %v565, 5
        %v568 = vor.u32 %v564, %v567
        %v569 = vrot.slane %v568, 4
        %v571 = vshll.u32 %v490, 16
        %v573 = vrot.slane %v571, 5
        %v574 = vsel %vm536, %v569, %v573
        %v575 = vshrl.u32 %v490, 16
        %v577 = vrot.slane %v575, 4
        %v578 = vor.u32 %v577, %v573
        %v579 = vrot.slane %v578, 4
        %v581 = vshll.u32 %v491, 16
        %v583 = vrot.slane %v581, 5
        %v584 = vsel %vm536, %v579, %v583
        %v586 = vshrl.u32 %v492, 16
        %v588 = vrot.slane %v586, 4
        %v589 = vshll.u32 %v492, 16
        %v591 = vrot.slane %v589, 5
        %v592 = vor.u32 %v588, %v591
        %v593 = vrot.slane %v592, 4
        %v595 = vshll.u32 %v493, 16
        %v597 = vrot.slane %v595, 5
        %v598 = vsel %vm536, %v593, %v597
        %v599 = vshrl.u32 %v493, 16
        %v601 = vrot.slane %v599, 4
        %v602 = vor.u32 %v601, %v597
        %v603 = vrot.slane %v602, 4
        %v605 = vshll.u32 %v494, 16
        %v607 = vrot.slane %v605, 5
        %v608 = vsel %vm536, %v603, %v607
        %v610 = vshrl.u32 %v495, 16
        %v612 = vrot.slane %v610, 4
        %v613 = vshll.u32 %v495, 16
        %v615 = vrot.slane %v613, 5
        %v616 = vor.u32 %v612, %v615
        %v617 = vrot.slane %v616, 4
        %v619 = vshll.u32 %v496, 16
        %v621 = vrot.slane %v619, 5
        %v622 = vsel %vm536, %v617, %v621
        %v623 = vshrl.u32 %v496, 16
        %v625 = vrot.slane %v623, 4
        %v626 = vor.u32 %v625, %v621
        %v627 = vrot.slane %v626, 4
        %v629 = vshll.u32 %v497, 16
        %v631 = vrot.slane %v629, 5
        %v632 = vsel %vm536, %v627, %v631
        %v634 = vshrl.u32 %v498, 16
        %v636 = vrot.slane %v634, 4
        %v637 = vshll.u32 %v498, 16
        %v639 = vrot.slane %v637, 5
        %v640 = vor.u32 %v636, %v639
        %v641 = vrot.slane %v640, 4
        %v643 = vshll.u32 %v499, 16
        %v645 = vrot.slane %v643, 5
        %v646 = vsel %vm536, %v641, %v645
        %v647 = vshrl.u32 %v499, 16
        %v649 = vrot.slane %v647, 4
        %v650 = vor.u32 %v649, %v645
        %v651 = vrot.slane %v650, 4
        %v653 = vshll.u32 %v500, 16
        %v655 = vrot.slane %v653, 5
        %v656 = vsel %vm536, %v651, %v655
        %v658 = vshrl.u32 %v501, 16
        %v660 = vrot.slane %v658, 4
        %v661 = vshll.u32 %v501, 16
        %v663 = vrot.slane %v661, 5
        %v664 = vor.u32 %v660, %v663
        %v665 = vrot.slane %v664, 4
        %v667 = vshll.u32 %v502, 16
        %v669 = vrot.slane %v667, 5
        %v670 = vsel %vm536, %v665, %v669
        %v671 = vshrl.u32 %v502, 16
        %v673 = vrot.slane %v671, 4
        %v674 = vor.u32 %v673, %v669
        %v675 = vrot.slane %v674, 4
        %v677 = vshll.u32 %v503, 16
        %v679 = vrot.slane %v677, 5
        %v680 = vsel %vm536, %v675, %v679
        %v682 = vshrl.u32 %v504, 16
        %v684 = vrot.slane %v682, 4
        %v685 = vshll.u32 %v504, 16
        %v687 = vrot.slane %v685, 5
        %v688 = vor.u32 %v684, %v687
        %v689 = vrot.slane %v688, 4
        %v691 = vshll.u32 %v505, 16
        %v693 = vrot.slane %v691, 5
        %v694 = vsel %vm536, %v689, %v693
        %v695 = vshrl.u32 %v505, 16
        %v697 = vrot.slane %v695, 4
        %v698 = vor.u32 %v697, %v693
        %v699 = vrot.slane %v698, 4
        %v701 = vshll.u32 %v506, 16
        %v703 = vrot.slane %v701, 5
        %v704 = vsel %vm536, %v699, %v703
        %v706 = vshrl.u32 %v507, 16
        %v708 = vrot.slane %v706, 4
        %v709 = vshll.u32 %v507, 16
        %v711 = vrot.slane %v709, 5
        %v712 = vor.u32 %v708, %v711
        %v713 = vrot.slane %v712, 4
        %v715 = vshll.u32 %v508, 16
        %v717 = vrot.slane %v715, 5
        %v718 = vsel %vm536, %v713, %v717
        %v719 = vshrl.u32 %v508, 16
        %v721 = vrot.slane %v719, 4
        %v722 = vor.u32 %v721, %v717
        %v723 = vrot.slane %v722, 4
        %v725 = vshll.u32 %v509, 16
        %v727 = vrot.slane %v725, 5
        %v728 = vsel %vm536, %v723, %v727
        %v730 = vshrl.u32 %v510, 16
        %v732 = vrot.slane %v730, 4
        %v733 = vshll.u32 %v510, 16
        %v735 = vrot.slane %v733, 5
        %v736 = vor.u32 %v732, %v735
        %v737 = vrot.slane %v736, 4
        %v739 = vshll.u32 %v511, 16
        %v741 = vrot.slane %v739, 5
        %v742 = vsel %vm536, %v737, %v741
        %v743 = vshrl.u32 %v511, 16
        %v745 = vrot.slane %v743, 4
        %v746 = vor.u32 %v745, %v741
        %v747 = vrot.slane %v746, 4
        %v749 = vshll.u32 %v512, 16
        %v751 = vrot.slane %v749, 5
        %v752 = vsel %vm536, %v747, %v751
        %v754 = vshrl.u32 %v513, 16
        %v756 = vrot.slane %v754, 4
        %v757 = vshll.u32 %v513, 16
        %v759 = vrot.slane %v757, 5
        %v760 = vor.u32 %v756, %v759
        %v761 = vrot.slane %v760, 4
        %v763 = vshll.u32 %v514, 16
        %v765 = vrot.slane %v763, 5
        %v766 = vsel %vm536, %v761, %v765
        %v767 = vshrl.u32 %v514, 16
        %v769 = vrot.slane %v767, 4
        %v770 = vor.u32 %v769, %v765
        %v771 = vrot.slane %v770, 4
        %v773 = vshll.u32 %v515, 16
        %v775 = vrot.slane %v773, 5
        %v776 = vsel %vm536, %v771, %v775
        %v778 = vshrl.u32 %v516, 16
        %v780 = vrot.slane %v778, 4
        %v781 = vshll.u32 %v516, 16
        %v783 = vrot.slane %v781, 5
        %v784 = vor.u32 %v780, %v783
        %v785 = vrot.slane %v784, 4
        %v787 = vshll.u32 %v517, 16
        %v789 = vrot.slane %v787, 5
        %v790 = vsel %vm536, %v785, %v789
        %v791 = vshrl.u32 %v517, 16
        %v793 = vrot.slane %v791, 4
        %v794 = vor.u32 %v793, %v789
        %v795 = vrot.slane %v794, 4
        %v797 = vshll.u32 %v518, 16
        %v799 = vrot.slane %v797, 5
        %v800 = vsel %vm536, %v795, %v799
        %v802 = vshrl.u32 %v519, 16
        %v804 = vrot.slane %v802, 4
        %v805 = vshll.u32 %v519, 16
        %v807 = vrot.slane %v805, 5
        %v808 = vor.u32 %v804, %v807
        %v809 = vrot.slane %v808, 4
        %v811 = vshll.u32 %v520, 16
        %v813 = vrot.slane %v811, 5
        %v814 = vsel %vm536, %v809, %v813
        %v815 = vshrl.u32 %v520, 16
        %v817 = vrot.slane %v815, 4
        %v818 = vor.u32 %v817, %v813
        %v819 = vrot.slane %v818, 4
        %v821 = vshll.u32 %v521, 16
        %v823 = vrot.slane %v821, 5
        %v824 = vsel %vm536, %v819, %v823
        %v826 = vshrl.u32 %v522, 16
        %v828 = vrot.slane %v826, 4
        %v829 = vshll.u32 %v522, 16
        %v831 = vrot.slane %v829, 5
        %v832 = vor.u32 %v828, %v831
        %v833 = vrot.slane %v832, 4
        %v835 = vshll.u32 %v523, 16
        %v837 = vrot.slane %v835, 5
        %v838 = vsel %vm536, %v833, %v837
        %v839 = vshrl.u32 %v523, 16
        %v841 = vrot.slane %v839, 4
        %v842 = vor.u32 %v841, %v837
        %v843 = vrot.slane %v842, 4
        %v845 = vshll.u32 %v524, 16
        %v847 = vrot.slane %v845, 5
        %v848 = vsel %vm536, %v843, %v847
        %v850 = vshrl.u32 %v525, 16
        %v852 = vrot.slane %v850, 4
        %v853 = vshll.u32 %v525, 16
        %v855 = vrot.slane %v853, 5
        %v856 = vor.u32 %v852, %v855
        %v857 = vrot.slane %v856, 4
        %v859 = vshll.u32 %v526, 16
        %v861 = vrot.slane %v859, 5
        %v862 = vsel %vm536, %v857, %v861
        %v863 = vshrl.u32 %v526, 16
        %v865 = vrot.slane %v863, 4
        %v866 = vor.u32 %v865, %v861
        %v867 = vrot.slane %v866, 4
        %v869 = vshll.u32 %v527, 16
        %v871 = vrot.slane %v869, 5
        %v872 = vsel %vm536, %v867, %v871
        %v874 = vshrl.u32 %v528, 16
        %v876 = vrot.slane %v874, 4
        %v877 = vshll.u32 %v528, 16
        %v879 = vrot.slane %v877, 5
        %v880 = vor.u32 %v876, %v879
        %v881 = vrot.slane %v880, 4
        %v883 = vshll.u32 %v529, 16
        %v885 = vrot.slane %v883, 5
        %v886 = vsel %vm536, %v881, %v885
        %v887 = vshrl.u32 %v529, 16
        %v889 = vrot.slane %v887, 4
        %v890 = vor.u32 %v889, %v885
        %v891 = vrot.slane %v890, 4
        %v893 = vshll.u32 %v530, 16
        %v895 = vrot.slane %v893, 5
        %v896 = vsel %vm536, %v891, %v895
        %v898 = vshrl.u32 %v531, 16
        %v900 = vrot.slane %v898, 4
        %v901 = vshll.u32 %v531, 16
        %v903 = vrot.slane %v901, 5
        %v904 = vor.u32 %v900, %v903
        %v905 = vrot.slane %v904, 4
        %v907 = vshll.u32 %v532, 16
        %v909 = vrot.slane %v907, 5
        %v910 = vsel %vm536, %v905, %v909
        %v911 = vshrl.u32 %v532, 16
        %v913 = vrot.slane %v911, 4
        %v914 = vor.u32 %v913, %v909
        %v915 = vrot.slane %v914, 4
        %v917 = vshll.u32 %v533, 16
        %v919 = vrot.slane %v917, 5
        %v920 = vsel %vm536, %v915, %v919
        %s921 = scalar_lea.vmem %s1, 2
        %v922 = vld [vmem:[%s921] sm:$0x3]
        %v923 = vunpack.c.l.b16 %v550
        %v924 = vunpack.c.l.b16 %v560
        %v925 = vunpack.c.l.b16 %v574
        %v926 = vunpack.c.l.b16 %v584
        %v927 = vunpack.c.l.b16 %v598
        %v928 = vunpack.c.l.b16 %v608
        %v929 = vunpack.c.l.b16 %v622
        %v930 = vunpack.c.l.b16 %v632
        %v931 = vunpack.c.l.b16 %v646
        %v932 = vunpack.c.l.b16 %v656
        %v933 = vunpack.c.l.b16 %v670
        %v934 = vunpack.c.l.b16 %v680
        %v935 = vunpack.c.l.b16 %v694
        %v936 = vunpack.c.l.b16 %v704
        %v937 = vunpack.c.l.b16 %v718
        %v938 = vunpack.c.l.b16 %v728
        %v939 = vunpack.c.l.b16 %v742
        %v940 = vunpack.c.l.b16 %v752
        %v941 = vunpack.c.l.b16 %v766
        %v942 = vunpack.c.l.b16 %v776
        %v943 = vunpack.c.l.b16 %v790
        %v944 = vunpack.c.l.b16 %v800
        %v945 = vunpack.c.l.b16 %v814
        %v946 = vunpack.c.l.b16 %v824
        %v947 = vunpack.c.l.b16 %v838
        %v948 = vunpack.c.l.b16 %v848
        %v949 = vunpack.c.l.b16 %v862
        %v950 = vunpack.c.l.b16 %v872
        %v951 = vunpack.c.l.b16 %v886
        %v952 = vunpack.c.l.b16 %v896
        %v953 = vunpack.c.l.b16 %v910
        %v954 = vunpack.c.l.b16 %v920
        %v955 = vpack.c.b16 %v924, %v923
        %v956 = vpack.c.b16 %v926, %v925
        %v957 = vpack.c.b16 %v928, %v927
        %v958 = vpack.c.b16 %v930, %v929
        %v959 = vpack.c.b16 %v932, %v931
        %v960 = vpack.c.b16 %v934, %v933
        %v961 = vpack.c.b16 %v936, %v935
        %v962 = vpack.c.b16 %v938, %v937
        %v963 = vpack.c.b16 %v940, %v939
        %v964 = vpack.c.b16 %v942, %v941
        %v965 = vpack.c.b16 %v944, %v943
        %v966 = vpack.c.b16 %v946, %v945
        %v967 = vpack.c.b16 %v948, %v947
        %v968 = vpack.c.b16 %v950, %v949
        %v969 = vpack.c.b16 %v952, %v951
        %v970 = vpack.c.b16 %v954, %v953
        %v972 = vsel %vm312, %v955, 0
        %v975 = vsel %vm312, %v956, 0
        %v978 = vsel %vm312, %v957, 0
        %v981 = vsel %vm312, %v958, 0
        %v984 = vsel %vm312, %v959, 0
        %v987 = vsel %vm312, %v960, 0
        %v990 = vsel %vm312, %v961, 0
        %v993 = vsel %vm312, %v962, 0
        %v996 = vsel %vm312, %v963, 0
        %v999 = vsel %vm312, %v964, 0
        %v1002 = vsel %vm312, %v965, 0
        %v1005 = vsel %vm312, %v966, 0
        %v1008 = vsel %vm312, %v967, 0
        %v1011 = vsel %vm312, %v968, 0
        %v1014 = vsel %vm312, %v969, 0
        %v1017 = vsel %vm312, %v970, 0
        %v1020 = vsel %vm361, %v922, 0
        %1022 = vmatpush.bf16.msra.mxu0 0
        %1023 = vmatpush.bf16.msra.mxu0 0
        %1024 = vmatpush.bf16.msra.mxu0 0
        %1025 = vmatpush.bf16.msra.mxu0 0
        %1026 = vmatpush.bf16.msra.mxu0 0
        %1027 = vmatpush.bf16.msra.mxu0 0
        %1028 = vmatpush.bf16.msra.mxu0 0
        %1029 = vmatpush.bf16.msra.mxu0 %v1020
        %1030 = vmatmul.bf16.gmra.mxu0 %v972
        %v1031 = vpop.f32.mrf.mxu0
        %v1032 = vadd.f32 0.0, %v1031
        %v1033 = vpop.f32.mrf.mxu0
        %v1034 = vadd.f32 0.0, %v1033
        %1035 = vmatmul.bf16.gmra.mxu0 %v975
        %v1036 = vpop.f32.mrf.mxu0
        %v1037 = vadd.f32 0.0, %v1036
        %v1038 = vpop.f32.mrf.mxu0
        %v1039 = vadd.f32 0.0, %v1038
        %1040 = vmatmul.bf16.gmra.mxu0 %v978
        %v1041 = vpop.f32.mrf.mxu0
        %v1042 = vadd.f32 0.0, %v1041
        %v1043 = vpop.f32.mrf.mxu0
        %v1044 = vadd.f32 0.0, %v1043
        %1045 = vmatmul.bf16.gmra.mxu0 %v981
        %v1046 = vpop.f32.mrf.mxu0
        %v1047 = vadd.f32 0.0, %v1046
        %v1048 = vpop.f32.mrf.mxu0
        %v1049 = vadd.f32 0.0, %v1048
        %1050 = vmatmul.bf16.gmra.mxu0 %v984
        %v1051 = vpop.f32.mrf.mxu0
        %v1052 = vadd.f32 0.0, %v1051
        %v1053 = vpop.f32.mrf.mxu0
        %v1054 = vadd.f32 0.0, %v1053
        %1055 = vmatmul.bf16.gmra.mxu0 %v987
        %v1056 = vpop.f32.mrf.mxu0
        %v1057 = vadd.f32 0.0, %v1056
        %v1058 = vpop.f32.mrf.mxu0
        %v1059 = vadd.f32 0.0, %v1058
        %1060 = vmatmul.bf16.gmra.mxu0 %v990
        %v1061 = vpop.f32.mrf.mxu0
        %v1062 = vadd.f32 0.0, %v1061
        %v1063 = vpop.f32.mrf.mxu0
        %v1064 = vadd.f32 0.0, %v1063
        %1065 = vmatmul.bf16.gmra.mxu0 %v993
        %v1066 = vpop.f32.mrf.mxu0
        %v1067 = vadd.f32 0.0, %v1066
        %v1068 = vpop.f32.mrf.mxu0
        %v1069 = vadd.f32 0.0, %v1068
        %1070 = vmatmul.bf16.gmra.mxu0 %v996
        %v1071 = vpop.f32.mrf.mxu0
        %v1072 = vadd.f32 0.0, %v1071
        %v1073 = vpop.f32.mrf.mxu0
        %v1074 = vadd.f32 0.0, %v1073
        %1075 = vmatmul.bf16.gmra.mxu0 %v999
        %v1076 = vpop.f32.mrf.mxu0
        %v1077 = vadd.f32 0.0, %v1076
        %v1078 = vpop.f32.mrf.mxu0
        %v1079 = vadd.f32 0.0, %v1078
        %1080 = vmatmul.bf16.gmra.mxu0 %v1002
        %v1081 = vpop.f32.mrf.mxu0
        %v1082 = vadd.f32 0.0, %v1081
        %v1083 = vpop.f32.mrf.mxu0
        %v1084 = vadd.f32 0.0, %v1083
        %1085 = vmatmul.bf16.gmra.mxu0 %v1005
        %v1086 = vpop.f32.mrf.mxu0
        %v1087 = vadd.f32 0.0, %v1086
        %v1088 = vpop.f32.mrf.mxu0
        %v1089 = vadd.f32 0.0, %v1088
        %1090 = vmatmul.bf16.gmra.mxu0 %v1008
        %v1091 = vpop.f32.mrf.mxu0
        %v1092 = vadd.f32 0.0, %v1091
        %v1093 = vpop.f32.mrf.mxu0
        %v1094 = vadd.f32 0.0, %v1093
        %1095 = vmatmul.bf16.gmra.mxu0 %v1011
        %v1096 = vpop.f32.mrf.mxu0
        %v1097 = vadd.f32 0.0, %v1096
        %v1098 = vpop.f32.mrf.mxu0
        %v1099 = vadd.f32 0.0, %v1098
        %1100 = vmatmul.bf16.gmra.mxu0 %v1014
        %v1101 = vpop.f32.mrf.mxu0
        %v1102 = vadd.f32 0.0, %v1101
        %v1103 = vpop.f32.mrf.mxu0
        %v1104 = vadd.f32 0.0, %v1103
        %1105 = vmatmul.bf16.gmra.mxu0 %v1017
        %v1106 = vpop.f32.mrf.mxu0
        %v1107 = vadd.f32 0.0, %v1106
        %v1108 = vpop.f32.mrf.mxu0
        %v1109 = vadd.f32 0.0, %v1108
        %1110 = vdwg.mxu0
        %v1111 = vld [vmem:[#allocation2] sm:$0xff]
        %v1112 = vld [vmem:[#allocation2 + $0x8] sm:$0xff]
        %v1113 = vld [vmem:[#allocation2 + $0x10] sm:$0xff]
        %v1114 = vld [vmem:[#allocation2 + $0x18] sm:$0xff]
        %v1115 = vld [vmem:[#allocation2 + $0x20] sm:$0xff]
        %v1116 = vld [vmem:[#allocation2 + $0x28] sm:$0xff]
        %v1117 = vld [vmem:[#allocation2 + $0x30] sm:$0xff]
        %v1118 = vld [vmem:[#allocation2 + $0x38] sm:$0xff]
        %v1119 = vld [vmem:[#allocation2 + $0x40] sm:$0xff]
        %v1120 = vld [vmem:[#allocation2 + $0x48] sm:$0xff]
        %v1121 = vld [vmem:[#allocation2 + $0x50] sm:$0xff]
        %v1122 = vld [vmem:[#allocation2 + $0x58] sm:$0xff]
        %v1123 = vld [vmem:[#allocation2 + $0x60] sm:$0xff]
        %v1124 = vld [vmem:[#allocation2 + $0x68] sm:$0xff]
        %v1125 = vld [vmem:[#allocation2 + $0x70] sm:$0xff]
        %v1126 = vld [vmem:[#allocation2 + $0x78] sm:$0xff]
        %v1127 = vld [vmem:[#allocation2 + $0x80] sm:$0xff]
        %v1128 = vld [vmem:[#allocation2 + $0x88] sm:$0xff]
        %v1129 = vld [vmem:[#allocation2 + $0x90] sm:$0xff]
        %v1130 = vld [vmem:[#allocation2 + $0x98] sm:$0xff]
        %v1131 = vld [vmem:[#allocation2 + $0xa0] sm:$0xff]
        %v1132 = vld [vmem:[#allocation2 + $0xa8] sm:$0xff]
        %v1133 = vld [vmem:[#allocation2 + $0xb0] sm:$0xff]
        %v1134 = vld [vmem:[#allocation2 + $0xb8] sm:$0xff]
        %v1135 = vld [vmem:[#allocation2 + $0xc0] sm:$0xff]
        %v1136 = vld [vmem:[#allocation2 + $0xc8] sm:$0xff]
        %v1137 = vld [vmem:[#allocation2 + $0xd0] sm:$0xff]
        %v1138 = vld [vmem:[#allocation2 + $0xd8] sm:$0xff]
        %v1139 = vld [vmem:[#allocation2 + $0xe0] sm:$0xff]
        %v1140 = vld [vmem:[#allocation2 + $0xe8] sm:$0xff]
        %v1141 = vld [vmem:[#allocation2 + $0xf0] sm:$0xff]
        %v1142 = vld [vmem:[#allocation2 + $0xf8] sm:$0xff]
        %v1143 = vadd.f32 %v1111, %v1032
        %v1144 = vadd.f32 %v1112, %v1034
        %v1145 = vadd.f32 %v1113, %v1037
        %v1146 = vadd.f32 %v1114, %v1039
        %v1147 = vadd.f32 %v1115, %v1042
        %v1148 = vadd.f32 %v1116, %v1044
        %v1149 = vadd.f32 %v1117, %v1047
        %v1150 = vadd.f32 %v1118, %v1049
        %v1151 = vadd.f32 %v1119, %v1052
        %v1152 = vadd.f32 %v1120, %v1054
        %v1153 = vadd.f32 %v1121, %v1057
        %v1154 = vadd.f32 %v1122, %v1059
        %v1155 = vadd.f32 %v1123, %v1062
        %v1156 = vadd.f32 %v1124, %v1064
        %v1157 = vadd.f32 %v1125, %v1067
        %v1158 = vadd.f32 %v1126, %v1069
        %v1159 = vadd.f32 %v1127, %v1072
        %v1160 = vadd.f32 %v1128, %v1074
        %v1161 = vadd.f32 %v1129, %v1077
        %v1162 = vadd.f32 %v1130, %v1079
        %v1163 = vadd.f32 %v1131, %v1082
        %v1164 = vadd.f32 %v1132, %v1084
        %v1165 = vadd.f32 %v1133, %v1087
        %v1166 = vadd.f32 %v1134, %v1089
        %v1167 = vadd.f32 %v1135, %v1092
        %v1168 = vadd.f32 %v1136, %v1094
        %v1169 = vadd.f32 %v1137, %v1097
        %v1170 = vadd.f32 %v1138, %v1099
        %v1171 = vadd.f32 %v1139, %v1102
        %v1172 = vadd.f32 %v1140, %v1104
        %v1173 = vadd.f32 %v1141, %v1107
        %v1174 = vadd.f32 %v1142, %v1109
        %1175 = vst [vmem:[#allocation2] sm:$0xff] %v1143
        %1176 = vst [vmem:[#allocation2 + $0x8] sm:$0xff] %v1144
        %1177 = vst [vmem:[#allocation2 + $0x10] sm:$0xff] %v1145
        %1178 = vst [vmem:[#allocation2 + $0x18] sm:$0xff] %v1146
        %1179 = vst [vmem:[#allocation2 + $0x20] sm:$0xff] %v1147
        %1180 = vst [vmem:[#allocation2 + $0x28] sm:$0xff] %v1148
        %1181 = vst [vmem:[#allocation2 + $0x30] sm:$0xff] %v1149
        %1182 = vst [vmem:[#allocation2 + $0x38] sm:$0xff] %v1150
        %1183 = vst [vmem:[#allocation2 + $0x40] sm:$0xff] %v1151
        %1184 = vst [vmem:[#allocation2 + $0x48] sm:$0xff] %v1152
        %1185 = vst [vmem:[#allocation2 + $0x50] sm:$0xff] %v1153
        %1186 = vst [vmem:[#allocation2 + $0x58] sm:$0xff] %v1154
        %1187 = vst [vmem:[#allocation2 + $0x60] sm:$0xff] %v1155
        %1188 = vst [vmem:[#allocation2 + $0x68] sm:$0xff] %v1156
        %1189 = vst [vmem:[#allocation2 + $0x70] sm:$0xff] %v1157
        %1190 = vst [vmem:[#allocation2 + $0x78] sm:$0xff] %v1158
        %1191 = vst [vmem:[#allocation2 + $0x80] sm:$0xff] %v1159
        %1192 = vst [vmem:[#allocation2 + $0x88] sm:$0xff] %v1160
        %1193 = vst [vmem:[#allocation2 + $0x90] sm:$0xff] %v1161
        %1194 = vst [vmem:[#allocation2 + $0x98] sm:$0xff] %v1162
        %1195 = vst [vmem:[#allocation2 + $0xa0] sm:$0xff] %v1163
        %1196 = vst [vmem:[#allocation2 + $0xa8] sm:$0xff] %v1164
        %1197 = vst [vmem:[#allocation2 + $0xb0] sm:$0xff] %v1165
        %1198 = vst [vmem:[#allocation2 + $0xb8] sm:$0xff] %v1166
        %1199 = vst [vmem:[#allocation2 + $0xc0] sm:$0xff] %v1167
        %1200 = vst [vmem:[#allocation2 + $0xc8] sm:$0xff] %v1168
        %1201 = vst [vmem:[#allocation2 + $0xd0] sm:$0xff] %v1169
        %1202 = vst [vmem:[#allocation2 + $0xd8] sm:$0xff] %v1170
        %1203 = vst [vmem:[#allocation2 + $0xe0] sm:$0xff] %v1171
        %1204 = vst [vmem:[#allocation2 + $0xe8] sm:$0xff] %v1172
        %1205 = vst [vmem:[#allocation2 + $0xf0] sm:$0xff] %v1173
        %1206 = vst [vmem:[#allocation2 + $0xf8] sm:$0xff] %v1174
        %v1207 = vld [vmem:[%s196] sm:$0xe]
        %v1208 = vld [vmem:[%s196 + $0x4] sm:$0xf]
        %v1209 = vld [vmem:[%s196 + $0x8] sm:$0x1]
        %v1210 = vld [vmem:[%s196 + $0xc] sm:$0xe]
        %v1211 = vld [vmem:[%s196 + $0x10] sm:$0xf]
        %v1212 = vld [vmem:[%s196 + $0x14] sm:$0x1]
        %v1213 = vld [vmem:[%s196 + $0x18] sm:$0xe]
        %v1214 = vld [vmem:[%s196 + $0x1c] sm:$0xf]
        %v1215 = vld [vmem:[%s196 + $0x20] sm:$0x1]
        %v1216 = vld [vmem:[%s196 + $0x24] sm:$0xe]
        %v1217 = vld [vmem:[%s196 + $0x28] sm:$0xf]
        %v1218 = vld [vmem:[%s196 + $0x2c] sm:$0x1]
        %v1219 = vld [vmem:[%s196 + $0x30] sm:$0xe]
        %v1220 = vld [vmem:[%s196 + $0x34] sm:$0xf]
        %v1221 = vld [vmem:[%s196 + $0x38] sm:$0x1]
        %v1222 = vld [vmem:[%s196 + $0x3c] sm:$0xe]
        %v1223 = vld [vmem:[%s196 + $0x40] sm:$0xf]
        %v1224 = vld [vmem:[%s196 + $0x44] sm:$0x1]
        %v1225 = vld [vmem:[%s196 + $0x48] sm:$0xe]
        %v1226 = vld [vmem:[%s196 + $0x4c] sm:$0xf]
        %v1227 = vld [vmem:[%s196 + $0x50] sm:$0x1]
        %v1228 = vld [vmem:[%s196 + $0x54] sm:$0xe]
        %v1229 = vld [vmem:[%s196 + $0x58] sm:$0xf]
        %v1230 = vld [vmem:[%s196 + $0x5c] sm:$0x1]
        %v1231 = vld [vmem:[%s196 + $0x60] sm:$0xe]
        %v1232 = vld [vmem:[%s196 + $0x64] sm:$0xf]
        %v1233 = vld [vmem:[%s196 + $0x68] sm:$0x1]
        %v1234 = vld [vmem:[%s196 + $0x6c] sm:$0xe]
        %v1235 = vld [vmem:[%s196 + $0x70] sm:$0xf]
        %v1236 = vld [vmem:[%s196 + $0x74] sm:$0x1]
        %v1237 = vld [vmem:[%s196 + $0x78] sm:$0xe]
        %v1238 = vld [vmem:[%s196 + $0x7c] sm:$0xf]
        %v1239 = vld [vmem:[%s196 + $0x80] sm:$0x1]
        %v1240 = vld [vmem:[%s196 + $0x84] sm:$0xe]
        %v1241 = vld [vmem:[%s196 + $0x88] sm:$0xf]
        %v1242 = vld [vmem:[%s196 + $0x8c] sm:$0x1]
        %v1243 = vld [vmem:[%s196 + $0x90] sm:$0xe]
        %v1244 = vld [vmem:[%s196 + $0x94] sm:$0xf]
        %v1245 = vld [vmem:[%s196 + $0x98] sm:$0x1]
        %v1246 = vld [vmem:[%s196 + $0x9c] sm:$0xe]
        %v1247 = vld [vmem:[%s196 + $0xa0] sm:$0xf]
        %v1248 = vld [vmem:[%s196 + $0xa4] sm:$0x1]
        %v1249 = vld [vmem:[%s196 + $0xa8] sm:$0xe]
        %v1250 = vld [vmem:[%s196 + $0xac] sm:$0xf]
        %v1251 = vld [vmem:[%s196 + $0xb0] sm:$0x1]
        %v1252 = vld [vmem:[%s196 + $0xb4] sm:$0xe]
        %v1253 = vld [vmem:[%s196 + $0xb8] sm:$0xf]
        %v1254 = vld [vmem:[%s196 + $0xbc] sm:$0x1]
        %vm1303 = vcmask 1042432
        %vm1304 = vcmask 1046532
        %vm1305 = vmor %vm1303, %vm1304
        %v1306 = vrot.slane %v1207, 5
        %v1307 = vrot.slane %v1306, 4
        %v1308 = vrot.slane %v1208, 5
        %v1309 = vsel %vm1305, %v1307, %v1308
        %v1310 = vrot.slane %v1308, 4
        %v1311 = vrot.slane %v1209, 5
        %v1312 = vsel %vm1305, %v1310, %v1311
        %v1313 = vrot.slane %v1210, 5
        %v1314 = vrot.slane %v1313, 4
        %v1315 = vrot.slane %v1211, 5
        %v1316 = vsel %vm1305, %v1314, %v1315
        %v1317 = vrot.slane %v1315, 4
        %v1318 = vrot.slane %v1212, 5
        %v1319 = vsel %vm1305, %v1317, %v1318
        %v1320 = vrot.slane %v1213, 5
        %v1321 = vrot.slane %v1320, 4
        %v1322 = vrot.slane %v1214, 5
        %v1323 = vsel %vm1305, %v1321, %v1322
        %v1324 = vrot.slane %v1322, 4
        %v1325 = vrot.slane %v1215, 5
        %v1326 = vsel %vm1305, %v1324, %v1325
        %v1327 = vrot.slane %v1216, 5
        %v1328 = vrot.slane %v1327, 4
        %v1329 = vrot.slane %v1217, 5
        %v1330 = vsel %vm1305, %v1328, %v1329
        %v1331 = vrot.slane %v1329, 4
        %v1332 = vrot.slane %v1218, 5
        %v1333 = vsel %vm1305, %v1331, %v1332
        %v1334 = vrot.slane %v1219, 5
        %v1335 = vrot.slane %v1334, 4
        %v1336 = vrot.slane %v1220, 5
        %v1337 = vsel %vm1305, %v1335, %v1336
        %v1338 = vrot.slane %v1336, 4
        %v1339 = vrot.slane %v1221, 5
        %v1340 = vsel %vm1305, %v1338, %v1339
        %v1341 = vrot.slane %v1222, 5
        %v1342 = vrot.slane %v1341, 4
        %v1343 = vrot.slane %v1223, 5
        %v1344 = vsel %vm1305, %v1342, %v1343
        %v1345 = vrot.slane %v1343, 4
        %v1346 = vrot.slane %v1224, 5
        %v1347 = vsel %vm1305, %v1345, %v1346
        %v1348 = vrot.slane %v1225, 5
        %v1349 = vrot.slane %v1348, 4
        %v1350 = vrot.slane %v1226, 5
        %v1351 = vsel %vm1305, %v1349, %v1350
        %v1352 = vrot.slane %v1350, 4
        %v1353 = vrot.slane %v1227, 5
        %v1354 = vsel %vm1305, %v1352, %v1353
        %v1355 = vrot.slane %v1228, 5
        %v1356 = vrot.slane %v1355, 4
        %v1357 = vrot.slane %v1229, 5
        %v1358 = vsel %vm1305, %v1356, %v1357
        %v1359 = vrot.slane %v1357, 4
        %v1360 = vrot.slane %v1230, 5
        %v1361 = vsel %vm1305, %v1359, %v1360
        %v1362 = vrot.slane %v1231, 5
        %v1363 = vrot.slane %v1362, 4
        %v1364 = vrot.slane %v1232, 5
        %v1365 = vsel %vm1305, %v1363, %v1364
        %v1366 = vrot.slane %v1364, 4
        %v1367 = vrot.slane %v1233, 5
        %v1368 = vsel %vm1305, %v1366, %v1367
        %v1369 = vrot.slane %v1234, 5
        %v1370 = vrot.slane %v1369, 4
        %v1371 = vrot.slane %v1235, 5
        %v1372 = vsel %vm1305, %v1370, %v1371
        %v1373 = vrot.slane %v1371, 4
        %v1374 = vrot.slane %v1236, 5
        %v1375 = vsel %vm1305, %v1373, %v1374
        %v1376 = vrot.slane %v1237, 5
        %v1377 = vrot.slane %v1376, 4
        %v1378 = vrot.slane %v1238, 5
        %v1379 = vsel %vm1305, %v1377, %v1378
        %v1380 = vrot.slane %v1378, 4
        %v1381 = vrot.slane %v1239, 5
        %v1382 = vsel %vm1305, %v1380, %v1381
        %v1383 = vrot.slane %v1240, 5
        %v1384 = vrot.slane %v1383, 4
        %v1385 = vrot.slane %v1241, 5
        %v1386 = vsel %vm1305, %v1384, %v1385
        %v1387 = vrot.slane %v1385, 4
        %v1388 = vrot.slane %v1242, 5
        %v1389 = vsel %vm1305, %v1387, %v1388
        %v1390 = vrot.slane %v1243, 5
        %v1391 = vrot.slane %v1390, 4
        %v1392 = vrot.slane %v1244, 5
        %v1393 = vsel %vm1305, %v1391, %v1392
        %v1394 = vrot.slane %v1392, 4
        %v1395 = vrot.slane %v1245, 5
        %v1396 = vsel %vm1305, %v1394, %v1395
        %v1397 = vrot.slane %v1246, 5
        %v1398 = vrot.slane %v1397, 4
        %v1399 = vrot.slane %v1247, 5
        %v1400 = vsel %vm1305, %v1398, %v1399
        %v1401 = vrot.slane %v1399, 4
        %v1402 = vrot.slane %v1248, 5
        %v1403 = vsel %vm1305, %v1401, %v1402
        %v1404 = vrot.slane %v1249, 5
        %v1405 = vrot.slane %v1404, 4
        %v1406 = vrot.slane %v1250, 5
        %v1407 = vsel %vm1305, %v1405, %v1406
        %v1408 = vrot.slane %v1406, 4
        %v1409 = vrot.slane %v1251, 5
        %v1410 = vsel %vm1305, %v1408, %v1409
        %v1411 = vrot.slane %v1252, 5
        %v1412 = vrot.slane %v1411, 4
        %v1413 = vrot.slane %v1253, 5
        %v1414 = vsel %vm1305, %v1412, %v1413
        %v1415 = vrot.slane %v1413, 4
        %v1416 = vrot.slane %v1254, 5
        %v1417 = vsel %vm1305, %v1415, %v1416
        %s1418 = scalar_lea.vmem %s1, 4
        %v1419 = vld [vmem:[%s1418] sm:$0x3]
        %v1420 = vunpack.c.l.b16 %v1309
        %v1421 = vunpack.c.l.b16 %v1312
        %v1422 = vunpack.c.l.b16 %v1316
        %v1423 = vunpack.c.l.b16 %v1319
        %v1424 = vunpack.c.l.b16 %v1323
        %v1425 = vunpack.c.l.b16 %v1326
        %v1426 = vunpack.c.l.b16 %v1330
        %v1427 = vunpack.c.l.b16 %v1333
        %v1428 = vunpack.c.l.b16 %v1337
        %v1429 = vunpack.c.l.b16 %v1340
        %v1430 = vunpack.c.l.b16 %v1344
        %v1431 = vunpack.c.l.b16 %v1347
        %v1432 = vunpack.c.l.b16 %v1351
        %v1433 = vunpack.c.l.b16 %v1354
        %v1434 = vunpack.c.l.b16 %v1358
        %v1435 = vunpack.c.l.b16 %v1361
        %v1436 = vunpack.c.l.b16 %v1365
        %v1437 = vunpack.c.l.b16 %v1368
        %v1438 = vunpack.c.l.b16 %v1372
        %v1439 = vunpack.c.l.b16 %v1375
        %v1440 = vunpack.c.l.b16 %v1379
        %v1441 = vunpack.c.l.b16 %v1382
        %v1442 = vunpack.c.l.b16 %v1386
        %v1443 = vunpack.c.l.b16 %v1389
        %v1444 = vunpack.c.l.b16 %v1393
        %v1445 = vunpack.c.l.b16 %v1396
        %v1446 = vunpack.c.l.b16 %v1400
        %v1447 = vunpack.c.l.b16 %v1403
        %v1448 = vunpack.c.l.b16 %v1407
        %v1449 = vunpack.c.l.b16 %v1410
        %v1450 = vunpack.c.l.b16 %v1414
        %v1451 = vunpack.c.l.b16 %v1417
        %v1452 = vpack.c.b16 %v1421, %v1420
        %v1453 = vpack.c.b16 %v1423, %v1422
        %v1454 = vpack.c.b16 %v1425, %v1424
        %v1455 = vpack.c.b16 %v1427, %v1426
        %v1456 = vpack.c.b16 %v1429, %v1428
        %v1457 = vpack.c.b16 %v1431, %v1430
        %v1458 = vpack.c.b16 %v1433, %v1432
        %v1459 = vpack.c.b16 %v1435, %v1434
        %v1460 = vpack.c.b16 %v1437, %v1436
        %v1461 = vpack.c.b16 %v1439, %v1438
        %v1462 = vpack.c.b16 %v1441, %v1440
        %v1463 = vpack.c.b16 %v1443, %v1442
        %v1464 = vpack.c.b16 %v1445, %v1444
        %v1465 = vpack.c.b16 %v1447, %v1446
        %v1466 = vpack.c.b16 %v1449, %v1448
        %v1467 = vpack.c.b16 %v1451, %v1450
        %v1469 = vsel %vm312, %v1452, 0
        %v1472 = vsel %vm312, %v1453, 0
        %v1475 = vsel %vm312, %v1454, 0
        %v1478 = vsel %vm312, %v1455, 0
        %v1481 = vsel %vm312, %v1456, 0
        %v1484 = vsel %vm312, %v1457, 0
        %v1487 = vsel %vm312, %v1458, 0
        %v1490 = vsel %vm312, %v1459, 0
        %v1493 = vsel %vm312, %v1460, 0
        %v1496 = vsel %vm312, %v1461, 0
        %v1499 = vsel %vm312, %v1462, 0
        %v1502 = vsel %vm312, %v1463, 0
        %v1505 = vsel %vm312, %v1464, 0
        %v1508 = vsel %vm312, %v1465, 0
        %v1511 = vsel %vm312, %v1466, 0
        %v1514 = vsel %vm312, %v1467, 0
        %v1517 = vsel %vm361, %v1419, 0
        %1519 = vmatpush.bf16.msra.mxu0 0
        %1520 = vmatpush.bf16.msra.mxu0 0
        %1521 = vmatpush.bf16.msra.mxu0 0
        %1522 = vmatpush.bf16.msra.mxu0 0
        %1523 = vmatpush.bf16.msra.mxu0 0
        %1524 = vmatpush.bf16.msra.mxu0 0
        %1525 = vmatpush.bf16.msra.mxu0 0
        %1526 = vmatpush.bf16.msra.mxu0 %v1517
        %1527 = vmatmul.bf16.gmra.mxu0 %v1469
        %v1528 = vpop.f32.mrf.mxu0
        %v1529 = vadd.f32 0.0, %v1528
        %v1530 = vpop.f32.mrf.mxu0
        %v1531 = vadd.f32 0.0, %v1530
        %1532 = vmatmul.bf16.gmra.mxu0 %v1472
        %v1533 = vpop.f32.mrf.mxu0
        %v1534 = vadd.f32 0.0, %v1533
        %v1535 = vpop.f32.mrf.mxu0
        %v1536 = vadd.f32 0.0, %v1535
        %1537 = vmatmul.bf16.gmra.mxu0 %v1475
        %v1538 = vpop.f32.mrf.mxu0
        %v1539 = vadd.f32 0.0, %v1538
        %v1540 = vpop.f32.mrf.mxu0
        %v1541 = vadd.f32 0.0, %v1540
        %1542 = vmatmul.bf16.gmra.mxu0 %v1478
        %v1543 = vpop.f32.mrf.mxu0
        %v1544 = vadd.f32 0.0, %v1543
        %v1545 = vpop.f32.mrf.mxu0
        %v1546 = vadd.f32 0.0, %v1545
        %1547 = vmatmul.bf16.gmra.mxu0 %v1481
        %v1548 = vpop.f32.mrf.mxu0
        %v1549 = vadd.f32 0.0, %v1548
        %v1550 = vpop.f32.mrf.mxu0
        %v1551 = vadd.f32 0.0, %v1550
        %1552 = vmatmul.bf16.gmra.mxu0 %v1484
        %v1553 = vpop.f32.mrf.mxu0
        %v1554 = vadd.f32 0.0, %v1553
        %v1555 = vpop.f32.mrf.mxu0
        %v1556 = vadd.f32 0.0, %v1555
        %1557 = vmatmul.bf16.gmra.mxu0 %v1487
        %v1558 = vpop.f32.mrf.mxu0
        %v1559 = vadd.f32 0.0, %v1558
        %v1560 = vpop.f32.mrf.mxu0
        %v1561 = vadd.f32 0.0, %v1560
        %1562 = vmatmul.bf16.gmra.mxu0 %v1490
        %v1563 = vpop.f32.mrf.mxu0
        %v1564 = vadd.f32 0.0, %v1563
        %v1565 = vpop.f32.mrf.mxu0
        %v1566 = vadd.f32 0.0, %v1565
        %1567 = vmatmul.bf16.gmra.mxu0 %v1493
        %v1568 = vpop.f32.mrf.mxu0
        %v1569 = vadd.f32 0.0, %v1568
        %v1570 = vpop.f32.mrf.mxu0
        %v1571 = vadd.f32 0.0, %v1570
        %1572 = vmatmul.bf16.gmra.mxu0 %v1496
        %v1573 = vpop.f32.mrf.mxu0
        %v1574 = vadd.f32 0.0, %v1573
        %v1575 = vpop.f32.mrf.mxu0
        %v1576 = vadd.f32 0.0, %v1575
        %1577 = vmatmul.bf16.gmra.mxu0 %v1499
        %v1578 = vpop.f32.mrf.mxu0
        %v1579 = vadd.f32 0.0, %v1578
        %v1580 = vpop.f32.mrf.mxu0
        %v1581 = vadd.f32 0.0, %v1580
        %1582 = vmatmul.bf16.gmra.mxu0 %v1502
        %v1583 = vpop.f32.mrf.mxu0
        %v1584 = vadd.f32 0.0, %v1583
        %v1585 = vpop.f32.mrf.mxu0
        %v1586 = vadd.f32 0.0, %v1585
        %1587 = vmatmul.bf16.gmra.mxu0 %v1505
        %v1588 = vpop.f32.mrf.mxu0
        %v1589 = vadd.f32 0.0, %v1588
        %v1590 = vpop.f32.mrf.mxu0
        %v1591 = vadd.f32 0.0, %v1590
        %1592 = vmatmul.bf16.gmra.mxu0 %v1508
        %v1593 = vpop.f32.mrf.mxu0
        %v1594 = vadd.f32 0.0, %v1593
        %v1595 = vpop.f32.mrf.mxu0
        %v1596 = vadd.f32 0.0, %v1595
        %1597 = vmatmul.bf16.gmra.mxu0 %v1511
        %v1598 = vpop.f32.mrf.mxu0
        %v1599 = vadd.f32 0.0, %v1598
        %v1600 = vpop.f32.mrf.mxu0
        %v1601 = vadd.f32 0.0, %v1600
        %1602 = vmatmul.bf16.gmra.mxu0 %v1514
        %v1603 = vpop.f32.mrf.mxu0
        %v1604 = vadd.f32 0.0, %v1603
        %v1605 = vpop.f32.mrf.mxu0
        %v1606 = vadd.f32 0.0, %v1605
        %1607 = vdwg.mxu0
        %v1608 = vld [vmem:[#allocation2] sm:$0xff]
        %v1609 = vld [vmem:[#allocation2 + $0x8] sm:$0xff]
        %v1610 = vld [vmem:[#allocation2 + $0x10] sm:$0xff]
        %v1611 = vld [vmem:[#allocation2 + $0x18] sm:$0xff]
        %v1612 = vld [vmem:[#allocation2 + $0x20] sm:$0xff]
        %v1613 = vld [vmem:[#allocation2 + $0x28] sm:$0xff]
        %v1614 = vld [vmem:[#allocation2 + $0x30] sm:$0xff]
        %v1615 = vld [vmem:[#allocation2 + $0x38] sm:$0xff]
        %v1616 = vld [vmem:[#allocation2 + $0x40] sm:$0xff]
        %v1617 = vld [vmem:[#allocation2 + $0x48] sm:$0xff]
        %v1618 = vld [vmem:[#allocation2 + $0x50] sm:$0xff]
        %v1619 = vld [vmem:[#allocation2 + $0x58] sm:$0xff]
        %v1620 = vld [vmem:[#allocation2 + $0x60] sm:$0xff]
        %v1621 = vld [vmem:[#allocation2 + $0x68] sm:$0xff]
        %v1622 = vld [vmem:[#allocation2 + $0x70] sm:$0xff]
        %v1623 = vld [vmem:[#allocation2 + $0x78] sm:$0xff]
        %v1624 = vld [vmem:[#allocation2 + $0x80] sm:$0xff]
        %v1625 = vld [vmem:[#allocation2 + $0x88] sm:$0xff]
        %v1626 = vld [vmem:[#allocation2 + $0x90] sm:$0xff]
        %v1627 = vld [vmem:[#allocation2 + $0x98] sm:$0xff]
        %v1628 = vld [vmem:[#allocation2 + $0xa0] sm:$0xff]
        %v1629 = vld [vmem:[#allocation2 + $0xa8] sm:$0xff]
        %v1630 = vld [vmem:[#allocation2 + $0xb0] sm:$0xff]
        %v1631 = vld [vmem:[#allocation2 + $0xb8] sm:$0xff]
        %v1632 = vld [vmem:[#allocation2 + $0xc0] sm:$0xff]
        %v1633 = vld [vmem:[#allocation2 + $0xc8] sm:$0xff]
        %v1634 = vld [vmem:[#allocation2 + $0xd0] sm:$0xff]
        %v1635 = vld [vmem:[#allocation2 + $0xd8] sm:$0xff]
        %v1636 = vld [vmem:[#allocation2 + $0xe0] sm:$0xff]
        %v1637 = vld [vmem:[#allocation2 + $0xe8] sm:$0xff]
        %v1638 = vld [vmem:[#allocation2 + $0xf0] sm:$0xff]
        %v1639 = vld [vmem:[#allocation2 + $0xf8] sm:$0xff]
        %v1640 = vadd.f32 %v1608, %v1529
        %v1641 = vadd.f32 %v1609, %v1531
        %v1642 = vadd.f32 %v1610, %v1534
        %v1643 = vadd.f32 %v1611, %v1536
        %v1644 = vadd.f32 %v1612, %v1539
        %v1645 = vadd.f32 %v1613, %v1541
        %v1646 = vadd.f32 %v1614, %v1544
        %v1647 = vadd.f32 %v1615, %v1546
        %v1648 = vadd.f32 %v1616, %v1549
        %v1649 = vadd.f32 %v1617, %v1551
        %v1650 = vadd.f32 %v1618, %v1554
        %v1651 = vadd.f32 %v1619, %v1556
        %v1652 = vadd.f32 %v1620, %v1559
        %v1653 = vadd.f32 %v1621, %v1561
        %v1654 = vadd.f32 %v1622, %v1564
        %v1655 = vadd.f32 %v1623, %v1566
        %v1656 = vadd.f32 %v1624, %v1569
        %v1657 = vadd.f32 %v1625, %v1571
        %v1658 = vadd.f32 %v1626, %v1574
        %v1659 = vadd.f32 %v1627, %v1576
        %v1660 = vadd.f32 %v1628, %v1579
        %v1661 = vadd.f32 %v1629, %v1581
        %v1662 = vadd.f32 %v1630, %v1584
        %v1663 = vadd.f32 %v1631, %v1586
        %v1664 = vadd.f32 %v1632, %v1589
        %v1665 = vadd.f32 %v1633, %v1591
        %v1666 = vadd.f32 %v1634, %v1594
        %v1667 = vadd.f32 %v1635, %v1596
        %v1668 = vadd.f32 %v1636, %v1599
        %v1669 = vadd.f32 %v1637, %v1601
        %v1670 = vadd.f32 %v1638, %v1604
        %v1671 = vadd.f32 %v1639, %v1606
        %1672 = vst [vmem:[#allocation2] sm:$0xff] %v1640
        %1673 = vst [vmem:[#allocation2 + $0x8] sm:$0xff] %v1641
        %1674 = vst [vmem:[#allocation2 + $0x10] sm:$0xff] %v1642
        %1675 = vst [vmem:[#allocation2 + $0x18] sm:$0xff] %v1643
        %1676 = vst [vmem:[#allocation2 + $0x20] sm:$0xff] %v1644
        %1677 = vst [vmem:[#allocation2 + $0x28] sm:$0xff] %v1645
        %1678 = vst [vmem:[#allocation2 + $0x30] sm:$0xff] %v1646
        %1679 = vst [vmem:[#allocation2 + $0x38] sm:$0xff] %v1647
        %1680 = vst [vmem:[#allocation2 + $0x40] sm:$0xff] %v1648
        %1681 = vst [vmem:[#allocation2 + $0x48] sm:$0xff] %v1649
        %1682 = vst [vmem:[#allocation2 + $0x50] sm:$0xff] %v1650
        %1683 = vst [vmem:[#allocation2 + $0x58] sm:$0xff] %v1651
        %1684 = vst [vmem:[#allocation2 + $0x60] sm:$0xff] %v1652
        %1685 = vst [vmem:[#allocation2 + $0x68] sm:$0xff] %v1653
        %1686 = vst [vmem:[#allocation2 + $0x70] sm:$0xff] %v1654
        %1687 = vst [vmem:[#allocation2 + $0x78] sm:$0xff] %v1655
        %1688 = vst [vmem:[#allocation2 + $0x80] sm:$0xff] %v1656
        %1689 = vst [vmem:[#allocation2 + $0x88] sm:$0xff] %v1657
        %1690 = vst [vmem:[#allocation2 + $0x90] sm:$0xff] %v1658
        %1691 = vst [vmem:[#allocation2 + $0x98] sm:$0xff] %v1659
        %1692 = vst [vmem:[#allocation2 + $0xa0] sm:$0xff] %v1660
        %1693 = vst [vmem:[#allocation2 + $0xa8] sm:$0xff] %v1661
        %1694 = vst [vmem:[#allocation2 + $0xb0] sm:$0xff] %v1662
        %1695 = vst [vmem:[#allocation2 + $0xb8] sm:$0xff] %v1663
        %1696 = vst [vmem:[#allocation2 + $0xc0] sm:$0xff] %v1664
        %1697 = vst [vmem:[#allocation2 + $0xc8] sm:$0xff] %v1665
        %1698 = vst [vmem:[#allocation2 + $0xd0] sm:$0xff] %v1666
        %1699 = vst [vmem:[#allocation2 + $0xd8] sm:$0xff] %v1667
        %1700 = vst [vmem:[#allocation2 + $0xe0] sm:$0xff] %v1668
        %1701 = vst [vmem:[#allocation2 + $0xe8] sm:$0xff] %v1669
        %1702 = vst [vmem:[#allocation2 + $0xf0] sm:$0xff] %v1670
        %1703 = vst [vmem:[#allocation2 + $0xf8] sm:$0xff] %v1671
        %s1704 = scalar_lea.vmem %s196, 12
        %v1705 = vld [vmem:[%s1704] sm:$0xf]
        %v1706 = vld [vmem:[%s1704 + $0x4] sm:$0xf]
        %v1707 = vld [vmem:[%s1704 + $0xc] sm:$0xf]
        %v1708 = vld [vmem:[%s1704 + $0x10] sm:$0xf]
        %v1709 = vld [vmem:[%s1704 + $0x18] sm:$0xf]
        %v1710 = vld [vmem:[%s1704 + $0x1c] sm:$0xf]
        %v1711 = vld [vmem:[%s1704 + $0x24] sm:$0xf]
        %v1712 = vld [vmem:[%s1704 + $0x28] sm:$0xf]
        %v1713 = vld [vmem:[%s1704 + $0x30] sm:$0xf]
        %v1714 = vld [vmem:[%s1704 + $0x34] sm:$0xf]
        %v1715 = vld [vmem:[%s1704 + $0x3c] sm:$0xf]
        %v1716 = vld [vmem:[%s1704 + $0x40] sm:$0xf]
        %v1717 = vld [vmem:[%s1704 + $0x48] sm:$0xf]
        %v1718 = vld [vmem:[%s1704 + $0x4c] sm:$0xf]
        %v1719 = vld [vmem:[%s1704 + $0x54] sm:$0xf]
        %v1720 = vld [vmem:[%s1704 + $0x58] sm:$0xf]
        %v1721 = vld [vmem:[%s1704 + $0x60] sm:$0xf]
        %v1722 = vld [vmem:[%s1704 + $0x64] sm:$0xf]
        %v1723 = vld [vmem:[%s1704 + $0x6c] sm:$0xf]
        %v1724 = vld [vmem:[%s1704 + $0x70] sm:$0xf]
        %v1725 = vld [vmem:[%s1704 + $0x78] sm:$0xf]
        %v1726 = vld [vmem:[%s1704 + $0x7c] sm:$0xf]
        %v1727 = vld [vmem:[%s1704 + $0x84] sm:$0xf]
        %v1728 = vld [vmem:[%s1704 + $0x88] sm:$0xf]
        %v1729 = vld [vmem:[%s1704 + $0x90] sm:$0xf]
        %v1730 = vld [vmem:[%s1704 + $0x94] sm:$0xf]
        %v1731 = vld [vmem:[%s1704 + $0x9c] sm:$0xf]
        %v1732 = vld [vmem:[%s1704 + $0xa0] sm:$0xf]
        %v1733 = vld [vmem:[%s1704 + $0xa8] sm:$0xf]
        %v1734 = vld [vmem:[%s1704 + $0xac] sm:$0xf]
        %v1735 = vld [vmem:[%s1704 + $0xb4] sm:$0xf]
        %v1736 = vld [vmem:[%s1704 + $0xb8] sm:$0xf]
        %s1737 = scalar_lea.vmem %s1, 6
        %v1738 = vld [vmem:[%s1737] sm:$0x3]
        %v1771 = vunpack.c.l.b16 %v1705
        %v1772 = vunpack.c.l.b16 %v1706
        %v1773 = vunpack.c.l.b16 %v1707
        %v1774 = vunpack.c.l.b16 %v1708
        %v1775 = vunpack.c.l.b16 %v1709
        %v1776 = vunpack.c.l.b16 %v1710
        %v1777 = vunpack.c.l.b16 %v1711
        %v1778 = vunpack.c.l.b16 %v1712
        %v1779 = vunpack.c.l.b16 %v1713
        %v1780 = vunpack.c.l.b16 %v1714
        %v1781 = vunpack.c.l.b16 %v1715
        %v1782 = vunpack.c.l.b16 %v1716
        %v1783 = vunpack.c.l.b16 %v1717
        %v1784 = vunpack.c.l.b16 %v1718
        %v1785 = vunpack.c.l.b16 %v1719
        %v1786 = vunpack.c.l.b16 %v1720
        %v1787 = vunpack.c.l.b16 %v1721
        %v1788 = vunpack.c.l.b16 %v1722
        %v1789 = vunpack.c.l.b16 %v1723
        %v1790 = vunpack.c.l.b16 %v1724
        %v1791 = vunpack.c.l.b16 %v1725
        %v1792 = vunpack.c.l.b16 %v1726
        %v1793 = vunpack.c.l.b16 %v1727
        %v1794 = vunpack.c.l.b16 %v1728
        %v1795 = vunpack.c.l.b16 %v1729
        %v1796 = vunpack.c.l.b16 %v1730
        %v1797 = vunpack.c.l.b16 %v1731
        %v1798 = vunpack.c.l.b16 %v1732
        %v1799 = vunpack.c.l.b16 %v1733
        %v1800 = vunpack.c.l.b16 %v1734
        %v1801 = vunpack.c.l.b16 %v1735
        %v1802 = vunpack.c.l.b16 %v1736
        %v1803 = vpack.c.b16 %v1772, %v1771
        %v1804 = vpack.c.b16 %v1774, %v1773
        %v1805 = vpack.c.b16 %v1776, %v1775
        %v1806 = vpack.c.b16 %v1778, %v1777
        %v1807 = vpack.c.b16 %v1780, %v1779
        %v1808 = vpack.c.b16 %v1782, %v1781
        %v1809 = vpack.c.b16 %v1784, %v1783
        %v1810 = vpack.c.b16 %v1786, %v1785
        %v1811 = vpack.c.b16 %v1788, %v1787
        %v1812 = vpack.c.b16 %v1790, %v1789
        %v1813 = vpack.c.b16 %v1792, %v1791
        %v1814 = vpack.c.b16 %v1794, %v1793
        %v1815 = vpack.c.b16 %v1796, %v1795
        %v1816 = vpack.c.b16 %v1798, %v1797
        %v1817 = vpack.c.b16 %v1800, %v1799
        %v1818 = vpack.c.b16 %v1802, %v1801
        %v1820 = vsel %vm312, %v1803, 0
        %v1823 = vsel %vm312, %v1804, 0
        %v1826 = vsel %vm312, %v1805, 0
        %v1829 = vsel %vm312, %v1806, 0
        %v1832 = vsel %vm312, %v1807, 0
        %v1835 = vsel %vm312, %v1808, 0
        %v1838 = vsel %vm312, %v1809, 0
        %v1841 = vsel %vm312, %v1810, 0
        %v1844 = vsel %vm312, %v1811, 0
        %v1847 = vsel %vm312, %v1812, 0
        %v1850 = vsel %vm312, %v1813, 0
        %v1853 = vsel %vm312, %v1814, 0
        %v1856 = vsel %vm312, %v1815, 0
        %v1859 = vsel %vm312, %v1816, 0
        %v1862 = vsel %vm312, %v1817, 0
        %v1865 = vsel %vm312, %v1818, 0
        %v1868 = vsel %vm361, %v1738, 0
        %1870 = vmatpush.bf16.msra.mxu0 0
        %1871 = vmatpush.bf16.msra.mxu0 0
        %1872 = vmatpush.bf16.msra.mxu0 0
        %1873 = vmatpush.bf16.msra.mxu0 0
        %1874 = vmatpush.bf16.msra.mxu0 0
        %1875 = vmatpush.bf16.msra.mxu0 0
        %1876 = vmatpush.bf16.msra.mxu0 0
        %1877 = vmatpush.bf16.msra.mxu0 %v1868
        %1878 = vmatmul.bf16.gmra.mxu0 %v1820
        %v1879 = vpop.f32.mrf.mxu0
        %v1880 = vadd.f32 0.0, %v1879
        %v1881 = vpop.f32.mrf.mxu0
        %v1882 = vadd.f32 0.0, %v1881
        %1883 = vmatmul.bf16.gmra.mxu0 %v1823
        %v1884 = vpop.f32.mrf.mxu0
        %v1885 = vadd.f32 0.0, %v1884
        %v1886 = vpop.f32.mrf.mxu0
        %v1887 = vadd.f32 0.0, %v1886
        %1888 = vmatmul.bf16.gmra.mxu0 %v1826
        %v1889 = vpop.f32.mrf.mxu0
        %v1890 = vadd.f32 0.0, %v1889
        %v1891 = vpop.f32.mrf.mxu0
        %v1892 = vadd.f32 0.0, %v1891
        %1893 = vmatmul.bf16.gmra.mxu0 %v1829
        %v1894 = vpop.f32.mrf.mxu0
        %v1895 = vadd.f32 0.0, %v1894
        %v1896 = vpop.f32.mrf.mxu0
        %v1897 = vadd.f32 0.0, %v1896
        %1898 = vmatmul.bf16.gmra.mxu0 %v1832
        %v1899 = vpop.f32.mrf.mxu0
        %v1900 = vadd.f32 0.0, %v1899
        %v1901 = vpop.f32.mrf.mxu0
        %v1902 = vadd.f32 0.0, %v1901
        %1903 = vmatmul.bf16.gmra.mxu0 %v1835
        %v1904 = vpop.f32.mrf.mxu0
        %v1905 = vadd.f32 0.0, %v1904
        %v1906 = vpop.f32.mrf.mxu0
        %v1907 = vadd.f32 0.0, %v1906
        %1908 = vmatmul.bf16.gmra.mxu0 %v1838
        %v1909 = vpop.f32.mrf.mxu0
        %v1910 = vadd.f32 0.0, %v1909
        %v1911 = vpop.f32.mrf.mxu0
        %v1912 = vadd.f32 0.0, %v1911
        %1913 = vmatmul.bf16.gmra.mxu0 %v1841
        %v1914 = vpop.f32.mrf.mxu0
        %v1915 = vadd.f32 0.0, %v1914
        %v1916 = vpop.f32.mrf.mxu0
        %v1917 = vadd.f32 0.0, %v1916
        %1918 = vmatmul.bf16.gmra.mxu0 %v1844
        %v1919 = vpop.f32.mrf.mxu0
        %v1920 = vadd.f32 0.0, %v1919
        %v1921 = vpop.f32.mrf.mxu0
        %v1922 = vadd.f32 0.0, %v1921
        %1923 = vmatmul.bf16.gmra.mxu0 %v1847
        %v1924 = vpop.f32.mrf.mxu0
        %v1925 = vadd.f32 0.0, %v1924
        %v1926 = vpop.f32.mrf.mxu0
        %v1927 = vadd.f32 0.0, %v1926
        %1928 = vmatmul.bf16.gmra.mxu0 %v1850
        %v1929 = vpop.f32.mrf.mxu0
        %v1930 = vadd.f32 0.0, %v1929
        %v1931 = vpop.f32.mrf.mxu0
        %v1932 = vadd.f32 0.0, %v1931
        %1933 = vmatmul.bf16.gmra.mxu0 %v1853
        %v1934 = vpop.f32.mrf.mxu0
        %v1935 = vadd.f32 0.0, %v1934
        %v1936 = vpop.f32.mrf.mxu0
        %v1937 = vadd.f32 0.0, %v1936
        %1938 = vmatmul.bf16.gmra.mxu0 %v1856
        %v1939 = vpop.f32.mrf.mxu0
        %v1940 = vadd.f32 0.0, %v1939
        %v1941 = vpop.f32.mrf.mxu0
        %v1942 = vadd.f32 0.0, %v1941
        %1943 = vmatmul.bf16.gmra.mxu0 %v1859
        %v1944 = vpop.f32.mrf.mxu0
        %v1945 = vadd.f32 0.0, %v1944
        %v1946 = vpop.f32.mrf.mxu0
        %v1947 = vadd.f32 0.0, %v1946
        %1948 = vmatmul.bf16.gmra.mxu0 %v1862
        %v1949 = vpop.f32.mrf.mxu0
        %v1950 = vadd.f32 0.0, %v1949
        %v1951 = vpop.f32.mrf.mxu0
        %v1952 = vadd.f32 0.0, %v1951
        %1953 = vmatmul.bf16.gmra.mxu0 %v1865
        %v1954 = vpop.f32.mrf.mxu0
        %v1955 = vadd.f32 0.0, %v1954
        %v1956 = vpop.f32.mrf.mxu0
        %v1957 = vadd.f32 0.0, %v1956
        %1958 = vdwg.mxu0
        %v1959 = vld [vmem:[#allocation2] sm:$0xff]
        %v1960 = vld [vmem:[#allocation2 + $0x8] sm:$0xff]
        %v1961 = vld [vmem:[#allocation2 + $0x10] sm:$0xff]
        %v1962 = vld [vmem:[#allocation2 + $0x18] sm:$0xff]
        %v1963 = vld [vmem:[#allocation2 + $0x20] sm:$0xff]
        %v1964 = vld [vmem:[#allocation2 + $0x28] sm:$0xff]
        %v1965 = vld [vmem:[#allocation2 + $0x30] sm:$0xff]
        %v1966 = vld [vmem:[#allocation2 + $0x38] sm:$0xff]
        %v1967 = vld [vmem:[#allocation2 + $0x40] sm:$0xff]
        %v1968 = vld [vmem:[#allocation2 + $0x48] sm:$0xff]
        %v1969 = vld [vmem:[#allocation2 + $0x50] sm:$0xff]
        %v1970 = vld [vmem:[#allocation2 + $0x58] sm:$0xff]
        %v1971 = vld [vmem:[#allocation2 + $0x60] sm:$0xff]
        %v1972 = vld [vmem:[#allocation2 + $0x68] sm:$0xff]
        %v1973 = vld [vmem:[#allocation2 + $0x70] sm:$0xff]
        %v1974 = vld [vmem:[#allocation2 + $0x78] sm:$0xff]
        %v1975 = vld [vmem:[#allocation2 + $0x80] sm:$0xff]
        %v1976 = vld [vmem:[#allocation2 + $0x88] sm:$0xff]
        %v1977 = vld [vmem:[#allocation2 + $0x90] sm:$0xff]
        %v1978 = vld [vmem:[#allocation2 + $0x98] sm:$0xff]
        %v1979 = vld [vmem:[#allocation2 + $0xa0] sm:$0xff]
        %v1980 = vld [vmem:[#allocation2 + $0xa8] sm:$0xff]
        %v1981 = vld [vmem:[#allocation2 + $0xb0] sm:$0xff]
        %v1982 = vld [vmem:[#allocation2 + $0xb8] sm:$0xff]
        %v1983 = vld [vmem:[#allocation2 + $0xc0] sm:$0xff]
        %v1984 = vld [vmem:[#allocation2 + $0xc8] sm:$0xff]
        %v1985 = vld [vmem:[#allocation2 + $0xd0] sm:$0xff]
        %v1986 = vld [vmem:[#allocation2 + $0xd8] sm:$0xff]
        %v1987 = vld [vmem:[#allocation2 + $0xe0] sm:$0xff]
        %v1988 = vld [vmem:[#allocation2 + $0xe8] sm:$0xff]
        %v1989 = vld [vmem:[#allocation2 + $0xf0] sm:$0xff]
        %v1990 = vld [vmem:[#allocation2 + $0xf8] sm:$0xff]
        %v1991 = vadd.f32 %v1959, %v1880
        %v1992 = vadd.f32 %v1960, %v1882
        %v1993 = vadd.f32 %v1961, %v1885
        %v1994 = vadd.f32 %v1962, %v1887
        %v1995 = vadd.f32 %v1963, %v1890
        %v1996 = vadd.f32 %v1964, %v1892
        %v1997 = vadd.f32 %v1965, %v1895
        %v1998 = vadd.f32 %v1966, %v1897
        %v1999 = vadd.f32 %v1967, %v1900
        %v2000 = vadd.f32 %v1968, %v1902
        %v2001 = vadd.f32 %v1969, %v1905
        %v2002 = vadd.f32 %v1970, %v1907
        %v2003 = vadd.f32 %v1971, %v1910
        %v2004 = vadd.f32 %v1972, %v1912
        %v2005 = vadd.f32 %v1973, %v1915
        %v2006 = vadd.f32 %v1974, %v1917
        %v2007 = vadd.f32 %v1975, %v1920
        %v2008 = vadd.f32 %v1976, %v1922
        %v2009 = vadd.f32 %v1977, %v1925
        %v2010 = vadd.f32 %v1978, %v1927
        %v2011 = vadd.f32 %v1979, %v1930
        %v2012 = vadd.f32 %v1980, %v1932
        %v2013 = vadd.f32 %v1981, %v1935
        %v2014 = vadd.f32 %v1982, %v1937
        %v2015 = vadd.f32 %v1983, %v1940
        %v2016 = vadd.f32 %v1984, %v1942
        %v2017 = vadd.f32 %v1985, %v1945
        %v2018 = vadd.f32 %v1986, %v1947
        %v2019 = vadd.f32 %v1987, %v1950
        %v2020 = vadd.f32 %v1988, %v1952
        %v2021 = vadd.f32 %v1989, %v1955
        %v2022 = vadd.f32 %v1990, %v1957
        %2023 = vst [vmem:[#allocation2] sm:$0xff] %v1991
        %2024 = vst [vmem:[#allocation2 + $0x8] sm:$0xff] %v1992
        %2025 = vst [vmem:[#allocation2 + $0x10] sm:$0xff] %v1993
        %2026 = vst [vmem:[#allocation2 + $0x18] sm:$0xff] %v1994
        %2027 = vst [vmem:[#allocation2 + $0x20] sm:$0xff] %v1995
        %2028 = vst [vmem:[#allocation2 + $0x28] sm:$0xff] %v1996
        %2029 = vst [vmem:[#allocation2 + $0x30] sm:$0xff] %v1997
        %2030 = vst [vmem:[#allocation2 + $0x38] sm:$0xff] %v1998
        %2031 = vst [vmem:[#allocation2 + $0x40] sm:$0xff] %v1999
        %2032 = vst [vmem:[#allocation2 + $0x48] sm:$0xff] %v2000
        %2033 = vst [vmem:[#allocation2 + $0x50] sm:$0xff] %v2001
        %2034 = vst [vmem:[#allocation2 + $0x58] sm:$0xff] %v2002
        %2035 = vst [vmem:[#allocation2 + $0x60] sm:$0xff] %v2003
        %2036 = vst [vmem:[#allocation2 + $0x68] sm:$0xff] %v2004
        %2037 = vst [vmem:[#allocation2 + $0x70] sm:$0xff] %v2005
        %2038 = vst [vmem:[#allocation2 + $0x78] sm:$0xff] %v2006
        %2039 = vst [vmem:[#allocation2 + $0x80] sm:$0xff] %v2007
        %2040 = vst [vmem:[#allocation2 + $0x88] sm:$0xff] %v2008
        %2041 = vst [vmem:[#allocation2 + $0x90] sm:$0xff] %v2009
        %2042 = vst [vmem:[#allocation2 + $0x98] sm:$0xff] %v2010
        %2043 = vst [vmem:[#allocation2 + $0xa0] sm:$0xff] %v2011
        %2044 = vst [vmem:[#allocation2 + $0xa8] sm:$0xff] %v2012
        %2045 = vst [vmem:[#allocation2 + $0xb0] sm:$0xff] %v2013
        %2046 = vst [vmem:[#allocation2 + $0xb8] sm:$0xff] %v2014
        %2047 = vst [vmem:[#allocation2 + $0xc0] sm:$0xff] %v2015
        %2048 = vst [vmem:[#allocation2 + $0xc8] sm:$0xff] %v2016
        %2049 = vst [vmem:[#allocation2 + $0xd0] sm:$0xff] %v2017
        %2050 = vst [vmem:[#allocation2 + $0xd8] sm:$0xff] %v2018
        %2051 = vst [vmem:[#allocation2 + $0xe0] sm:$0xff] %v2019
        %2052 = vst [vmem:[#allocation2 + $0xe8] sm:$0xff] %v2020
        %2053 = vst [vmem:[#allocation2 + $0xf0] sm:$0xff] %v2021
        %2054 = vst [vmem:[#allocation2 + $0xf8] sm:$0xff] %v2022
        %v2055 = vld [vmem:[%s1704] sm:$0xf]
        %v2056 = vld [vmem:[%s1704 + $0x4] sm:$0xf]
        %v2057 = vld [vmem:[%s1704 + $0x8] sm:$0x1]
        %v2058 = vld [vmem:[%s1704 + $0xc] sm:$0xf]
        %v2059 = vld [vmem:[%s1704 + $0x10] sm:$0xf]
        %v2060 = vld [vmem:[%s1704 + $0x14] sm:$0x1]
        %v2061 = vld [vmem:[%s1704 + $0x18] sm:$0xf]
        %v2062 = vld [vmem:[%s1704 + $0x1c] sm:$0xf]
        %v2063 = vld [vmem:[%s1704 + $0x20] sm:$0x1]
        %v2064 = vld [vmem:[%s1704 + $0x24] sm:$0xf]
        %v2065 = vld [vmem:[%s1704 + $0x28] sm:$0xf]
        %v2066 = vld [vmem:[%s1704 + $0x2c] sm:$0x1]
        %v2067 = vld [vmem:[%s1704 + $0x30] sm:$0xf]
        %v2068 = vld [vmem:[%s1704 + $0x34] sm:$0xf]
        %v2069 = vld [vmem:[%s1704 + $0x38] sm:$0x1]
        %v2070 = vld [vmem:[%s1704 + $0x3c] sm:$0xf]
        %v2071 = vld [vmem:[%s1704 + $0x40] sm:$0xf]
        %v2072 = vld [vmem:[%s1704 + $0x44] sm:$0x1]
        %v2073 = vld [vmem:[%s1704 + $0x48] sm:$0xf]
        %v2074 = vld [vmem:[%s1704 + $0x4c] sm:$0xf]
        %v2075 = vld [vmem:[%s1704 + $0x50] sm:$0x1]
        %v2076 = vld [vmem:[%s1704 + $0x54] sm:$0xf]
        %v2077 = vld [vmem:[%s1704 + $0x58] sm:$0xf]
        %v2078 = vld [vmem:[%s1704 + $0x5c] sm:$0x1]
        %v2079 = vld [vmem:[%s1704 + $0x60] sm:$0xf]
        %v2080 = vld [vmem:[%s1704 + $0x64] sm:$0xf]
        %v2081 = vld [vmem:[%s1704 + $0x68] sm:$0x1]
        %v2082 = vld [vmem:[%s1704 + $0x6c] sm:$0xf]
        %v2083 = vld [vmem:[%s1704 + $0x70] sm:$0xf]
        %v2084 = vld [vmem:[%s1704 + $0x74] sm:$0x1]
        %v2085 = vld [vmem:[%s1704 + $0x78] sm:$0xf]
        %v2086 = vld [vmem:[%s1704 + $0x7c] sm:$0xf]
        %v2087 = vld [vmem:[%s1704 + $0x80] sm:$0x1]
        %v2088 = vld [vmem:[%s1704 + $0x84] sm:$0xf]
        %v2089 = vld [vmem:[%s1704 + $0x88] sm:$0xf]
        %v2090 = vld [vmem:[%s1704 + $0x8c] sm:$0x1]
        %v2091 = vld [vmem:[%s1704 + $0x90] sm:$0xf]
        %v2092 = vld [vmem:[%s1704 + $0x94] sm:$0xf]
        %v2093 = vld [vmem:[%s1704 + $0x98] sm:$0x1]
        %v2094 = vld [vmem:[%s1704 + $0x9c] sm:$0xf]
        %v2095 = vld [vmem:[%s1704 + $0xa0] sm:$0xf]
        %v2096 = vld [vmem:[%s1704 + $0xa4] sm:$0x1]
        %v2097 = vld [vmem:[%s1704 + $0xa8] sm:$0xf]
        %v2098 = vld [vmem:[%s1704 + $0xac] sm:$0xf]
        %v2099 = vld [vmem:[%s1704 + $0xb0] sm:$0x1]
        %v2100 = vld [vmem:[%s1704 + $0xb4] sm:$0xf]
        %v2101 = vld [vmem:[%s1704 + $0xb8] sm:$0xf]
        %v2102 = vld [vmem:[%s1704 + $0xbc] sm:$0x1]
        %v2104 = vshrl.u32 %v2055, 16
        %v2106 = vrot.slane %v2104, 4
        %v2107 = vshll.u32 %v2055, 16
        %v2109 = vrot.slane %v2107, 5
        %v2110 = vor.u32 %v2106, %v2109
        %v2111 = vrot.slane %v2110, 4
        %v2113 = vshll.u32 %v2056, 16
        %v2115 = vrot.slane %v2113, 5
        %v2116 = vsel %vm536, %v2111, %v2115
        %v2117 = vshrl.u32 %v2056, 16
        %v2119 = vrot.slane %v2117, 4
        %v2120 = vor.u32 %v2119, %v2115
        %v2121 = vrot.slane %v2120, 4
        %v2123 = vshll.u32 %v2057, 16
        %v2125 = vrot.slane %v2123, 5
        %v2126 = vsel %vm536, %v2121, %v2125
        %v2128 = vshrl.u32 %v2058, 16
        %v2130 = vrot.slane %v2128, 4
        %v2131 = vshll.u32 %v2058, 16
        %v2133 = vrot.slane %v2131, 5
        %v2134 = vor.u32 %v2130, %v2133
        %v2135 = vrot.slane %v2134, 4
        %v2137 = vshll.u32 %v2059, 16
        %v2139 = vrot.slane %v2137, 5
        %v2140 = vsel %vm536, %v2135, %v2139
        %v2141 = vshrl.u32 %v2059, 16
        %v2143 = vrot.slane %v2141, 4
        %v2144 = vor.u32 %v2143, %v2139
        %v2145 = vrot.slane %v2144, 4
        %v2147 = vshll.u32 %v2060, 16
        %v2149 = vrot.slane %v2147, 5
        %v2150 = vsel %vm536, %v2145, %v2149
        %v2152 = vshrl.u32 %v2061, 16
        %v2154 = vrot.slane %v2152, 4
        %v2155 = vshll.u32 %v2061, 16
        %v2157 = vrot.slane %v2155, 5
        %v2158 = vor.u32 %v2154, %v2157
        %v2159 = vrot.slane %v2158, 4
        %v2161 = vshll.u32 %v2062, 16
        %v2163 = vrot.slane %v2161, 5
        %v2164 = vsel %vm536, %v2159, %v2163
        %v2165 = vshrl.u32 %v2062, 16
        %v2167 = vrot.slane %v2165, 4
        %v2168 = vor.u32 %v2167, %v2163
        %v2169 = vrot.slane %v2168, 4
        %v2171 = vshll.u32 %v2063, 16
        %v2173 = vrot.slane %v2171, 5
        %v2174 = vsel %vm536, %v2169, %v2173
        %v2176 = vshrl.u32 %v2064, 16
        %v2178 = vrot.slane %v2176, 4
        %v2179 = vshll.u32 %v2064, 16
        %v2181 = vrot.slane %v2179, 5
        %v2182 = vor.u32 %v2178, %v2181
        %v2183 = vrot.slane %v2182, 4
        %v2185 = vshll.u32 %v2065, 16
        %v2187 = vrot.slane %v2185, 5
        %v2188 = vsel %vm536, %v2183, %v2187
        %v2189 = vshrl.u32 %v2065, 16
        %v2191 = vrot.slane %v2189, 4
        %v2192 = vor.u32 %v2191, %v2187
        %v2193 = vrot.slane %v2192, 4
        %v2195 = vshll.u32 %v2066, 16
        %v2197 = vrot.slane %v2195, 5
        %v2198 = vsel %vm536, %v2193, %v2197
        %v2200 = vshrl.u32 %v2067, 16
        %v2202 = vrot.slane %v2200, 4
        %v2203 = vshll.u32 %v2067, 16
        %v2205 = vrot.slane %v2203, 5
        %v2206 = vor.u32 %v2202, %v2205
        %v2207 = vrot.slane %v2206, 4
        %v2209 = vshll.u32 %v2068, 16
        %v2211 = vrot.slane %v2209, 5
        %v2212 = vsel %vm536, %v2207, %v2211
        %v2213 = vshrl.u32 %v2068, 16
        %v2215 = vrot.slane %v2213, 4
        %v2216 = vor.u32 %v2215, %v2211
        %v2217 = vrot.slane %v2216, 4
        %v2219 = vshll.u32 %v2069, 16
        %v2221 = vrot.slane %v2219, 5
        %v2222 = vsel %vm536, %v2217, %v2221
        %v2224 = vshrl.u32 %v2070, 16
        %v2226 = vrot.slane %v2224, 4
        %v2227 = vshll.u32 %v2070, 16
        %v2229 = vrot.slane %v2227, 5
        %v2230 = vor.u32 %v2226, %v2229
        %v2231 = vrot.slane %v2230, 4
        %v2233 = vshll.u32 %v2071, 16
        %v2235 = vrot.slane %v2233, 5
        %v2236 = vsel %vm536, %v2231, %v2235
        %v2237 = vshrl.u32 %v2071, 16
        %v2239 = vrot.slane %v2237, 4
        %v2240 = vor.u32 %v2239, %v2235
        %v2241 = vrot.slane %v2240, 4
        %v2243 = vshll.u32 %v2072, 16
        %v2245 = vrot.slane %v2243, 5
        %v2246 = vsel %vm536, %v2241, %v2245
        %v2248 = vshrl.u32 %v2073, 16
        %v2250 = vrot.slane %v2248, 4
        %v2251 = vshll.u32 %v2073, 16
        %v2253 = vrot.slane %v2251, 5
        %v2254 = vor.u32 %v2250, %v2253
        %v2255 = vrot.slane %v2254, 4
        %v2257 = vshll.u32 %v2074, 16
        %v2259 = vrot.slane %v2257, 5
        %v2260 = vsel %vm536, %v2255, %v2259
        %v2261 = vshrl.u32 %v2074, 16
        %v2263 = vrot.slane %v2261, 4
        %v2264 = vor.u32 %v2263, %v2259
        %v2265 = vrot.slane %v2264, 4
        %v2267 = vshll.u32 %v2075, 16
        %v2269 = vrot.slane %v2267, 5
        %v2270 = vsel %vm536, %v2265, %v2269
        %v2272 = vshrl.u32 %v2076, 16
        %v2274 = vrot.slane %v2272, 4
        %v2275 = vshll.u32 %v2076, 16
        %v2277 = vrot.slane %v2275, 5
        %v2278 = vor.u32 %v2274, %v2277
        %v2279 = vrot.slane %v2278, 4
        %v2281 = vshll.u32 %v2077, 16
        %v2283 = vrot.slane %v2281, 5
        %v2284 = vsel %vm536, %v2279, %v2283
        %v2285 = vshrl.u32 %v2077, 16
        %v2287 = vrot.slane %v2285, 4
        %v2288 = vor.u32 %v2287, %v2283
        %v2289 = vrot.slane %v2288, 4
        %v2291 = vshll.u32 %v2078, 16
        %v2293 = vrot.slane %v2291, 5
        %v2294 = vsel %vm536, %v2289, %v2293
        %v2296 = vshrl.u32 %v2079, 16
        %v2298 = vrot.slane %v2296, 4
        %v2299 = vshll.u32 %v2079, 16
        %v2301 = vrot.slane %v2299, 5
        %v2302 = vor.u32 %v2298, %v2301
        %v2303 = vrot.slane %v2302, 4
        %v2305 = vshll.u32 %v2080, 16
        %v2307 = vrot.slane %v2305, 5
        %v2308 = vsel %vm536, %v2303, %v2307
        %v2309 = vshrl.u32 %v2080, 16
        %v2311 = vrot.slane %v2309, 4
        %v2312 = vor.u32 %v2311, %v2307
        %v2313 = vrot.slane %v2312, 4
        %v2315 = vshll.u32 %v2081, 16
        %v2317 = vrot.slane %v2315, 5
        %v2318 = vsel %vm536, %v2313, %v2317
        %v2320 = vshrl.u32 %v2082, 16
        %v2322 = vrot.slane %v2320, 4
        %v2323 = vshll.u32 %v2082, 16
        %v2325 = vrot.slane %v2323, 5
        %v2326 = vor.u32 %v2322, %v2325
        %v2327 = vrot.slane %v2326, 4
        %v2329 = vshll.u32 %v2083, 16
        %v2331 = vrot.slane %v2329, 5
        %v2332 = vsel %vm536, %v2327, %v2331
        %v2333 = vshrl.u32 %v2083, 16
        %v2335 = vrot.slane %v2333, 4
        %v2336 = vor.u32 %v2335, %v2331
        %v2337 = vrot.slane %v2336, 4
        %v2339 = vshll.u32 %v2084, 16
        %v2341 = vrot.slane %v2339, 5
        %v2342 = vsel %vm536, %v2337, %v2341
        %v2344 = vshrl.u32 %v2085, 16
        %v2346 = vrot.slane %v2344, 4
        %v2347 = vshll.u32 %v2085, 16
        %v2349 = vrot.slane %v2347, 5
        %v2350 = vor.u32 %v2346, %v2349
        %v2351 = vrot.slane %v2350, 4
        %v2353 = vshll.u32 %v2086, 16
        %v2355 = vrot.slane %v2353, 5
        %v2356 = vsel %vm536, %v2351, %v2355
        %v2357 = vshrl.u32 %v2086, 16
        %v2359 = vrot.slane %v2357, 4
        %v2360 = vor.u32 %v2359, %v2355
        %v2361 = vrot.slane %v2360, 4
        %v2363 = vshll.u32 %v2087, 16
        %v2365 = vrot.slane %v2363, 5
        %v2366 = vsel %vm536, %v2361, %v2365
        %v2368 = vshrl.u32 %v2088, 16
        %v2370 = vrot.slane %v2368, 4
        %v2371 = vshll.u32 %v2088, 16
        %v2373 = vrot.slane %v2371, 5
        %v2374 = vor.u32 %v2370, %v2373
        %v2375 = vrot.slane %v2374, 4
        %v2377 = vshll.u32 %v2089, 16
        %v2379 = vrot.slane %v2377, 5
        %v2380 = vsel %vm536, %v2375, %v2379
        %v2381 = vshrl.u32 %v2089, 16
        %v2383 = vrot.slane %v2381, 4
        %v2384 = vor.u32 %v2383, %v2379
        %v2385 = vrot.slane %v2384, 4
        %v2387 = vshll.u32 %v2090, 16
        %v2389 = vrot.slane %v2387, 5
        %v2390 = vsel %vm536, %v2385, %v2389
        %v2392 = vshrl.u32 %v2091, 16
        %v2394 = vrot.slane %v2392, 4
        %v2395 = vshll.u32 %v2091, 16
        %v2397 = vrot.slane %v2395, 5
        %v2398 = vor.u32 %v2394, %v2397
        %v2399 = vrot.slane %v2398, 4
        %v2401 = vshll.u32 %v2092, 16
        %v2403 = vrot.slane %v2401, 5
        %v2404 = vsel %vm536, %v2399, %v2403
        %v2405 = vshrl.u32 %v2092, 16
        %v2407 = vrot.slane %v2405, 4
        %v2408 = vor.u32 %v2407, %v2403
        %v2409 = vrot.slane %v2408, 4
        %v2411 = vshll.u32 %v2093, 16
        %v2413 = vrot.slane %v2411, 5
        %v2414 = vsel %vm536, %v2409, %v2413
        %v2416 = vshrl.u32 %v2094, 16
        %v2418 = vrot.slane %v2416, 4
        %v2419 = vshll.u32 %v2094, 16
        %v2421 = vrot.slane %v2419, 5
        %v2422 = vor.u32 %v2418, %v2421
        %v2423 = vrot.slane %v2422, 4
        %v2425 = vshll.u32 %v2095, 16
        %v2427 = vrot.slane %v2425, 5
        %v2428 = vsel %vm536, %v2423, %v2427
        %v2429 = vshrl.u32 %v2095, 16
        %v2431 = vrot.slane %v2429, 4
        %v2432 = vor.u32 %v2431, %v2427
        %v2433 = vrot.slane %v2432, 4
        %v2435 = vshll.u32 %v2096, 16
        %v2437 = vrot.slane %v2435, 5
        %v2438 = vsel %vm536, %v2433, %v2437
        %v2440 = vshrl.u32 %v2097, 16
        %v2442 = vrot.slane %v2440, 4
        %v2443 = vshll.u32 %v2097, 16
        %v2445 = vrot.slane %v2443, 5
        %v2446 = vor.u32 %v2442, %v2445
        %v2447 = vrot.slane %v2446, 4
        %v2449 = vshll.u32 %v2098, 16
        %v2451 = vrot.slane %v2449, 5
        %v2452 = vsel %vm536, %v2447, %v2451
        %v2453 = vshrl.u32 %v2098, 16
        %v2455 = vrot.slane %v2453, 4
        %v2456 = vor.u32 %v2455, %v2451
        %v2457 = vrot.slane %v2456, 4
        %v2459 = vshll.u32 %v2099, 16
        %v2461 = vrot.slane %v2459, 5
        %v2462 = vsel %vm536, %v2457, %v2461
        %v2464 = vshrl.u32 %v2100, 16
        %v2466 = vrot.slane %v2464, 4
        %v2467 = vshll.u32 %v2100, 16
        %v2469 = vrot.slane %v2467, 5
        %v2470 = vor.u32 %v2466, %v2469
        %v2471 = vrot.slane %v2470, 4
        %v2473 = vshll.u32 %v2101, 16
        %v2475 = vrot.slane %v2473, 5
        %v2476 = vsel %vm536, %v2471, %v2475
        %v2477 = vshrl.u32 %v2101, 16
        %v2479 = vrot.slane %v2477, 4
        %v2480 = vor.u32 %v2479, %v2475
        %v2481 = vrot.slane %v2480, 4
        %v2483 = vshll.u32 %v2102, 16
        %v2485 = vrot.slane %v2483, 5
        %v2486 = vsel %vm536, %v2481, %v2485
        %s2487 = scalar_lea.vmem %s1, 8
        %v2488 = vld [vmem:[%s2487] sm:$0x3]
        %v2489 = vunpack.c.l.b16 %v2116
        %v2490 = vunpack.c.l.b16 %v2126
        %v2491 = vunpack.c.l.b16 %v2140
        %v2492 = vunpack.c.l.b16 %v2150
        %v2493 = vunpack.c.l.b16 %v2164
        %v2494 = vunpack.c.l.b16 %v2174
        %v2495 = vunpack.c.l.b16 %v2188
        %v2496 = vunpack.c.l.b16 %v2198
        %v2497 = vunpack.c.l.b16 %v2212
        %v2498 = vunpack.c.l.b16 %v2222
        %v2499 = vunpack.c.l.b16 %v2236
        %v2500 = vunpack.c.l.b16 %v2246
        %v2501 = vunpack.c.l.b16 %v2260
        %v2502 = vunpack.c.l.b16 %v2270
        %v2503 = vunpack.c.l.b16 %v2284
        %v2504 = vunpack.c.l.b16 %v2294
        %v2505 = vunpack.c.l.b16 %v2308
        %v2506 = vunpack.c.l.b16 %v2318
        %v2507 = vunpack.c.l.b16 %v2332
        %v2508 = vunpack.c.l.b16 %v2342
        %v2509 = vunpack.c.l.b16 %v2356
        %v2510 = vunpack.c.l.b16 %v2366
        %v2511 = vunpack.c.l.b16 %v2380
        %v2512 = vunpack.c.l.b16 %v2390
        %v2513 = vunpack.c.l.b16 %v2404
        %v2514 = vunpack.c.l.b16 %v2414
        %v2515 = vunpack.c.l.b16 %v2428
        %v2516 = vunpack.c.l.b16 %v2438
        %v2517 = vunpack.c.l.b16 %v2452
        %v2518 = vunpack.c.l.b16 %v2462
        %v2519 = vunpack.c.l.b16 %v2476
        %v2520 = vunpack.c.l.b16 %v2486
        %v2521 = vpack.c.b16 %v2490, %v2489
        %v2522 = vpack.c.b16 %v2492, %v2491
        %v2523 = vpack.c.b16 %v2494, %v2493
        %v2524 = vpack.c.b16 %v2496, %v2495
        %v2525 = vpack.c.b16 %v2498, %v2497
        %v2526 = vpack.c.b16 %v2500, %v2499
        %v2527 = vpack.c.b16 %v2502, %v2501
        %v2528 = vpack.c.b16 %v2504, %v2503
        %v2529 = vpack.c.b16 %v2506, %v2505
        %v2530 = vpack.c.b16 %v2508, %v2507
        %v2531 = vpack.c.b16 %v2510, %v2509
        %v2532 = vpack.c.b16 %v2512, %v2511
        %v2533 = vpack.c.b16 %v2514, %v2513
        %v2534 = vpack.c.b16 %v2516, %v2515
        %v2535 = vpack.c.b16 %v2518, %v2517
        %v2536 = vpack.c.b16 %v2520, %v2519
        %v2538 = vsel %vm312, %v2521, 0
        %v2541 = vsel %vm312, %v2522, 0
        %v2544 = vsel %vm312, %v2523, 0
        %v2547 = vsel %vm312, %v2524, 0
        %v2550 = vsel %vm312, %v2525, 0
        %v2553 = vsel %vm312, %v2526, 0
        %v2556 = vsel %vm312, %v2527, 0
        %v2559 = vsel %vm312, %v2528, 0
        %v2562 = vsel %vm312, %v2529, 0
        %v2565 = vsel %vm312, %v2530, 0
        %v2568 = vsel %vm312, %v2531, 0
        %v2571 = vsel %vm312, %v2532, 0
        %v2574 = vsel %vm312, %v2533, 0
        %v2577 = vsel %vm312, %v2534, 0
        %v2580 = vsel %vm312, %v2535, 0
        %v2583 = vsel %vm312, %v2536, 0
        %v2586 = vsel %vm361, %v2488, 0
        %2588 = vmatpush.bf16.msra.mxu0 0
        %2589 = vmatpush.bf16.msra.mxu0 0
        %2590 = vmatpush.bf16.msra.mxu0 0
        %2591 = vmatpush.bf16.msra.mxu0 0
        %2592 = vmatpush.bf16.msra.mxu0 0
        %2593 = vmatpush.bf16.msra.mxu0 0
        %2594 = vmatpush.bf16.msra.mxu0 0
        %2595 = vmatpush.bf16.msra.mxu0 %v2586
        %2596 = vmatmul.bf16.gmra.mxu0 %v2538
        %v2597 = vpop.f32.mrf.mxu0
        %v2598 = vadd.f32 0.0, %v2597
        %v2599 = vpop.f32.mrf.mxu0
        %v2600 = vadd.f32 0.0, %v2599
        %2601 = vmatmul.bf16.gmra.mxu0 %v2541
        %v2602 = vpop.f32.mrf.mxu0
        %v2603 = vadd.f32 0.0, %v2602
        %v2604 = vpop.f32.mrf.mxu0
        %v2605 = vadd.f32 0.0, %v2604
        %2606 = vmatmul.bf16.gmra.mxu0 %v2544
        %v2607 = vpop.f32.mrf.mxu0
        %v2608 = vadd.f32 0.0, %v2607
        %v2609 = vpop.f32.mrf.mxu0
        %v2610 = vadd.f32 0.0, %v2609
        %2611 = vmatmul.bf16.gmra.mxu0 %v2547
        %v2612 = vpop.f32.mrf.mxu0
        %v2613 = vadd.f32 0.0, %v2612
        %v2614 = vpop.f32.mrf.mxu0
        %v2615 = vadd.f32 0.0, %v2614
        %2616 = vmatmul.bf16.gmra.mxu0 %v2550
        %v2617 = vpop.f32.mrf.mxu0
        %v2618 = vadd.f32 0.0, %v2617
        %v2619 = vpop.f32.mrf.mxu0
        %v2620 = vadd.f32 0.0, %v2619
        %2621 = vmatmul.bf16.gmra.mxu0 %v2553
        %v2622 = vpop.f32.mrf.mxu0
        %v2623 = vadd.f32 0.0, %v2622
        %v2624 = vpop.f32.mrf.mxu0
        %v2625 = vadd.f32 0.0, %v2624
        %2626 = vmatmul.bf16.gmra.mxu0 %v2556
        %v2627 = vpop.f32.mrf.mxu0
        %v2628 = vadd.f32 0.0, %v2627
        %v2629 = vpop.f32.mrf.mxu0
        %v2630 = vadd.f32 0.0, %v2629
        %2631 = vmatmul.bf16.gmra.mxu0 %v2559
        %v2632 = vpop.f32.mrf.mxu0
        %v2633 = vadd.f32 0.0, %v2632
        %v2634 = vpop.f32.mrf.mxu0
        %v2635 = vadd.f32 0.0, %v2634
        %2636 = vmatmul.bf16.gmra.mxu0 %v2562
        %v2637 = vpop.f32.mrf.mxu0
        %v2638 = vadd.f32 0.0, %v2637
        %v2639 = vpop.f32.mrf.mxu0
        %v2640 = vadd.f32 0.0, %v2639
        %2641 = vmatmul.bf16.gmra.mxu0 %v2565
        %v2642 = vpop.f32.mrf.mxu0
        %v2643 = vadd.f32 0.0, %v2642
        %v2644 = vpop.f32.mrf.mxu0
        %v2645 = vadd.f32 0.0, %v2644
        %2646 = vmatmul.bf16.gmra.mxu0 %v2568
        %v2647 = vpop.f32.mrf.mxu0
        %v2648 = vadd.f32 0.0, %v2647
        %v2649 = vpop.f32.mrf.mxu0
        %v2650 = vadd.f32 0.0, %v2649
        %2651 = vmatmul.bf16.gmra.mxu0 %v2571
        %v2652 = vpop.f32.mrf.mxu0
        %v2653 = vadd.f32 0.0, %v2652
        %v2654 = vpop.f32.mrf.mxu0
        %v2655 = vadd.f32 0.0, %v2654
        %2656 = vmatmul.bf16.gmra.mxu0 %v2574
        %v2657 = vpop.f32.mrf.mxu0
        %v2658 = vadd.f32 0.0, %v2657
        %v2659 = vpop.f32.mrf.mxu0
        %v2660 = vadd.f32 0.0, %v2659
        %2661 = vmatmul.bf16.gmra.mxu0 %v2577
        %v2662 = vpop.f32.mrf.mxu0
        %v2663 = vadd.f32 0.0, %v2662
        %v2664 = vpop.f32.mrf.mxu0
        %v2665 = vadd.f32 0.0, %v2664
        %2666 = vmatmul.bf16.gmra.mxu0 %v2580
        %v2667 = vpop.f32.mrf.mxu0
        %v2668 = vadd.f32 0.0, %v2667
        %v2669 = vpop.f32.mrf.mxu0
        %v2670 = vadd.f32 0.0, %v2669
        %2671 = vmatmul.bf16.gmra.mxu0 %v2583
        %v2672 = vpop.f32.mrf.mxu0
        %v2673 = vadd.f32 0.0, %v2672
        %v2674 = vpop.f32.mrf.mxu0
        %v2675 = vadd.f32 0.0, %v2674
        %2676 = vdwg.mxu0
        %v2677 = vld [vmem:[#allocation2] sm:$0xff]
        %v2678 = vld [vmem:[#allocation2 + $0x8] sm:$0xff]
        %v2679 = vld [vmem:[#allocation2 + $0x10] sm:$0xff]
        %v2680 = vld [vmem:[#allocation2 + $0x18] sm:$0xff]
        %v2681 = vld [vmem:[#allocation2 + $0x20] sm:$0xff]
        %v2682 = vld [vmem:[#allocation2 + $0x28] sm:$0xff]
        %v2683 = vld [vmem:[#allocation2 + $0x30] sm:$0xff]
        %v2684 = vld [vmem:[#allocation2 + $0x38] sm:$0xff]
        %v2685 = vld [vmem:[#allocation2 + $0x40] sm:$0xff]
        %v2686 = vld [vmem:[#allocation2 + $0x48] sm:$0xff]
        %v2687 = vld [vmem:[#allocation2 + $0x50] sm:$0xff]
        %v2688 = vld [vmem:[#allocation2 + $0x58] sm:$0xff]
        %v2689 = vld [vmem:[#allocation2 + $0x60] sm:$0xff]
        %v2690 = vld [vmem:[#allocation2 + $0x68] sm:$0xff]
        %v2691 = vld [vmem:[#allocation2 + $0x70] sm:$0xff]
        %v2692 = vld [vmem:[#allocation2 + $0x78] sm:$0xff]
        %v2693 = vld [vmem:[#allocation2 + $0x80] sm:$0xff]
        %v2694 = vld [vmem:[#allocation2 + $0x88] sm:$0xff]
        %v2695 = vld [vmem:[#allocation2 + $0x90] sm:$0xff]
        %v2696 = vld [vmem:[#allocation2 + $0x98] sm:$0xff]
        %v2697 = vld [vmem:[#allocation2 + $0xa0] sm:$0xff]
        %v2698 = vld [vmem:[#allocation2 + $0xa8] sm:$0xff]
        %v2699 = vld [vmem:[#allocation2 + $0xb0] sm:$0xff]
        %v2700 = vld [vmem:[#allocation2 + $0xb8] sm:$0xff]
        %v2701 = vld [vmem:[#allocation2 + $0xc0] sm:$0xff]
        %v2702 = vld [vmem:[#allocation2 + $0xc8] sm:$0xff]
        %v2703 = vld [vmem:[#allocation2 + $0xd0] sm:$0xff]
        %v2704 = vld [vmem:[#allocation2 + $0xd8] sm:$0xff]
        %v2705 = vld [vmem:[#allocation2 + $0xe0] sm:$0xff]
        %v2706 = vld [vmem:[#allocation2 + $0xe8] sm:$0xff]
        %v2707 = vld [vmem:[#allocation2 + $0xf0] sm:$0xff]
        %v2708 = vld [vmem:[#allocation2 + $0xf8] sm:$0xff]
        %v2709 = vadd.f32 %v2677, %v2598
        %v2710 = vadd.f32 %v2678, %v2600
        %v2711 = vadd.f32 %v2679, %v2603
        %v2712 = vadd.f32 %v2680, %v2605
        %v2713 = vadd.f32 %v2681, %v2608
        %v2714 = vadd.f32 %v2682, %v2610
        %v2715 = vadd.f32 %v2683, %v2613
        %v2716 = vadd.f32 %v2684, %v2615
        %v2717 = vadd.f32 %v2685, %v2618
        %v2718 = vadd.f32 %v2686, %v2620
        %v2719 = vadd.f32 %v2687, %v2623
        %v2720 = vadd.f32 %v2688, %v2625
        %v2721 = vadd.f32 %v2689, %v2628
        %v2722 = vadd.f32 %v2690, %v2630
        %v2723 = vadd.f32 %v2691, %v2633
        %v2724 = vadd.f32 %v2692, %v2635
        %v2725 = vadd.f32 %v2693, %v2638
        %v2726 = vadd.f32 %v2694, %v2640
        %v2727 = vadd.f32 %v2695, %v2643
        %v2728 = vadd.f32 %v2696, %v2645
        %v2729 = vadd.f32 %v2697, %v2648
        %v2730 = vadd.f32 %v2698, %v2650
        %v2731 = vadd.f32 %v2699, %v2653
        %v2732 = vadd.f32 %v2700, %v2655
        %v2733 = vadd.f32 %v2701, %v2658
        %v2734 = vadd.f32 %v2702, %v2660
        %v2735 = vadd.f32 %v2703, %v2663
        %v2736 = vadd.f32 %v2704, %v2665
        %v2737 = vadd.f32 %v2705, %v2668
        %v2738 = vadd.f32 %v2706, %v2670
        %v2739 = vadd.f32 %v2707, %v2673
        %v2740 = vadd.f32 %v2708, %v2675
        %2741 = vst [vmem:[#allocation2] sm:$0xff] %v2709
        %2742 = vst [vmem:[#allocation2 + $0x8] sm:$0xff] %v2710
        %2743 = vst [vmem:[#allocation2 + $0x10] sm:$0xff] %v2711
        %2744 = vst [vmem:[#allocation2 + $0x18] sm:$0xff] %v2712
        %2745 = vst [vmem:[#allocation2 + $0x20] sm:$0xff] %v2713
        %2746 = vst [vmem:[#allocation2 + $0x28] sm:$0xff] %v2714
        %2747 = vst [vmem:[#allocation2 + $0x30] sm:$0xff] %v2715
        %2748 = vst [vmem:[#allocation2 + $0x38] sm:$0xff] %v2716
        %2749 = vst [vmem:[#allocation2 + $0x40] sm:$0xff] %v2717
        %2750 = vst [vmem:[#allocation2 + $0x48] sm:$0xff] %v2718
        %2751 = vst [vmem:[#allocation2 + $0x50] sm:$0xff] %v2719
        %2752 = vst [vmem:[#allocation2 + $0x58] sm:$0xff] %v2720
        %2753 = vst [vmem:[#allocation2 + $0x60] sm:$0xff] %v2721
        %2754 = vst [vmem:[#allocation2 + $0x68] sm:$0xff] %v2722
        %2755 = vst [vmem:[#allocation2 + $0x70] sm:$0xff] %v2723
        %2756 = vst [vmem:[#allocation2 + $0x78] sm:$0xff] %v2724
        %2757 = vst [vmem:[#allocation2 + $0x80] sm:$0xff] %v2725
        %2758 = vst [vmem:[#allocation2 + $0x88] sm:$0xff] %v2726
        %2759 = vst [vmem:[#allocation2 + $0x90] sm:$0xff] %v2727
        %2760 = vst [vmem:[#allocation2 + $0x98] sm:$0xff] %v2728
        %2761 = vst [vmem:[#allocation2 + $0xa0] sm:$0xff] %v2729
        %2762 = vst [vmem:[#allocation2 + $0xa8] sm:$0xff] %v2730
        %2763 = vst [vmem:[#allocation2 + $0xb0] sm:$0xff] %v2731
        %2764 = vst [vmem:[#allocation2 + $0xb8] sm:$0xff] %v2732
        %2765 = vst [vmem:[#allocation2 + $0xc0] sm:$0xff] %v2733
        %2766 = vst [vmem:[#allocation2 + $0xc8] sm:$0xff] %v2734
        %2767 = vst [vmem:[#allocation2 + $0xd0] sm:$0xff] %v2735
        %2768 = vst [vmem:[#allocation2 + $0xd8] sm:$0xff] %v2736
        %2769 = vst [vmem:[#allocation2 + $0xe0] sm:$0xff] %v2737
        %2770 = vst [vmem:[#allocation2 + $0xe8] sm:$0xff] %v2738
        %2771 = vst [vmem:[#allocation2 + $0xf0] sm:$0xff] %v2739
        %2772 = vst [vmem:[#allocation2 + $0xf8] sm:$0xff] %v2740
        %v2773 = vld [vmem:[%s1704] sm:$0xe]
        %v2774 = vld [vmem:[%s1704 + $0x4] sm:$0xf]
        %v2775 = vld [vmem:[%s1704 + $0x8] sm:$0x1]
        %v2776 = vld [vmem:[%s1704 + $0xc] sm:$0xe]
        %v2777 = vld [vmem:[%s1704 + $0x10] sm:$0xf]
        %v2778 = vld [vmem:[%s1704 + $0x14] sm:$0x1]
        %v2779 = vld [vmem:[%s1704 + $0x18] sm:$0xe]
        %v2780 = vld [vmem:[%s1704 + $0x1c] sm:$0xf]
        %v2781 = vld [vmem:[%s1704 + $0x20] sm:$0x1]
        %v2782 = vld [vmem:[%s1704 + $0x24] sm:$0xe]
        %v2783 = vld [vmem:[%s1704 + $0x28] sm:$0xf]
        %v2784 = vld [vmem:[%s1704 + $0x2c] sm:$0x1]
        %v2785 = vld [vmem:[%s1704 + $0x30] sm:$0xe]
        %v2786 = vld [vmem:[%s1704 + $0x34] sm:$0xf]
        %v2787 = vld [vmem:[%s1704 + $0x38] sm:$0x1]
        %v2788 = vld [vmem:[%s1704 + $0x3c] sm:$0xe]
        %v2789 = vld [vmem:[%s1704 + $0x40] sm:$0xf]
        %v2790 = vld [vmem:[%s1704 + $0x44] sm:$0x1]
        %v2791 = vld [vmem:[%s1704 + $0x48] sm:$0xe]
        %v2792 = vld [vmem:[%s1704 + $0x4c] sm:$0xf]
        %v2793 = vld [vmem:[%s1704 + $0x50] sm:$0x1]
        %v2794 = vld [vmem:[%s1704 + $0x54] sm:$0xe]
        %v2795 = vld [vmem:[%s1704 + $0x58] sm:$0xf]
        %v2796 = vld [vmem:[%s1704 + $0x5c] sm:$0x1]
        %v2797 = vld [vmem:[%s1704 + $0x60] sm:$0xe]
        %v2798 = vld [vmem:[%s1704 + $0x64] sm:$0xf]
        %v2799 = vld [vmem:[%s1704 + $0x68] sm:$0x1]
        %v2800 = vld [vmem:[%s1704 + $0x6c] sm:$0xe]
        %v2801 = vld [vmem:[%s1704 + $0x70] sm:$0xf]
        %v2802 = vld [vmem:[%s1704 + $0x74] sm:$0x1]
        %v2803 = vld [vmem:[%s1704 + $0x78] sm:$0xe]
        %v2804 = vld [vmem:[%s1704 + $0x7c] sm:$0xf]
        %v2805 = vld [vmem:[%s1704 + $0x80] sm:$0x1]
        %v2806 = vld [vmem:[%s1704 + $0x84] sm:$0xe]
        %v2807 = vld [vmem:[%s1704 + $0x88] sm:$0xf]
        %v2808 = vld [vmem:[%s1704 + $0x8c] sm:$0x1]
        %v2809 = vld [vmem:[%s1704 + $0x90] sm:$0xe]
        %v2810 = vld [vmem:[%s1704 + $0x94] sm:$0xf]
        %v2811 = vld [vmem:[%s1704 + $0x98] sm:$0x1]
        %v2812 = vld [vmem:[%s1704 + $0x9c] sm:$0xe]
        %v2813 = vld [vmem:[%s1704 + $0xa0] sm:$0xf]
        %v2814 = vld [vmem:[%s1704 + $0xa4] sm:$0x1]
        %v2815 = vld [vmem:[%s1704 + $0xa8] sm:$0xe]
        %v2816 = vld [vmem:[%s1704 + $0xac] sm:$0xf]
        %v2817 = vld [vmem:[%s1704 + $0xb0] sm:$0x1]
        %v2818 = vld [vmem:[%s1704 + $0xb4] sm:$0xe]
        %v2819 = vld [vmem:[%s1704 + $0xb8] sm:$0xf]
        %v2820 = vld [vmem:[%s1704 + $0xbc] sm:$0x1]
        %v2869 = vrot.slane %v2773, 5
        %v2870 = vrot.slane %v2869, 4
        %v2871 = vrot.slane %v2774, 5
        %v2872 = vsel %vm1305, %v2870, %v2871
        %v2873 = vrot.slane %v2871, 4
        %v2874 = vrot.slane %v2775, 5
        %v2875 = vsel %vm1305, %v2873, %v2874
        %v2876 = vrot.slane %v2776, 5
        %v2877 = vrot.slane %v2876, 4
        %v2878 = vrot.slane %v2777, 5
        %v2879 = vsel %vm1305, %v2877, %v2878
        %v2880 = vrot.slane %v2878, 4
        %v2881 = vrot.slane %v2778, 5
        %v2882 = vsel %vm1305, %v2880, %v2881
        %v2883 = vrot.slane %v2779, 5
        %v2884 = vrot.slane %v2883, 4
        %v2885 = vrot.slane %v2780, 5
        %v2886 = vsel %vm1305, %v2884, %v2885
        %v2887 = vrot.slane %v2885, 4
        %v2888 = vrot.slane %v2781, 5
        %v2889 = vsel %vm1305, %v2887, %v2888
        %v2890 = vrot.slane %v2782, 5
        %v2891 = vrot.slane %v2890, 4
        %v2892 = vrot.slane %v2783, 5
        %v2893 = vsel %vm1305, %v2891, %v2892
        %v2894 = vrot.slane %v2892, 4
        %v2895 = vrot.slane %v2784, 5
        %v2896 = vsel %vm1305, %v2894, %v2895
        %v2897 = vrot.slane %v2785, 5
        %v2898 = vrot.slane %v2897, 4
        %v2899 = vrot.slane %v2786, 5
        %v2900 = vsel %vm1305, %v2898, %v2899
        %v2901 = vrot.slane %v2899, 4
        %v2902 = vrot.slane %v2787, 5
        %v2903 = vsel %vm1305, %v2901, %v2902
        %v2904 = vrot.slane %v2788, 5
        %v2905 = vrot.slane %v2904, 4
        %v2906 = vrot.slane %v2789, 5
        %v2907 = vsel %vm1305, %v2905, %v2906
        %v2908 = vrot.slane %v2906, 4
        %v2909 = vrot.slane %v2790, 5
        %v2910 = vsel %vm1305, %v2908, %v2909
        %v2911 = vrot.slane %v2791, 5
        %v2912 = vrot.slane %v2911, 4
        %v2913 = vrot.slane %v2792, 5
        %v2914 = vsel %vm1305, %v2912, %v2913
        %v2915 = vrot.slane %v2913, 4
        %v2916 = vrot.slane %v2793, 5
        %v2917 = vsel %vm1305, %v2915, %v2916
        %v2918 = vrot.slane %v2794, 5
        %v2919 = vrot.slane %v2918, 4
        %v2920 = vrot.slane %v2795, 5
        %v2921 = vsel %vm1305, %v2919, %v2920
        %v2922 = vrot.slane %v2920, 4
        %v2923 = vrot.slane %v2796, 5
        %v2924 = vsel %vm1305, %v2922, %v2923
        %v2925 = vrot.slane %v2797, 5
        %v2926 = vrot.slane %v2925, 4
        %v2927 = vrot.slane %v2798, 5
        %v2928 = vsel %vm1305, %v2926, %v2927
        %v2929 = vrot.slane %v2927, 4
        %v2930 = vrot.slane %v2799, 5
        %v2931 = vsel %vm1305, %v2929, %v2930
        %v2932 = vrot.slane %v2800, 5
        %v2933 = vrot.slane %v2932, 4
        %v2934 = vrot.slane %v2801, 5
        %v2935 = vsel %vm1305, %v2933, %v2934
        %v2936 = vrot.slane %v2934, 4
        %v2937 = vrot.slane %v2802, 5
        %v2938 = vsel %vm1305, %v2936, %v2937
        %v2939 = vrot.slane %v2803, 5
        %v2940 = vrot.slane %v2939, 4
        %v2941 = vrot.slane %v2804, 5
        %v2942 = vsel %vm1305, %v2940, %v2941
        %v2943 = vrot.slane %v2941, 4
        %v2944 = vrot.slane %v2805, 5
        %v2945 = vsel %vm1305, %v2943, %v2944
        %v2946 = vrot.slane %v2806, 5
        %v2947 = vrot.slane %v2946, 4
        %v2948 = vrot.slane %v2807, 5
        %v2949 = vsel %vm1305, %v2947, %v2948
        %v2950 = vrot.slane %v2948, 4
        %v2951 = vrot.slane %v2808, 5
        %v2952 = vsel %vm1305, %v2950, %v2951
        %v2953 = vrot.slane %v2809, 5
        %v2954 = vrot.slane %v2953, 4
        %v2955 = vrot.slane %v2810, 5
        %v2956 = vsel %vm1305, %v2954, %v2955
        %v2957 = vrot.slane %v2955, 4
        %v2958 = vrot.slane %v2811, 5
        %v2959 = vsel %vm1305, %v2957, %v2958
        %v2960 = vrot.slane %v2812, 5
        %v2961 = vrot.slane %v2960, 4
        %v2962 = vrot.slane %v2813, 5
        %v2963 = vsel %vm1305, %v2961, %v2962
        %v2964 = vrot.slane %v2962, 4
        %v2965 = vrot.slane %v2814, 5
        %v2966 = vsel %vm1305, %v2964, %v2965
        %v2967 = vrot.slane %v2815, 5
        %v2968 = vrot.slane %v2967, 4
        %v2969 = vrot.slane %v2816, 5
        %v2970 = vsel %vm1305, %v2968, %v2969
        %v2971 = vrot.slane %v2969, 4
        %v2972 = vrot.slane %v2817, 5
        %v2973 = vsel %vm1305, %v2971, %v2972
        %v2974 = vrot.slane %v2818, 5
        %v2975 = vrot.slane %v2974, 4
        %v2976 = vrot.slane %v2819, 5
        %v2977 = vsel %vm1305, %v2975, %v2976
        %v2978 = vrot.slane %v2976, 4
        %v2979 = vrot.slane %v2820, 5
        %v2980 = vsel %vm1305, %v2978, %v2979
        %s2981 = scalar_lea.vmem %s1, 10
        %v2982 = vld [vmem:[%s2981] sm:$0x3]
        %v2983 = vunpack.c.l.b16 %v2872
        %v2984 = vunpack.c.l.b16 %v2875
        %v2985 = vunpack.c.l.b16 %v2879
        %v2986 = vunpack.c.l.b16 %v2882
        %v2987 = vunpack.c.l.b16 %v2886
        %v2988 = vunpack.c.l.b16 %v2889
        %v2989 = vunpack.c.l.b16 %v2893
        %v2990 = vunpack.c.l.b16 %v2896
        %v2991 = vunpack.c.l.b16 %v2900
        %v2992 = vunpack.c.l.b16 %v2903
        %v2993 = vunpack.c.l.b16 %v2907
        %v2994 = vunpack.c.l.b16 %v2910
        %v2995 = vunpack.c.l.b16 %v2914
        %v2996 = vunpack.c.l.b16 %v2917
        %v2997 = vunpack.c.l.b16 %v2921
        %v2998 = vunpack.c.l.b16 %v2924
        %v2999 = vunpack.c.l.b16 %v2928
        %v3000 = vunpack.c.l.b16 %v2931
        %v3001 = vunpack.c.l.b16 %v2935
        %v3002 = vunpack.c.l.b16 %v2938
        %v3003 = vunpack.c.l.b16 %v2942
        %v3004 = vunpack.c.l.b16 %v2945
        %v3005 = vunpack.c.l.b16 %v2949
        %v3006 = vunpack.c.l.b16 %v2952
        %v3007 = vunpack.c.l.b16 %v2956
        %v3008 = vunpack.c.l.b16 %v2959
        %v3009 = vunpack.c.l.b16 %v2963
        %v3010 = vunpack.c.l.b16 %v2966
        %v3011 = vunpack.c.l.b16 %v2970
        %v3012 = vunpack.c.l.b16 %v2973
        %v3013 = vunpack.c.l.b16 %v2977
        %v3014 = vunpack.c.l.b16 %v2980
        %v3015 = vpack.c.b16 %v2984, %v2983
        %v3016 = vpack.c.b16 %v2986, %v2985
        %v3017 = vpack.c.b16 %v2988, %v2987
        %v3018 = vpack.c.b16 %v2990, %v2989
        %v3019 = vpack.c.b16 %v2992, %v2991
        %v3020 = vpack.c.b16 %v2994, %v2993
        %v3021 = vpack.c.b16 %v2996, %v2995
        %v3022 = vpack.c.b16 %v2998, %v2997
        %v3023 = vpack.c.b16 %v3000, %v2999
        %v3024 = vpack.c.b16 %v3002, %v3001
        %v3025 = vpack.c.b16 %v3004, %v3003
        %v3026 = vpack.c.b16 %v3006, %v3005
        %v3027 = vpack.c.b16 %v3008, %v3007
        %v3028 = vpack.c.b16 %v3010, %v3009
        %v3029 = vpack.c.b16 %v3012, %v3011
        %v3030 = vpack.c.b16 %v3014, %v3013
        %v3032 = vsel %vm312, %v3015, 0
        %v3035 = vsel %vm312, %v3016, 0
        %v3038 = vsel %vm312, %v3017, 0
        %v3041 = vsel %vm312, %v3018, 0
        %v3044 = vsel %vm312, %v3019, 0
        %v3047 = vsel %vm312, %v3020, 0
        %v3050 = vsel %vm312, %v3021, 0
        %v3053 = vsel %vm312, %v3022, 0
        %v3056 = vsel %vm312, %v3023, 0
        %v3059 = vsel %vm312, %v3024, 0
        %v3062 = vsel %vm312, %v3025, 0
        %v3065 = vsel %vm312, %v3026, 0
        %v3068 = vsel %vm312, %v3027, 0
        %v3071 = vsel %vm312, %v3028, 0
        %v3074 = vsel %vm312, %v3029, 0
        %v3077 = vsel %vm312, %v3030, 0
        %v3080 = vsel %vm361, %v2982, 0
        %3082 = vmatpush.bf16.msra.mxu0 0
        %3083 = vmatpush.bf16.msra.mxu0 0
        %3084 = vmatpush.bf16.msra.mxu0 0
        %3085 = vmatpush.bf16.msra.mxu0 0
        %3086 = vmatpush.bf16.msra.mxu0 0
        %3087 = vmatpush.bf16.msra.mxu0 0
        %3088 = vmatpush.bf16.msra.mxu0 0
        %3089 = vmatpush.bf16.msra.mxu0 %v3080
        %3090 = vmatmul.bf16.gmra.mxu0 %v3032
        %v3091 = vpop.f32.mrf.mxu0
        %v3092 = vadd.f32 0.0, %v3091
        %v3093 = vpop.f32.mrf.mxu0
        %v3094 = vadd.f32 0.0, %v3093
        %3095 = vmatmul.bf16.gmra.mxu0 %v3035
        %v3096 = vpop.f32.mrf.mxu0
        %v3097 = vadd.f32 0.0, %v3096
        %v3098 = vpop.f32.mrf.mxu0
        %v3099 = vadd.f32 0.0, %v3098
        %3100 = vmatmul.bf16.gmra.mxu0 %v3038
        %v3101 = vpop.f32.mrf.mxu0
        %v3102 = vadd.f32 0.0, %v3101
        %v3103 = vpop.f32.mrf.mxu0
        %v3104 = vadd.f32 0.0, %v3103
        %3105 = vmatmul.bf16.gmra.mxu0 %v3041
        %v3106 = vpop.f32.mrf.mxu0
        %v3107 = vadd.f32 0.0, %v3106
        %v3108 = vpop.f32.mrf.mxu0
        %v3109 = vadd.f32 0.0, %v3108
        %3110 = vmatmul.bf16.gmra.mxu0 %v3044
        %v3111 = vpop.f32.mrf.mxu0
        %v3112 = vadd.f32 0.0, %v3111
        %v3113 = vpop.f32.mrf.mxu0
        %v3114 = vadd.f32 0.0, %v3113
        %3115 = vmatmul.bf16.gmra.mxu0 %v3047
        %v3116 = vpop.f32.mrf.mxu0
        %v3117 = vadd.f32 0.0, %v3116
        %v3118 = vpop.f32.mrf.mxu0
        %v3119 = vadd.f32 0.0, %v3118
        %3120 = vmatmul.bf16.gmra.mxu0 %v3050
        %v3121 = vpop.f32.mrf.mxu0
        %v3122 = vadd.f32 0.0, %v3121
        %v3123 = vpop.f32.mrf.mxu0
        %v3124 = vadd.f32 0.0, %v3123
        %3125 = vmatmul.bf16.gmra.mxu0 %v3053
        %v3126 = vpop.f32.mrf.mxu0
        %v3127 = vadd.f32 0.0, %v3126
        %v3128 = vpop.f32.mrf.mxu0
        %v3129 = vadd.f32 0.0, %v3128
        %3130 = vmatmul.bf16.gmra.mxu0 %v3056
        %v3131 = vpop.f32.mrf.mxu0
        %v3132 = vadd.f32 0.0, %v3131
        %v3133 = vpop.f32.mrf.mxu0
        %v3134 = vadd.f32 0.0, %v3133
        %3135 = vmatmul.bf16.gmra.mxu0 %v3059
        %v3136 = vpop.f32.mrf.mxu0
        %v3137 = vadd.f32 0.0, %v3136
        %v3138 = vpop.f32.mrf.mxu0
        %v3139 = vadd.f32 0.0, %v3138
        %3140 = vmatmul.bf16.gmra.mxu0 %v3062
        %v3141 = vpop.f32.mrf.mxu0
        %v3142 = vadd.f32 0.0, %v3141
        %v3143 = vpop.f32.mrf.mxu0
        %v3144 = vadd.f32 0.0, %v3143
        %3145 = vmatmul.bf16.gmra.mxu0 %v3065
        %v3146 = vpop.f32.mrf.mxu0
        %v3147 = vadd.f32 0.0, %v3146
        %v3148 = vpop.f32.mrf.mxu0
        %v3149 = vadd.f32 0.0, %v3148
        %3150 = vmatmul.bf16.gmra.mxu0 %v3068
        %v3151 = vpop.f32.mrf.mxu0
        %v3152 = vadd.f32 0.0, %v3151
        %v3153 = vpop.f32.mrf.mxu0
        %v3154 = vadd.f32 0.0, %v3153
        %3155 = vmatmul.bf16.gmra.mxu0 %v3071
        %v3156 = vpop.f32.mrf.mxu0
        %v3157 = vadd.f32 0.0, %v3156
        %v3158 = vpop.f32.mrf.mxu0
        %v3159 = vadd.f32 0.0, %v3158
        %3160 = vmatmul.bf16.gmra.mxu0 %v3074
        %v3161 = vpop.f32.mrf.mxu0
        %v3162 = vadd.f32 0.0, %v3161
        %v3163 = vpop.f32.mrf.mxu0
        %v3164 = vadd.f32 0.0, %v3163
        %3165 = vmatmul.bf16.gmra.mxu0 %v3077
        %v3166 = vpop.f32.mrf.mxu0
        %v3167 = vadd.f32 0.0, %v3166
        %v3168 = vpop.f32.mrf.mxu0
        %v3169 = vadd.f32 0.0, %v3168
        %3170 = vdwg.mxu0
        %v3171 = vld [vmem:[#allocation2] sm:$0xff]
        %v3172 = vld [vmem:[#allocation2 + $0x8] sm:$0xff]
        %v3173 = vld [vmem:[#allocation2 + $0x10] sm:$0xff]
        %v3174 = vld [vmem:[#allocation2 + $0x18] sm:$0xff]
        %v3175 = vld [vmem:[#allocation2 + $0x20] sm:$0xff]
        %v3176 = vld [vmem:[#allocation2 + $0x28] sm:$0xff]
        %v3177 = vld [vmem:[#allocation2 + $0x30] sm:$0xff]
        %v3178 = vld [vmem:[#allocation2 + $0x38] sm:$0xff]
        %v3179 = vld [vmem:[#allocation2 + $0x40] sm:$0xff]
        %v3180 = vld [vmem:[#allocation2 + $0x48] sm:$0xff]
        %v3181 = vld [vmem:[#allocation2 + $0x50] sm:$0xff]
        %v3182 = vld [vmem:[#allocation2 + $0x58] sm:$0xff]
        %v3183 = vld [vmem:[#allocation2 + $0x60] sm:$0xff]
        %v3184 = vld [vmem:[#allocation2 + $0x68] sm:$0xff]
        %v3185 = vld [vmem:[#allocation2 + $0x70] sm:$0xff]
        %v3186 = vld [vmem:[#allocation2 + $0x78] sm:$0xff]
        %v3187 = vld [vmem:[#allocation2 + $0x80] sm:$0xff]
        %v3188 = vld [vmem:[#allocation2 + $0x88] sm:$0xff]
        %v3189 = vld [vmem:[#allocation2 + $0x90] sm:$0xff]
        %v3190 = vld [vmem:[#allocation2 + $0x98] sm:$0xff]
        %v3191 = vld [vmem:[#allocation2 + $0xa0] sm:$0xff]
        %v3192 = vld [vmem:[#allocation2 + $0xa8] sm:$0xff]
        %v3193 = vld [vmem:[#allocation2 + $0xb0] sm:$0xff]
        %v3194 = vld [vmem:[#allocation2 + $0xb8] sm:$0xff]
        %v3195 = vld [vmem:[#allocation2 + $0xc0] sm:$0xff]
        %v3196 = vld [vmem:[#allocation2 + $0xc8] sm:$0xff]
        %v3197 = vld [vmem:[#allocation2 + $0xd0] sm:$0xff]
        %v3198 = vld [vmem:[#allocation2 + $0xd8] sm:$0xff]
        %v3199 = vld [vmem:[#allocation2 + $0xe0] sm:$0xff]
        %v3200 = vld [vmem:[#allocation2 + $0xe8] sm:$0xff]
        %v3201 = vld [vmem:[#allocation2 + $0xf0] sm:$0xff]
        %v3202 = vld [vmem:[#allocation2 + $0xf8] sm:$0xff]
        %v3203 = vadd.f32 %v3171, %v3092
        %v3204 = vadd.f32 %v3172, %v3094
        %v3205 = vadd.f32 %v3173, %v3097
        %v3206 = vadd.f32 %v3174, %v3099
        %v3207 = vadd.f32 %v3175, %v3102
        %v3208 = vadd.f32 %v3176, %v3104
        %v3209 = vadd.f32 %v3177, %v3107
        %v3210 = vadd.f32 %v3178, %v3109
        %v3211 = vadd.f32 %v3179, %v3112
        %v3212 = vadd.f32 %v3180, %v3114
        %v3213 = vadd.f32 %v3181, %v3117
        %v3214 = vadd.f32 %v3182, %v3119
        %v3215 = vadd.f32 %v3183, %v3122
        %v3216 = vadd.f32 %v3184, %v3124
        %v3217 = vadd.f32 %v3185, %v3127
        %v3218 = vadd.f32 %v3186, %v3129
        %v3219 = vadd.f32 %v3187, %v3132
        %v3220 = vadd.f32 %v3188, %v3134
        %v3221 = vadd.f32 %v3189, %v3137
        %v3222 = vadd.f32 %v3190, %v3139
        %v3223 = vadd.f32 %v3191, %v3142
        %v3224 = vadd.f32 %v3192, %v3144
        %v3225 = vadd.f32 %v3193, %v3147
        %v3226 = vadd.f32 %v3194, %v3149
        %v3227 = vadd.f32 %v3195, %v3152
        %v3228 = vadd.f32 %v3196, %v3154
        %v3229 = vadd.f32 %v3197, %v3157
        %v3230 = vadd.f32 %v3198, %v3159
        %v3231 = vadd.f32 %v3199, %v3162
        %v3232 = vadd.f32 %v3200, %v3164
        %v3233 = vadd.f32 %v3201, %v3167
        %v3234 = vadd.f32 %v3202, %v3169
        %3235 = vst [vmem:[#allocation2] sm:$0xff] %v3203
        %3236 = vst [vmem:[#allocation2 + $0x8] sm:$0xff] %v3204
        %3237 = vst [vmem:[#allocation2 + $0x10] sm:$0xff] %v3205
        %3238 = vst [vmem:[#allocation2 + $0x18] sm:$0xff] %v3206
        %3239 = vst [vmem:[#allocation2 + $0x20] sm:$0xff] %v3207
        %3240 = vst [vmem:[#allocation2 + $0x28] sm:$0xff] %v3208
        %3241 = vst [vmem:[#allocation2 + $0x30] sm:$0xff] %v3209
        %3242 = vst [vmem:[#allocation2 + $0x38] sm:$0xff] %v3210
        %3243 = vst [vmem:[#allocation2 + $0x40] sm:$0xff] %v3211
        %3244 = vst [vmem:[#allocation2 + $0x48] sm:$0xff] %v3212
        %3245 = vst [vmem:[#allocation2 + $0x50] sm:$0xff] %v3213
        %3246 = vst [vmem:[#allocation2 + $0x58] sm:$0xff] %v3214
        %3247 = vst [vmem:[#allocation2 + $0x60] sm:$0xff] %v3215
        %3248 = vst [vmem:[#allocation2 + $0x68] sm:$0xff] %v3216
        %3249 = vst [vmem:[#allocation2 + $0x70] sm:$0xff] %v3217
        %3250 = vst [vmem:[#allocation2 + $0x78] sm:$0xff] %v3218
        %3251 = vst [vmem:[#allocation2 + $0x80] sm:$0xff] %v3219
        %3252 = vst [vmem:[#allocation2 + $0x88] sm:$0xff] %v3220
        %3253 = vst [vmem:[#allocation2 + $0x90] sm:$0xff] %v3221
        %3254 = vst [vmem:[#allocation2 + $0x98] sm:$0xff] %v3222
        %3255 = vst [vmem:[#allocation2 + $0xa0] sm:$0xff] %v3223
        %3256 = vst [vmem:[#allocation2 + $0xa8] sm:$0xff] %v3224
        %3257 = vst [vmem:[#allocation2 + $0xb0] sm:$0xff] %v3225
        %3258 = vst [vmem:[#allocation2 + $0xb8] sm:$0xff] %v3226
        %3259 = vst [vmem:[#allocation2 + $0xc0] sm:$0xff] %v3227
        %3260 = vst [vmem:[#allocation2 + $0xc8] sm:$0xff] %v3228
        %3261 = vst [vmem:[#allocation2 + $0xd0] sm:$0xff] %v3229
        %3262 = vst [vmem:[#allocation2 + $0xd8] sm:$0xff] %v3230
        %3263 = vst [vmem:[#allocation2 + $0xe0] sm:$0xff] %v3231
        %3264 = vst [vmem:[#allocation2 + $0xe8] sm:$0xff] %v3232
        %3265 = vst [vmem:[#allocation2 + $0xf0] sm:$0xff] %v3233
        %3266 = vst [vmem:[#allocation2 + $0xf8] sm:$0xff] %v3234
        %s3267 = scalar_lea.vmem %s196, 24
        %v3268 = vld [vmem:[%s3267] sm:$0xf]
        %v3269 = vld [vmem:[%s3267 + $0x4] sm:$0xf]
        %v3270 = vld [vmem:[%s3267 + $0xc] sm:$0xf]
        %v3271 = vld [vmem:[%s3267 + $0x10] sm:$0xf]
        %v3272 = vld [vmem:[%s3267 + $0x18] sm:$0xf]
        %v3273 = vld [vmem:[%s3267 + $0x1c] sm:$0xf]
        %v3274 = vld [vmem:[%s3267 + $0x24] sm:$0xf]
        %v3275 = vld [vmem:[%s3267 + $0x28] sm:$0xf]
        %v3276 = vld [vmem:[%s3267 + $0x30] sm:$0xf]
        %v3277 = vld [vmem:[%s3267 + $0x34] sm:$0xf]
        %v3278 = vld [vmem:[%s3267 + $0x3c] sm:$0xf]
        %v3279 = vld [vmem:[%s3267 + $0x40] sm:$0xf]
        %v3280 = vld [vmem:[%s3267 + $0x48] sm:$0xf]
        %v3281 = vld [vmem:[%s3267 + $0x4c] sm:$0xf]
        %v3282 = vld [vmem:[%s3267 + $0x54] sm:$0xf]
        %v3283 = vld [vmem:[%s3267 + $0x58] sm:$0xf]
        %v3284 = vld [vmem:[%s3267 + $0x60] sm:$0xf]
        %v3285 = vld [vmem:[%s3267 + $0x64] sm:$0xf]
        %v3286 = vld [vmem:[%s3267 + $0x6c] sm:$0xf]
        %v3287 = vld [vmem:[%s3267 + $0x70] sm:$0xf]
        %v3288 = vld [vmem:[%s3267 + $0x78] sm:$0xf]
        %v3289 = vld [vmem:[%s3267 + $0x7c] sm:$0xf]
        %v3290 = vld [vmem:[%s3267 + $0x84] sm:$0xf]
        %v3291 = vld [vmem:[%s3267 + $0x88] sm:$0xf]
        %v3292 = vld [vmem:[%s3267 + $0x90] sm:$0xf]
        %v3293 = vld [vmem:[%s3267 + $0x94] sm:$0xf]
        %v3294 = vld [vmem:[%s3267 + $0x9c] sm:$0xf]
        %v3295 = vld [vmem:[%s3267 + $0xa0] sm:$0xf]
        %v3296 = vld [vmem:[%s3267 + $0xa8] sm:$0xf]
        %v3297 = vld [vmem:[%s3267 + $0xac] sm:$0xf]
        %v3298 = vld [vmem:[%s3267 + $0xb4] sm:$0xf]
        %v3299 = vld [vmem:[%s3267 + $0xb8] sm:$0xf]
        %s3300 = scalar_lea.vmem %s1, 12
        %v3301 = vld [vmem:[%s3300] sm:$0x3]
        %v3334 = vunpack.c.l.b16 %v3268
        %v3335 = vunpack.c.l.b16 %v3269
        %v3336 = vunpack.c.l.b16 %v3270
        %v3337 = vunpack.c.l.b16 %v3271
        %v3338 = vunpack.c.l.b16 %v3272
        %v3339 = vunpack.c.l.b16 %v3273
        %v3340 = vunpack.c.l.b16 %v3274
        %v3341 = vunpack.c.l.b16 %v3275
        %v3342 = vunpack.c.l.b16 %v3276
        %v3343 = vunpack.c.l.b16 %v3277
        %v3344 = vunpack.c.l.b16 %v3278
        %v3345 = vunpack.c.l.b16 %v3279
        %v3346 = vunpack.c.l.b16 %v3280
        %v3347 = vunpack.c.l.b16 %v3281
        %v3348 = vunpack.c.l.b16 %v3282
        %v3349 = vunpack.c.l.b16 %v3283
        %v3350 = vunpack.c.l.b16 %v3284
        %v3351 = vunpack.c.l.b16 %v3285
        %v3352 = vunpack.c.l.b16 %v3286
        %v3353 = vunpack.c.l.b16 %v3287
        %v3354 = vunpack.c.l.b16 %v3288
        %v3355 = vunpack.c.l.b16 %v3289
        %v3356 = vunpack.c.l.b16 %v3290
        %v3357 = vunpack.c.l.b16 %v3291
        %v3358 = vunpack.c.l.b16 %v3292
        %v3359 = vunpack.c.l.b16 %v3293
        %v3360 = vunpack.c.l.b16 %v3294
        %v3361 = vunpack.c.l.b16 %v3295
        %v3362 = vunpack.c.l.b16 %v3296
        %v3363 = vunpack.c.l.b16 %v3297
        %v3364 = vunpack.c.l.b16 %v3298
        %v3365 = vunpack.c.l.b16 %v3299
        %v3366 = vpack.c.b16 %v3335, %v3334
        %v3367 = vpack.c.b16 %v3337, %v3336
        %v3368 = vpack.c.b16 %v3339, %v3338
        %v3369 = vpack.c.b16 %v3341, %v3340
        %v3370 = vpack.c.b16 %v3343, %v3342
        %v3371 = vpack.c.b16 %v3345, %v3344
        %v3372 = vpack.c.b16 %v3347, %v3346
        %v3373 = vpack.c.b16 %v3349, %v3348
        %v3374 = vpack.c.b16 %v3351, %v3350
        %v3375 = vpack.c.b16 %v3353, %v3352
        %v3376 = vpack.c.b16 %v3355, %v3354
        %v3377 = vpack.c.b16 %v3357, %v3356
        %v3378 = vpack.c.b16 %v3359, %v3358
        %v3379 = vpack.c.b16 %v3361, %v3360
        %v3380 = vpack.c.b16 %v3363, %v3362
        %v3381 = vpack.c.b16 %v3365, %v3364
        %v3383 = vsel %vm312, %v3366, 0
        %v3386 = vsel %vm312, %v3367, 0
        %v3389 = vsel %vm312, %v3368, 0
        %v3392 = vsel %vm312, %v3369, 0
        %v3395 = vsel %vm312, %v3370, 0
        %v3398 = vsel %vm312, %v3371, 0
        %v3401 = vsel %vm312, %v3372, 0
        %v3404 = vsel %vm312, %v3373, 0
        %v3407 = vsel %vm312, %v3374, 0
        %v3410 = vsel %vm312, %v3375, 0
        %v3413 = vsel %vm312, %v3376, 0
        %v3416 = vsel %vm312, %v3377, 0
        %v3419 = vsel %vm312, %v3378, 0
        %v3422 = vsel %vm312, %v3379, 0
        %v3425 = vsel %vm312, %v3380, 0
        %v3428 = vsel %vm312, %v3381, 0
        %v3431 = vsel %vm361, %v3301, 0
        %3433 = vmatpush.bf16.msra.mxu0 0
        %3434 = vmatpush.bf16.msra.mxu0 0
        %3435 = vmatpush.bf16.msra.mxu0 0
        %3436 = vmatpush.bf16.msra.mxu0 0
        %3437 = vmatpush.bf16.msra.mxu0 0
        %3438 = vmatpush.bf16.msra.mxu0 0
        %3439 = vmatpush.bf16.msra.mxu0 0
        %3440 = vmatpush.bf16.msra.mxu0 %v3431
        %3441 = vmatmul.bf16.gmra.mxu0 %v3383
        %v3442 = vpop.f32.mrf.mxu0
        %v3443 = vadd.f32 0.0, %v3442
        %v3444 = vpop.f32.mrf.mxu0
        %v3445 = vadd.f32 0.0, %v3444
        %3446 = vmatmul.bf16.gmra.mxu0 %v3386
        %v3447 = vpop.f32.mrf.mxu0
        %v3448 = vadd.f32 0.0, %v3447
        %v3449 = vpop.f32.mrf.mxu0
        %v3450 = vadd.f32 0.0, %v3449
        %3451 = vmatmul.bf16.gmra.mxu0 %v3389
        %v3452 = vpop.f32.mrf.mxu0
        %v3453 = vadd.f32 0.0, %v3452
        %v3454 = vpop.f32.mrf.mxu0
        %v3455 = vadd.f32 0.0, %v3454
        %3456 = vmatmul.bf16.gmra.mxu0 %v3392
        %v3457 = vpop.f32.mrf.mxu0
        %v3458 = vadd.f32 0.0, %v3457
        %v3459 = vpop.f32.mrf.mxu0
        %v3460 = vadd.f32 0.0, %v3459
        %3461 = vmatmul.bf16.gmra.mxu0 %v3395
        %v3462 = vpop.f32.mrf.mxu0
        %v3463 = vadd.f32 0.0, %v3462
        %v3464 = vpop.f32.mrf.mxu0
        %v3465 = vadd.f32 0.0, %v3464
        %3466 = vmatmul.bf16.gmra.mxu0 %v3398
        %v3467 = vpop.f32.mrf.mxu0
        %v3468 = vadd.f32 0.0, %v3467
        %v3469 = vpop.f32.mrf.mxu0
        %v3470 = vadd.f32 0.0, %v3469
        %3471 = vmatmul.bf16.gmra.mxu0 %v3401
        %v3472 = vpop.f32.mrf.mxu0
        %v3473 = vadd.f32 0.0, %v3472
        %v3474 = vpop.f32.mrf.mxu0
        %v3475 = vadd.f32 0.0, %v3474
        %3476 = vmatmul.bf16.gmra.mxu0 %v3404
        %v3477 = vpop.f32.mrf.mxu0
        %v3478 = vadd.f32 0.0, %v3477
        %v3479 = vpop.f32.mrf.mxu0
        %v3480 = vadd.f32 0.0, %v3479
        %3481 = vmatmul.bf16.gmra.mxu0 %v3407
        %v3482 = vpop.f32.mrf.mxu0
        %v3483 = vadd.f32 0.0, %v3482
        %v3484 = vpop.f32.mrf.mxu0
        %v3485 = vadd.f32 0.0, %v3484
        %3486 = vmatmul.bf16.gmra.mxu0 %v3410
        %v3487 = vpop.f32.mrf.mxu0
        %v3488 = vadd.f32 0.0, %v3487
        %v3489 = vpop.f32.mrf.mxu0
        %v3490 = vadd.f32 0.0, %v3489
        %3491 = vmatmul.bf16.gmra.mxu0 %v3413
        %v3492 = vpop.f32.mrf.mxu0
        %v3493 = vadd.f32 0.0, %v3492
        %v3494 = vpop.f32.mrf.mxu0
        %v3495 = vadd.f32 0.0, %v3494
        %3496 = vmatmul.bf16.gmra.mxu0 %v3416
        %v3497 = vpop.f32.mrf.mxu0
        %v3498 = vadd.f32 0.0, %v3497
        %v3499 = vpop.f32.mrf.mxu0
        %v3500 = vadd.f32 0.0, %v3499
        %3501 = vmatmul.bf16.gmra.mxu0 %v3419
        %v3502 = vpop.f32.mrf.mxu0
        %v3503 = vadd.f32 0.0, %v3502
        %v3504 = vpop.f32.mrf.mxu0
        %v3505 = vadd.f32 0.0, %v3504
        %3506 = vmatmul.bf16.gmra.mxu0 %v3422
        %v3507 = vpop.f32.mrf.mxu0
        %v3508 = vadd.f32 0.0, %v3507
        %v3509 = vpop.f32.mrf.mxu0
        %v3510 = vadd.f32 0.0, %v3509
        %3511 = vmatmul.bf16.gmra.mxu0 %v3425
        %v3512 = vpop.f32.mrf.mxu0
        %v3513 = vadd.f32 0.0, %v3512
        %v3514 = vpop.f32.mrf.mxu0
        %v3515 = vadd.f32 0.0, %v3514
        %3516 = vmatmul.bf16.gmra.mxu0 %v3428
        %v3517 = vpop.f32.mrf.mxu0
        %v3518 = vadd.f32 0.0, %v3517
        %v3519 = vpop.f32.mrf.mxu0
        %v3520 = vadd.f32 0.0, %v3519
        %3521 = vdwg.mxu0
        %v3522 = vld [vmem:[#allocation2] sm:$0xff]
        %v3523 = vld [vmem:[#allocation2 + $0x8] sm:$0xff]
        %v3524 = vld [vmem:[#allocation2 + $0x10] sm:$0xff]
        %v3525 = vld [vmem:[#allocation2 + $0x18] sm:$0xff]
        %v3526 = vld [vmem:[#allocation2 + $0x20] sm:$0xff]
        %v3527 = vld [vmem:[#allocation2 + $0x28] sm:$0xff]
        %v3528 = vld [vmem:[#allocation2 + $0x30] sm:$0xff]
        %v3529 = vld [vmem:[#allocation2 + $0x38] sm:$0xff]
        %v3530 = vld [vmem:[#allocation2 + $0x40] sm:$0xff]
        %v3531 = vld [vmem:[#allocation2 + $0x48] sm:$0xff]
        %v3532 = vld [vmem:[#allocation2 + $0x50] sm:$0xff]
        %v3533 = vld [vmem:[#allocation2 + $0x58] sm:$0xff]
        %v3534 = vld [vmem:[#allocation2 + $0x60] sm:$0xff]
        %v3535 = vld [vmem:[#allocation2 + $0x68] sm:$0xff]
        %v3536 = vld [vmem:[#allocation2 + $0x70] sm:$0xff]
        %v3537 = vld [vmem:[#allocation2 + $0x78] sm:$0xff]
        %v3538 = vld [vmem:[#allocation2 + $0x80] sm:$0xff]
        %v3539 = vld [vmem:[#allocation2 + $0x88] sm:$0xff]
        %v3540 = vld [vmem:[#allocation2 + $0x90] sm:$0xff]
        %v3541 = vld [vmem:[#allocation2 + $0x98] sm:$0xff]
        %v3542 = vld [vmem:[#allocation2 + $0xa0] sm:$0xff]
        %v3543 = vld [vmem:[#allocation2 + $0xa8] sm:$0xff]
        %v3544 = vld [vmem:[#allocation2 + $0xb0] sm:$0xff]
        %v3545 = vld [vmem:[#allocation2 + $0xb8] sm:$0xff]
        %v3546 = vld [vmem:[#allocation2 + $0xc0] sm:$0xff]
        %v3547 = vld [vmem:[#allocation2 + $0xc8] sm:$0xff]
        %v3548 = vld [vmem:[#allocation2 + $0xd0] sm:$0xff]
        %v3549 = vld [vmem:[#allocation2 + $0xd8] sm:$0xff]
        %v3550 = vld [vmem:[#allocation2 + $0xe0] sm:$0xff]
        %v3551 = vld [vmem:[#allocation2 + $0xe8] sm:$0xff]
        %v3552 = vld [vmem:[#allocation2 + $0xf0] sm:$0xff]
        %v3553 = vld [vmem:[#allocation2 + $0xf8] sm:$0xff]
        %v3554 = vadd.f32 %v3522, %v3443
        %v3555 = vadd.f32 %v3523, %v3445
        %v3556 = vadd.f32 %v3524, %v3448
        %v3557 = vadd.f32 %v3525, %v3450
        %v3558 = vadd.f32 %v3526, %v3453
        %v3559 = vadd.f32 %v3527, %v3455
        %v3560 = vadd.f32 %v3528, %v3458
        %v3561 = vadd.f32 %v3529, %v3460
        %v3562 = vadd.f32 %v3530, %v3463
        %v3563 = vadd.f32 %v3531, %v3465
        %v3564 = vadd.f32 %v3532, %v3468
        %v3565 = vadd.f32 %v3533, %v3470
        %v3566 = vadd.f32 %v3534, %v3473
        %v3567 = vadd.f32 %v3535, %v3475
        %v3568 = vadd.f32 %v3536, %v3478
        %v3569 = vadd.f32 %v3537, %v3480
        %v3570 = vadd.f32 %v3538, %v3483
        %v3571 = vadd.f32 %v3539, %v3485
        %v3572 = vadd.f32 %v3540, %v3488
        %v3573 = vadd.f32 %v3541, %v3490
        %v3574 = vadd.f32 %v3542, %v3493
        %v3575 = vadd.f32 %v3543, %v3495
        %v3576 = vadd.f32 %v3544, %v3498
        %v3577 = vadd.f32 %v3545, %v3500
        %v3578 = vadd.f32 %v3546, %v3503
        %v3579 = vadd.f32 %v3547, %v3505
        %v3580 = vadd.f32 %v3548, %v3508
        %v3581 = vadd.f32 %v3549, %v3510
        %v3582 = vadd.f32 %v3550, %v3513
        %v3583 = vadd.f32 %v3551, %v3515
        %v3584 = vadd.f32 %v3552, %v3518
        %v3585 = vadd.f32 %v3553, %v3520
        %3586 = vst [vmem:[#allocation2] sm:$0xff] %v3554
        %3587 = vst [vmem:[#allocation2 + $0x8] sm:$0xff] %v3555
        %3588 = vst [vmem:[#allocation2 + $0x10] sm:$0xff] %v3556
        %3589 = vst [vmem:[#allocation2 + $0x18] sm:$0xff] %v3557
        %3590 = vst [vmem:[#allocation2 + $0x20] sm:$0xff] %v3558
        %3591 = vst [vmem:[#allocation2 + $0x28] sm:$0xff] %v3559
        %3592 = vst [vmem:[#allocation2 + $0x30] sm:$0xff] %v3560
        %3593 = vst [vmem:[#allocation2 + $0x38] sm:$0xff] %v3561
        %3594 = vst [vmem:[#allocation2 + $0x40] sm:$0xff] %v3562
        %3595 = vst [vmem:[#allocation2 + $0x48] sm:$0xff] %v3563
        %3596 = vst [vmem:[#allocation2 + $0x50] sm:$0xff] %v3564
        %3597 = vst [vmem:[#allocation2 + $0x58] sm:$0xff] %v3565
        %3598 = vst [vmem:[#allocation2 + $0x60] sm:$0xff] %v3566
        %3599 = vst [vmem:[#allocation2 + $0x68] sm:$0xff] %v3567
        %3600 = vst [vmem:[#allocation2 + $0x70] sm:$0xff] %v3568
        %3601 = vst [vmem:[#allocation2 + $0x78] sm:$0xff] %v3569
        %3602 = vst [vmem:[#allocation2 + $0x80] sm:$0xff] %v3570
        %3603 = vst [vmem:[#allocation2 + $0x88] sm:$0xff] %v3571
        %3604 = vst [vmem:[#allocation2 + $0x90] sm:$0xff] %v3572
        %3605 = vst [vmem:[#allocation2 + $0x98] sm:$0xff] %v3573
        %3606 = vst [vmem:[#allocation2 + $0xa0] sm:$0xff] %v3574
        %3607 = vst [vmem:[#allocation2 + $0xa8] sm:$0xff] %v3575
        %3608 = vst [vmem:[#allocation2 + $0xb0] sm:$0xff] %v3576
        %3609 = vst [vmem:[#allocation2 + $0xb8] sm:$0xff] %v3577
        %3610 = vst [vmem:[#allocation2 + $0xc0] sm:$0xff] %v3578
        %3611 = vst [vmem:[#allocation2 + $0xc8] sm:$0xff] %v3579
        %3612 = vst [vmem:[#allocation2 + $0xd0] sm:$0xff] %v3580
        %3613 = vst [vmem:[#allocation2 + $0xd8] sm:$0xff] %v3581
        %3614 = vst [vmem:[#allocation2 + $0xe0] sm:$0xff] %v3582
        %3615 = vst [vmem:[#allocation2 + $0xe8] sm:$0xff] %v3583
        %3616 = vst [vmem:[#allocation2 + $0xf0] sm:$0xff] %v3584
        %3617 = vst [vmem:[#allocation2 + $0xf8] sm:$0xff] %v3585
        %v3618 = vld [vmem:[%s3267] sm:$0xf]
        %v3619 = vld [vmem:[%s3267 + $0x4] sm:$0xf]
        %v3620 = vld [vmem:[%s3267 + $0x8] sm:$0x1]
        %v3621 = vld [vmem:[%s3267 + $0xc] sm:$0xf]
        %v3622 = vld [vmem:[%s3267 + $0x10] sm:$0xf]
        %v3623 = vld [vmem:[%s3267 + $0x14] sm:$0x1]
        %v3624 = vld [vmem:[%s3267 + $0x18] sm:$0xf]
        %v3625 = vld [vmem:[%s3267 + $0x1c] sm:$0xf]
        %v3626 = vld [vmem:[%s3267 + $0x20] sm:$0x1]
        %v3627 = vld [vmem:[%s3267 + $0x24] sm:$0xf]
        %v3628 = vld [vmem:[%s3267 + $0x28] sm:$0xf]
        %v3629 = vld [vmem:[%s3267 + $0x2c] sm:$0x1]
        %v3630 = vld [vmem:[%s3267 + $0x30] sm:$0xf]
        %v3631 = vld [vmem:[%s3267 + $0x34] sm:$0xf]
        %v3632 = vld [vmem:[%s3267 + $0x38] sm:$0x1]
        %v3633 = vld [vmem:[%s3267 + $0x3c] sm:$0xf]
        %v3634 = vld [vmem:[%s3267 + $0x40] sm:$0xf]
        %v3635 = vld [vmem:[%s3267 + $0x44] sm:$0x1]
        %v3636 = vld [vmem:[%s3267 + $0x48] sm:$0xf]
        %v3637 = vld [vmem:[%s3267 + $0x4c] sm:$0xf]
        %v3638 = vld [vmem:[%s3267 + $0x50] sm:$0x1]
        %v3639 = vld [vmem:[%s3267 + $0x54] sm:$0xf]
        %v3640 = vld [vmem:[%s3267 + $0x58] sm:$0xf]
        %v3641 = vld [vmem:[%s3267 + $0x5c] sm:$0x1]
        %v3642 = vld [vmem:[%s3267 + $0x60] sm:$0xf]
        %v3643 = vld [vmem:[%s3267 + $0x64] sm:$0xf]
        %v3644 = vld [vmem:[%s3267 + $0x68] sm:$0x1]
        %v3645 = vld [vmem:[%s3267 + $0x6c] sm:$0xf]
        %v3646 = vld [vmem:[%s3267 + $0x70] sm:$0xf]
        %v3647 = vld [vmem:[%s3267 + $0x74] sm:$0x1]
        %v3648 = vld [vmem:[%s3267 + $0x78] sm:$0xf]
        %v3649 = vld [vmem:[%s3267 + $0x7c] sm:$0xf]
        %v3650 = vld [vmem:[%s3267 + $0x80] sm:$0x1]
        %v3651 = vld [vmem:[%s3267 + $0x84] sm:$0xf]
        %v3652 = vld [vmem:[%s3267 + $0x88] sm:$0xf]
        %v3653 = vld [vmem:[%s3267 + $0x8c] sm:$0x1]
        %v3654 = vld [vmem:[%s3267 + $0x90] sm:$0xf]
        %v3655 = vld [vmem:[%s3267 + $0x94] sm:$0xf]
        %v3656 = vld [vmem:[%s3267 + $0x98] sm:$0x1]
        %v3657 = vld [vmem:[%s3267 + $0x9c] sm:$0xf]
        %v3658 = vld [vmem:[%s3267 + $0xa0] sm:$0xf]
        %v3659 = vld [vmem:[%s3267 + $0xa4] sm:$0x1]
        %v3660 = vld [vmem:[%s3267 + $0xa8] sm:$0xf]
        %v3661 = vld [vmem:[%s3267 + $0xac] sm:$0xf]
        %v3662 = vld [vmem:[%s3267 + $0xb0] sm:$0x1]
        %v3663 = vld [vmem:[%s3267 + $0xb4] sm:$0xf]
        %v3664 = vld [vmem:[%s3267 + $0xb8] sm:$0xf]
        %v3665 = vld [vmem:[%s3267 + $0xbc] sm:$0x1]
        %v3667 = vshrl.u32 %v3618, 16
        %v3669 = vrot.slane %v3667, 4
        %v3670 = vshll.u32 %v3618, 16
        %v3672 = vrot.slane %v3670, 5
        %v3673 = vor.u32 %v3669, %v3672
        %v3674 = vrot.slane %v3673, 4
        %v3676 = vshll.u32 %v3619, 16
        %v3678 = vrot.slane %v3676, 5
        %v3679 = vsel %vm536, %v3674, %v3678
        %v3680 = vshrl.u32 %v3619, 16
        %v3682 = vrot.slane %v3680, 4
        %v3683 = vor.u32 %v3682, %v3678
        %v3684 = vrot.slane %v3683, 4
        %v3686 = vshll.u32 %v3620, 16
        %v3688 = vrot.slane %v3686, 5
        %v3689 = vsel %vm536, %v3684, %v3688
        %v3691 = vshrl.u32 %v3621, 16
        %v3693 = vrot.slane %v3691, 4
        %v3694 = vshll.u32 %v3621, 16
        %v3696 = vrot.slane %v3694, 5
        %v3697 = vor.u32 %v3693, %v3696
        %v3698 = vrot.slane %v3697, 4
        %v3700 = vshll.u32 %v3622, 16
        %v3702 = vrot.slane %v3700, 5
        %v3703 = vsel %vm536, %v3698, %v3702
        %v3704 = vshrl.u32 %v3622, 16
        %v3706 = vrot.slane %v3704, 4
        %v3707 = vor.u32 %v3706, %v3702
        %v3708 = vrot.slane %v3707, 4
        %v3710 = vshll.u32 %v3623, 16
        %v3712 = vrot.slane %v3710, 5
        %v3713 = vsel %vm536, %v3708, %v3712
        %v3715 = vshrl.u32 %v3624, 16
        %v3717 = vrot.slane %v3715, 4
        %v3718 = vshll.u32 %v3624, 16
        %v3720 = vrot.slane %v3718, 5
        %v3721 = vor.u32 %v3717, %v3720
        %v3722 = vrot.slane %v3721, 4
        %v3724 = vshll.u32 %v3625, 16
        %v3726 = vrot.slane %v3724, 5
        %v3727 = vsel %vm536, %v3722, %v3726
        %v3728 = vshrl.u32 %v3625, 16
        %v3730 = vrot.slane %v3728, 4
        %v3731 = vor.u32 %v3730, %v3726
        %v3732 = vrot.slane %v3731, 4
        %v3734 = vshll.u32 %v3626, 16
        %v3736 = vrot.slane %v3734, 5
        %v3737 = vsel %vm536, %v3732, %v3736
        %v3739 = vshrl.u32 %v3627, 16
        %v3741 = vrot.slane %v3739, 4
        %v3742 = vshll.u32 %v3627, 16
        %v3744 = vrot.slane %v3742, 5
        %v3745 = vor.u32 %v3741, %v3744
        %v3746 = vrot.slane %v3745, 4
        %v3748 = vshll.u32 %v3628, 16
        %v3750 = vrot.slane %v3748, 5
        %v3751 = vsel %vm536, %v3746, %v3750
        %v3752 = vshrl.u32 %v3628, 16
        %v3754 = vrot.slane %v3752, 4
        %v3755 = vor.u32 %v3754, %v3750
        %v3756 = vrot.slane %v3755, 4
        %v3758 = vshll.u32 %v3629, 16
        %v3760 = vrot.slane %v3758, 5
        %v3761 = vsel %vm536, %v3756, %v3760
        %v3763 = vshrl.u32 %v3630, 16
        %v3765 = vrot.slane %v3763, 4
        %v3766 = vshll.u32 %v3630, 16
        %v3768 = vrot.slane %v3766, 5
        %v3769 = vor.u32 %v3765, %v3768
        %v3770 = vrot.slane %v3769, 4
        %v3772 = vshll.u32 %v3631, 16
        %v3774 = vrot.slane %v3772, 5
        %v3775 = vsel %vm536, %v3770, %v3774
        %v3776 = vshrl.u32 %v3631, 16
        %v3778 = vrot.slane %v3776, 4
        %v3779 = vor.u32 %v3778, %v3774
        %v3780 = vrot.slane %v3779, 4
        %v3782 = vshll.u32 %v3632, 16
        %v3784 = vrot.slane %v3782, 5
        %v3785 = vsel %vm536, %v3780, %v3784
        %v3787 = vshrl.u32 %v3633, 16
        %v3789 = vrot.slane %v3787, 4
        %v3790 = vshll.u32 %v3633, 16
        %v3792 = vrot.slane %v3790, 5
        %v3793 = vor.u32 %v3789, %v3792
        %v3794 = vrot.slane %v3793, 4
        %v3796 = vshll.u32 %v3634, 16
        %v3798 = vrot.slane %v3796, 5
        %v3799 = vsel %vm536, %v3794, %v3798
        %v3800 = vshrl.u32 %v3634, 16
        %v3802 = vrot.slane %v3800, 4
        %v3803 = vor.u32 %v3802, %v3798
        %v3804 = vrot.slane %v3803, 4
        %v3806 = vshll.u32 %v3635, 16
        %v3808 = vrot.slane %v3806, 5
        %v3809 = vsel %vm536, %v3804, %v3808
        %v3811 = vshrl.u32 %v3636, 16
        %v3813 = vrot.slane %v3811, 4
        %v3814 = vshll.u32 %v3636, 16
        %v3816 = vrot.slane %v3814, 5
        %v3817 = vor.u32 %v3813, %v3816
        %v3818 = vrot.slane %v3817, 4
        %v3820 = vshll.u32 %v3637, 16
        %v3822 = vrot.slane %v3820, 5
        %v3823 = vsel %vm536, %v3818, %v3822
        %v3824 = vshrl.u32 %v3637, 16
        %v3826 = vrot.slane %v3824, 4
        %v3827 = vor.u32 %v3826, %v3822
        %v3828 = vrot.slane %v3827, 4
        %v3830 = vshll.u32 %v3638, 16
        %v3832 = vrot.slane %v3830, 5
        %v3833 = vsel %vm536, %v3828, %v3832
        %v3835 = vshrl.u32 %v3639, 16
        %v3837 = vrot.slane %v3835, 4
        %v3838 = vshll.u32 %v3639, 16
        %v3840 = vrot.slane %v3838, 5
        %v3841 = vor.u32 %v3837, %v3840
        %v3842 = vrot.slane %v3841, 4
        %v3844 = vshll.u32 %v3640, 16
        %v3846 = vrot.slane %v3844, 5
        %v3847 = vsel %vm536, %v3842, %v3846
        %v3848 = vshrl.u32 %v3640, 16
        %v3850 = vrot.slane %v3848, 4
        %v3851 = vor.u32 %v3850, %v3846
        %v3852 = vrot.slane %v3851, 4
        %v3854 = vshll.u32 %v3641, 16
        %v3856 = vrot.slane %v3854, 5
        %v3857 = vsel %vm536, %v3852, %v3856
        %v3859 = vshrl.u32 %v3642, 16
        %v3861 = vrot.slane %v3859, 4
        %v3862 = vshll.u32 %v3642, 16
        %v3864 = vrot.slane %v3862, 5
        %v3865 = vor.u32 %v3861, %v3864
        %v3866 = vrot.slane %v3865, 4
        %v3868 = vshll.u32 %v3643, 16
        %v3870 = vrot.slane %v3868, 5
        %v3871 = vsel %vm536, %v3866, %v3870
        %v3872 = vshrl.u32 %v3643, 16
        %v3874 = vrot.slane %v3872, 4
        %v3875 = vor.u32 %v3874, %v3870
        %v3876 = vrot.slane %v3875, 4
        %v3878 = vshll.u32 %v3644, 16
        %v3880 = vrot.slane %v3878, 5
        %v3881 = vsel %vm536, %v3876, %v3880
        %v3883 = vshrl.u32 %v3645, 16
        %v3885 = vrot.slane %v3883, 4
        %v3886 = vshll.u32 %v3645, 16
        %v3888 = vrot.slane %v3886, 5
        %v3889 = vor.u32 %v3885, %v3888
        %v3890 = vrot.slane %v3889, 4
        %v3892 = vshll.u32 %v3646, 16
        %v3894 = vrot.slane %v3892, 5
        %v3895 = vsel %vm536, %v3890, %v3894
        %v3896 = vshrl.u32 %v3646, 16
        %v3898 = vrot.slane %v3896, 4
        %v3899 = vor.u32 %v3898, %v3894
        %v3900 = vrot.slane %v3899, 4
        %v3902 = vshll.u32 %v3647, 16
        %v3904 = vrot.slane %v3902, 5
        %v3905 = vsel %vm536, %v3900, %v3904
        %v3907 = vshrl.u32 %v3648, 16
        %v3909 = vrot.slane %v3907, 4
        %v3910 = vshll.u32 %v3648, 16
        %v3912 = vrot.slane %v3910, 5
        %v3913 = vor.u32 %v3909, %v3912
        %v3914 = vrot.slane %v3913, 4
        %v3916 = vshll.u32 %v3649, 16
        %v3918 = vrot.slane %v3916, 5
        %v3919 = vsel %vm536, %v3914, %v3918
        %v3920 = vshrl.u32 %v3649, 16
        %v3922 = vrot.slane %v3920, 4
        %v3923 = vor.u32 %v3922, %v3918
        %v3924 = vrot.slane %v3923, 4
        %v3926 = vshll.u32 %v3650, 16
        %v3928 = vrot.slane %v3926, 5
        %v3929 = vsel %vm536, %v3924, %v3928
        %v3931 = vshrl.u32 %v3651, 16
        %v3933 = vrot.slane %v3931, 4
        %v3934 = vshll.u32 %v3651, 16
        %v3936 = vrot.slane %v3934, 5
        %v3937 = vor.u32 %v3933, %v3936
        %v3938 = vrot.slane %v3937, 4
        %v3940 = vshll.u32 %v3652, 16
        %v3942 = vrot.slane %v3940, 5
        %v3943 = vsel %vm536, %v3938, %v3942
        %v3944 = vshrl.u32 %v3652, 16
        %v3946 = vrot.slane %v3944, 4
        %v3947 = vor.u32 %v3946, %v3942
        %v3948 = vrot.slane %v3947, 4
        %v3950 = vshll.u32 %v3653, 16
        %v3952 = vrot.slane %v3950, 5
        %v3953 = vsel %vm536, %v3948, %v3952
        %v3955 = vshrl.u32 %v3654, 16
        %v3957 = vrot.slane %v3955, 4
        %v3958 = vshll.u32 %v3654, 16
        %v3960 = vrot.slane %v3958, 5
        %v3961 = vor.u32 %v3957, %v3960
        %v3962 = vrot.slane %v3961, 4
        %v3964 = vshll.u32 %v3655, 16
        %v3966 = vrot.slane %v3964, 5
        %v3967 = vsel %vm536, %v3962, %v3966
        %v3968 = vshrl.u32 %v3655, 16
        %v3970 = vrot.slane %v3968, 4
        %v3971 = vor.u32 %v3970, %v3966
        %v3972 = vrot.slane %v3971, 4
        %v3974 = vshll.u32 %v3656, 16
        %v3976 = vrot.slane %v3974, 5
        %v3977 = vsel %vm536, %v3972, %v3976
        %v3979 = vshrl.u32 %v3657, 16
        %v3981 = vrot.slane %v3979, 4
        %v3982 = vshll.u32 %v3657, 16
        %v3984 = vrot.slane %v3982, 5
        %v3985 = vor.u32 %v3981, %v3984
        %v3986 = vrot.slane %v3985, 4
        %v3988 = vshll.u32 %v3658, 16
        %v3990 = vrot.slane %v3988, 5
        %v3991 = vsel %vm536, %v3986, %v3990
        %v3992 = vshrl.u32 %v3658, 16
        %v3994 = vrot.slane %v3992, 4
        %v3995 = vor.u32 %v3994, %v3990
        %v3996 = vrot.slane %v3995, 4
        %v3998 = vshll.u32 %v3659, 16
        %v4000 = vrot.slane %v3998, 5
        %v4001 = vsel %vm536, %v3996, %v4000
        %v4003 = vshrl.u32 %v3660, 16
        %v4005 = vrot.slane %v4003, 4
        %v4006 = vshll.u32 %v3660, 16
        %v4008 = vrot.slane %v4006, 5
        %v4009 = vor.u32 %v4005, %v4008
        %v4010 = vrot.slane %v4009, 4
        %v4012 = vshll.u32 %v3661, 16
        %v4014 = vrot.slane %v4012, 5
        %v4015 = vsel %vm536, %v4010, %v4014
        %v4016 = vshrl.u32 %v3661, 16
        %v4018 = vrot.slane %v4016, 4
        %v4019 = vor.u32 %v4018, %v4014
        %v4020 = vrot.slane %v4019, 4
        %v4022 = vshll.u32 %v3662, 16
        %v4024 = vrot.slane %v4022, 5
        %v4025 = vsel %vm536, %v4020, %v4024
        %v4027 = vshrl.u32 %v3663, 16
        %v4029 = vrot.slane %v4027, 4
        %v4030 = vshll.u32 %v3663, 16
        %v4032 = vrot.slane %v4030, 5
        %v4033 = vor.u32 %v4029, %v4032
        %v4034 = vrot.slane %v4033, 4
        %v4036 = vshll.u32 %v3664, 16
        %v4038 = vrot.slane %v4036, 5
        %v4039 = vsel %vm536, %v4034, %v4038
        %v4040 = vshrl.u32 %v3664, 16
        %v4042 = vrot.slane %v4040, 4
        %v4043 = vor.u32 %v4042, %v4038
        %v4044 = vrot.slane %v4043, 4
        %v4046 = vshll.u32 %v3665, 16
        %v4048 = vrot.slane %v4046, 5
        %v4049 = vsel %vm536, %v4044, %v4048
        %s4050 = scalar_lea.vmem %s1, 14
        %v4051 = vld [vmem:[%s4050] sm:$0x3]
        %v4052 = vunpack.c.l.b16 %v3679
        %v4053 = vunpack.c.l.b16 %v3689
        %v4054 = vunpack.c.l.b16 %v3703
        %v4055 = vunpack.c.l.b16 %v3713
        %v4056 = vunpack.c.l.b16 %v3727
        %v4057 = vunpack.c.l.b16 %v3737
        %v4058 = vunpack.c.l.b16 %v3751
        %v4059 = vunpack.c.l.b16 %v3761
        %v4060 = vunpack.c.l.b16 %v3775
        %v4061 = vunpack.c.l.b16 %v3785
        %v4062 = vunpack.c.l.b16 %v3799
        %v4063 = vunpack.c.l.b16 %v3809
        %v4064 = vunpack.c.l.b16 %v3823
        %v4065 = vunpack.c.l.b16 %v3833
        %v4066 = vunpack.c.l.b16 %v3847
        %v4067 = vunpack.c.l.b16 %v3857
        %v4068 = vunpack.c.l.b16 %v3871
        %v4069 = vunpack.c.l.b16 %v3881
        %v4070 = vunpack.c.l.b16 %v3895
        %v4071 = vunpack.c.l.b16 %v3905
        %v4072 = vunpack.c.l.b16 %v3919
        %v4073 = vunpack.c.l.b16 %v3929
        %v4074 = vunpack.c.l.b16 %v3943
        %v4075 = vunpack.c.l.b16 %v3953
        %v4076 = vunpack.c.l.b16 %v3967
        %v4077 = vunpack.c.l.b16 %v3977
        %v4078 = vunpack.c.l.b16 %v3991
        %v4079 = vunpack.c.l.b16 %v4001
        %v4080 = vunpack.c.l.b16 %v4015
        %v4081 = vunpack.c.l.b16 %v4025
        %v4082 = vunpack.c.l.b16 %v4039
        %v4083 = vunpack.c.l.b16 %v4049
        %v4084 = vpack.c.b16 %v4053, %v4052
        %v4085 = vpack.c.b16 %v4055, %v4054
        %v4086 = vpack.c.b16 %v4057, %v4056
        %v4087 = vpack.c.b16 %v4059, %v4058
        %v4088 = vpack.c.b16 %v4061, %v4060
        %v4089 = vpack.c.b16 %v4063, %v4062
        %v4090 = vpack.c.b16 %v4065, %v4064
        %v4091 = vpack.c.b16 %v4067, %v4066
        %v4092 = vpack.c.b16 %v4069, %v4068
        %v4093 = vpack.c.b16 %v4071, %v4070
        %v4094 = vpack.c.b16 %v4073, %v4072
        %v4095 = vpack.c.b16 %v4075, %v4074
        %v4096 = vpack.c.b16 %v4077, %v4076
        %v4097 = vpack.c.b16 %v4079, %v4078
        %v4098 = vpack.c.b16 %v4081, %v4080
        %v4099 = vpack.c.b16 %v4083, %v4082
        %v4101 = vsel %vm312, %v4084, 0
        %v4104 = vsel %vm312, %v4085, 0
        %v4107 = vsel %vm312, %v4086, 0
        %v4110 = vsel %vm312, %v4087, 0
        %v4113 = vsel %vm312, %v4088, 0
        %v4116 = vsel %vm312, %v4089, 0
        %v4119 = vsel %vm312, %v4090, 0
        %v4122 = vsel %vm312, %v4091, 0
        %v4125 = vsel %vm312, %v4092, 0
        %v4128 = vsel %vm312, %v4093, 0
        %v4131 = vsel %vm312, %v4094, 0
        %v4134 = vsel %vm312, %v4095, 0
        %v4137 = vsel %vm312, %v4096, 0
        %v4140 = vsel %vm312, %v4097, 0
        %v4143 = vsel %vm312, %v4098, 0
        %v4146 = vsel %vm312, %v4099, 0
        %v4149 = vsel %vm361, %v4051, 0
        %4151 = vmatpush.bf16.msra.mxu0 0
        %4152 = vmatpush.bf16.msra.mxu0 0
        %4153 = vmatpush.bf16.msra.mxu0 0
        %4154 = vmatpush.bf16.msra.mxu0 0
        %4155 = vmatpush.bf16.msra.mxu0 0
        %4156 = vmatpush.bf16.msra.mxu0 0
        %4157 = vmatpush.bf16.msra.mxu0 0
        %4158 = vmatpush.bf16.msra.mxu0 %v4149
        %4159 = vmatmul.bf16.gmra.mxu0 %v4101
        %v4160 = vpop.f32.mrf.mxu0
        %v4161 = vadd.f32 0.0, %v4160
        %v4162 = vpop.f32.mrf.mxu0
        %v4163 = vadd.f32 0.0, %v4162
        %4164 = vmatmul.bf16.gmra.mxu0 %v4104
        %v4165 = vpop.f32.mrf.mxu0
        %v4166 = vadd.f32 0.0, %v4165
        %v4167 = vpop.f32.mrf.mxu0
        %v4168 = vadd.f32 0.0, %v4167
        %4169 = vmatmul.bf16.gmra.mxu0 %v4107
        %v4170 = vpop.f32.mrf.mxu0
        %v4171 = vadd.f32 0.0, %v4170
        %v4172 = vpop.f32.mrf.mxu0
        %v4173 = vadd.f32 0.0, %v4172
        %4174 = vmatmul.bf16.gmra.mxu0 %v4110
        %v4175 = vpop.f32.mrf.mxu0
        %v4176 = vadd.f32 0.0, %v4175
        %v4177 = vpop.f32.mrf.mxu0
        %v4178 = vadd.f32 0.0, %v4177
        %4179 = vmatmul.bf16.gmra.mxu0 %v4113
        %v4180 = vpop.f32.mrf.mxu0
        %v4181 = vadd.f32 0.0, %v4180
        %v4182 = vpop.f32.mrf.mxu0
        %v4183 = vadd.f32 0.0, %v4182
        %4184 = vmatmul.bf16.gmra.mxu0 %v4116
        %v4185 = vpop.f32.mrf.mxu0
        %v4186 = vadd.f32 0.0, %v4185
        %v4187 = vpop.f32.mrf.mxu0
        %v4188 = vadd.f32 0.0, %v4187
        %4189 = vmatmul.bf16.gmra.mxu0 %v4119
        %v4190 = vpop.f32.mrf.mxu0
        %v4191 = vadd.f32 0.0, %v4190
        %v4192 = vpop.f32.mrf.mxu0
        %v4193 = vadd.f32 0.0, %v4192
        %4194 = vmatmul.bf16.gmra.mxu0 %v4122
        %v4195 = vpop.f32.mrf.mxu0
        %v4196 = vadd.f32 0.0, %v4195
        %v4197 = vpop.f32.mrf.mxu0
        %v4198 = vadd.f32 0.0, %v4197
        %4199 = vmatmul.bf16.gmra.mxu0 %v4125
        %v4200 = vpop.f32.mrf.mxu0
        %v4201 = vadd.f32 0.0, %v4200
        %v4202 = vpop.f32.mrf.mxu0
        %v4203 = vadd.f32 0.0, %v4202
        %4204 = vmatmul.bf16.gmra.mxu0 %v4128
        %v4205 = vpop.f32.mrf.mxu0
        %v4206 = vadd.f32 0.0, %v4205
        %v4207 = vpop.f32.mrf.mxu0
        %v4208 = vadd.f32 0.0, %v4207
        %4209 = vmatmul.bf16.gmra.mxu0 %v4131
        %v4210 = vpop.f32.mrf.mxu0
        %v4211 = vadd.f32 0.0, %v4210
        %v4212 = vpop.f32.mrf.mxu0
        %v4213 = vadd.f32 0.0, %v4212
        %4214 = vmatmul.bf16.gmra.mxu0 %v4134
        %v4215 = vpop.f32.mrf.mxu0
        %v4216 = vadd.f32 0.0, %v4215
        %v4217 = vpop.f32.mrf.mxu0
        %v4218 = vadd.f32 0.0, %v4217
        %4219 = vmatmul.bf16.gmra.mxu0 %v4137
        %v4220 = vpop.f32.mrf.mxu0
        %v4221 = vadd.f32 0.0, %v4220
        %v4222 = vpop.f32.mrf.mxu0
        %v4223 = vadd.f32 0.0, %v4222
        %4224 = vmatmul.bf16.gmra.mxu0 %v4140
        %v4225 = vpop.f32.mrf.mxu0
        %v4226 = vadd.f32 0.0, %v4225
        %v4227 = vpop.f32.mrf.mxu0
        %v4228 = vadd.f32 0.0, %v4227
        %4229 = vmatmul.bf16.gmra.mxu0 %v4143
        %v4230 = vpop.f32.mrf.mxu0
        %v4231 = vadd.f32 0.0, %v4230
        %v4232 = vpop.f32.mrf.mxu0
        %v4233 = vadd.f32 0.0, %v4232
        %4234 = vmatmul.bf16.gmra.mxu0 %v4146
        %v4235 = vpop.f32.mrf.mxu0
        %v4236 = vadd.f32 0.0, %v4235
        %v4237 = vpop.f32.mrf.mxu0
        %v4238 = vadd.f32 0.0, %v4237
        %4239 = vdwg.mxu0
        %v4240 = vld [vmem:[#allocation2] sm:$0xff]
        %v4241 = vld [vmem:[#allocation2 + $0x8] sm:$0xff]
        %v4242 = vld [vmem:[#allocation2 + $0x10] sm:$0xff]
        %v4243 = vld [vmem:[#allocation2 + $0x18] sm:$0xff]
        %v4244 = vld [vmem:[#allocation2 + $0x20] sm:$0xff]
        %v4245 = vld [vmem:[#allocation2 + $0x28] sm:$0xff]
        %v4246 = vld [vmem:[#allocation2 + $0x30] sm:$0xff]
        %v4247 = vld [vmem:[#allocation2 + $0x38] sm:$0xff]
        %v4248 = vld [vmem:[#allocation2 + $0x40] sm:$0xff]
        %v4249 = vld [vmem:[#allocation2 + $0x48] sm:$0xff]
        %v4250 = vld [vmem:[#allocation2 + $0x50] sm:$0xff]
        %v4251 = vld [vmem:[#allocation2 + $0x58] sm:$0xff]
        %v4252 = vld [vmem:[#allocation2 + $0x60] sm:$0xff]
        %v4253 = vld [vmem:[#allocation2 + $0x68] sm:$0xff]
        %v4254 = vld [vmem:[#allocation2 + $0x70] sm:$0xff]
        %v4255 = vld [vmem:[#allocation2 + $0x78] sm:$0xff]
        %v4256 = vld [vmem:[#allocation2 + $0x80] sm:$0xff]
        %v4257 = vld [vmem:[#allocation2 + $0x88] sm:$0xff]
        %v4258 = vld [vmem:[#allocation2 + $0x90] sm:$0xff]
        %v4259 = vld [vmem:[#allocation2 + $0x98] sm:$0xff]
        %v4260 = vld [vmem:[#allocation2 + $0xa0] sm:$0xff]
        %v4261 = vld [vmem:[#allocation2 + $0xa8] sm:$0xff]
        %v4262 = vld [vmem:[#allocation2 + $0xb0] sm:$0xff]
        %v4263 = vld [vmem:[#allocation2 + $0xb8] sm:$0xff]
        %v4264 = vld [vmem:[#allocation2 + $0xc0] sm:$0xff]
        %v4265 = vld [vmem:[#allocation2 + $0xc8] sm:$0xff]
        %v4266 = vld [vmem:[#allocation2 + $0xd0] sm:$0xff]
        %v4267 = vld [vmem:[#allocation2 + $0xd8] sm:$0xff]
        %v4268 = vld [vmem:[#allocation2 + $0xe0] sm:$0xff]
        %v4269 = vld [vmem:[#allocation2 + $0xe8] sm:$0xff]
        %v4270 = vld [vmem:[#allocation2 + $0xf0] sm:$0xff]
        %v4271 = vld [vmem:[#allocation2 + $0xf8] sm:$0xff]
        %v4272 = vadd.f32 %v4240, %v4161
        %v4273 = vadd.f32 %v4241, %v4163
        %v4274 = vadd.f32 %v4242, %v4166
        %v4275 = vadd.f32 %v4243, %v4168
        %v4276 = vadd.f32 %v4244, %v4171
        %v4277 = vadd.f32 %v4245, %v4173
        %v4278 = vadd.f32 %v4246, %v4176
        %v4279 = vadd.f32 %v4247, %v4178
        %v4280 = vadd.f32 %v4248, %v4181
        %v4281 = vadd.f32 %v4249, %v4183
        %v4282 = vadd.f32 %v4250, %v4186
        %v4283 = vadd.f32 %v4251, %v4188
        %v4284 = vadd.f32 %v4252, %v4191
        %v4285 = vadd.f32 %v4253, %v4193
        %v4286 = vadd.f32 %v4254, %v4196
        %v4287 = vadd.f32 %v4255, %v4198
        %v4288 = vadd.f32 %v4256, %v4201
        %v4289 = vadd.f32 %v4257, %v4203
        %v4290 = vadd.f32 %v4258, %v4206
        %v4291 = vadd.f32 %v4259, %v4208
        %v4292 = vadd.f32 %v4260, %v4211
        %v4293 = vadd.f32 %v4261, %v4213
        %v4294 = vadd.f32 %v4262, %v4216
        %v4295 = vadd.f32 %v4263, %v4218
        %v4296 = vadd.f32 %v4264, %v4221
        %v4297 = vadd.f32 %v4265, %v4223
        %v4298 = vadd.f32 %v4266, %v4226
        %v4299 = vadd.f32 %v4267, %v4228
        %v4300 = vadd.f32 %v4268, %v4231
        %v4301 = vadd.f32 %v4269, %v4233
        %v4302 = vadd.f32 %v4270, %v4236
        %v4303 = vadd.f32 %v4271, %v4238
        %4304 = vst [vmem:[#allocation2] sm:$0xff] %v4272
        %4305 = vst [vmem:[#allocation2 + $0x8] sm:$0xff] %v4273
        %4306 = vst [vmem:[#allocation2 + $0x10] sm:$0xff] %v4274
        %4307 = vst [vmem:[#allocation2 + $0x18] sm:$0xff] %v4275
        %4308 = vst [vmem:[#allocation2 + $0x20] sm:$0xff] %v4276
        %4309 = vst [vmem:[#allocation2 + $0x28] sm:$0xff] %v4277
        %4310 = vst [vmem:[#allocation2 + $0x30] sm:$0xff] %v4278
        %4311 = vst [vmem:[#allocation2 + $0x38] sm:$0xff] %v4279
        %4312 = vst [vmem:[#allocation2 + $0x40] sm:$0xff] %v4280
        %4313 = vst [vmem:[#allocation2 + $0x48] sm:$0xff] %v4281
        %4314 = vst [vmem:[#allocation2 + $0x50] sm:$0xff] %v4282
        %4315 = vst [vmem:[#allocation2 + $0x58] sm:$0xff] %v4283
        %4316 = vst [vmem:[#allocation2 + $0x60] sm:$0xff] %v4284
        %4317 = vst [vmem:[#allocation2 + $0x68] sm:$0xff] %v4285
        %4318 = vst [vmem:[#allocation2 + $0x70] sm:$0xff] %v4286
        %4319 = vst [vmem:[#allocation2 + $0x78] sm:$0xff] %v4287
        %4320 = vst [vmem:[#allocation2 + $0x80] sm:$0xff] %v4288
        %4321 = vst [vmem:[#allocation2 + $0x88] sm:$0xff] %v4289
        %4322 = vst [vmem:[#allocation2 + $0x90] sm:$0xff] %v4290
        %4323 = vst [vmem:[#allocation2 + $0x98] sm:$0xff] %v4291
        %4324 = vst [vmem:[#allocation2 + $0xa0] sm:$0xff] %v4292
        %4325 = vst [vmem:[#allocation2 + $0xa8] sm:$0xff] %v4293
        %4326 = vst [vmem:[#allocation2 + $0xb0] sm:$0xff] %v4294
        %4327 = vst [vmem:[#allocation2 + $0xb8] sm:$0xff] %v4295
        %4328 = vst [vmem:[#allocation2 + $0xc0] sm:$0xff] %v4296
        %4329 = vst [vmem:[#allocation2 + $0xc8] sm:$0xff] %v4297
        %4330 = vst [vmem:[#allocation2 + $0xd0] sm:$0xff] %v4298
        %4331 = vst [vmem:[#allocation2 + $0xd8] sm:$0xff] %v4299
        %4332 = vst [vmem:[#allocation2 + $0xe0] sm:$0xff] %v4300
        %4333 = vst [vmem:[#allocation2 + $0xe8] sm:$0xff] %v4301
        %4334 = vst [vmem:[#allocation2 + $0xf0] sm:$0xff] %v4302
        %4335 = vst [vmem:[#allocation2 + $0xf8] sm:$0xff] %v4303
        %v4336 = vld [vmem:[%s3267] sm:$0xe]
        %v4337 = vld [vmem:[%s3267 + $0x4] sm:$0xf]
        %v4338 = vld [vmem:[%s3267 + $0x8] sm:$0x1]
        %v4339 = vld [vmem:[%s3267 + $0xc] sm:$0xe]
        %v4340 = vld [vmem:[%s3267 + $0x10] sm:$0xf]
        %v4341 = vld [vmem:[%s3267 + $0x14] sm:$0x1]
        %v4342 = vld [vmem:[%s3267 + $0x18] sm:$0xe]
        %v4343 = vld [vmem:[%s3267 + $0x1c] sm:$0xf]
        %v4344 = vld [vmem:[%s3267 + $0x20] sm:$0x1]
        %v4345 = vld [vmem:[%s3267 + $0x24] sm:$0xe]
        %v4346 = vld [vmem:[%s3267 + $0x28] sm:$0xf]
        %v4347 = vld [vmem:[%s3267 + $0x2c] sm:$0x1]
        %v4348 = vld [vmem:[%s3267 + $0x30] sm:$0xe]
        %v4349 = vld [vmem:[%s3267 + $0x34] sm:$0xf]
        %v4350 = vld [vmem:[%s3267 + $0x38] sm:$0x1]
        %v4351 = vld [vmem:[%s3267 + $0x3c] sm:$0xe]
        %v4352 = vld [vmem:[%s3267 + $0x40] sm:$0xf]
        %v4353 = vld [vmem:[%s3267 + $0x44] sm:$0x1]
        %v4354 = vld [vmem:[%s3267 + $0x48] sm:$0xe]
        %v4355 = vld [vmem:[%s3267 + $0x4c] sm:$0xf]
        %v4356 = vld [vmem:[%s3267 + $0x50] sm:$0x1]
        %v4357 = vld [vmem:[%s3267 + $0x54] sm:$0xe]
        %v4358 = vld [vmem:[%s3267 + $0x58] sm:$0xf]
        %v4359 = vld [vmem:[%s3267 + $0x5c] sm:$0x1]
        %v4360 = vld [vmem:[%s3267 + $0x60] sm:$0xe]
        %v4361 = vld [vmem:[%s3267 + $0x64] sm:$0xf]
        %v4362 = vld [vmem:[%s3267 + $0x68] sm:$0x1]
        %v4363 = vld [vmem:[%s3267 + $0x6c] sm:$0xe]
        %v4364 = vld [vmem:[%s3267 + $0x70] sm:$0xf]
        %v4365 = vld [vmem:[%s3267 + $0x74] sm:$0x1]
        %v4366 = vld [vmem:[%s3267 + $0x78] sm:$0xe]
        %v4367 = vld [vmem:[%s3267 + $0x7c] sm:$0xf]
        %v4368 = vld [vmem:[%s3267 + $0x80] sm:$0x1]
        %v4369 = vld [vmem:[%s3267 + $0x84] sm:$0xe]
        %v4370 = vld [vmem:[%s3267 + $0x88] sm:$0xf]
        %v4371 = vld [vmem:[%s3267 + $0x8c] sm:$0x1]
        %v4372 = vld [vmem:[%s3267 + $0x90] sm:$0xe]
        %v4373 = vld [vmem:[%s3267 + $0x94] sm:$0xf]
        %v4374 = vld [vmem:[%s3267 + $0x98] sm:$0x1]
        %v4375 = vld [vmem:[%s3267 + $0x9c] sm:$0xe]
        %v4376 = vld [vmem:[%s3267 + $0xa0] sm:$0xf]
        %v4377 = vld [vmem:[%s3267 + $0xa4] sm:$0x1]
        %v4378 = vld [vmem:[%s3267 + $0xa8] sm:$0xe]
        %v4379 = vld [vmem:[%s3267 + $0xac] sm:$0xf]
        %v4380 = vld [vmem:[%s3267 + $0xb0] sm:$0x1]
        %v4381 = vld [vmem:[%s3267 + $0xb4] sm:$0xe]
        %v4382 = vld [vmem:[%s3267 + $0xb8] sm:$0xf]
        %v4383 = vld [vmem:[%s3267 + $0xbc] sm:$0x1]
        %v4432 = vrot.slane %v4336, 5
        %v4433 = vrot.slane %v4432, 4
        %v4434 = vrot.slane %v4337, 5
        %v4435 = vsel %vm1305, %v4433, %v4434
        %v4436 = vrot.slane %v4434, 4
        %v4437 = vrot.slane %v4338, 5
        %v4438 = vsel %vm1305, %v4436, %v4437
        %v4439 = vrot.slane %v4339, 5
        %v4440 = vrot.slane %v4439, 4
        %v4441 = vrot.slane %v4340, 5
        %v4442 = vsel %vm1305, %v4440, %v4441
        %v4443 = vrot.slane %v4441, 4
        %v4444 = vrot.slane %v4341, 5
        %v4445 = vsel %vm1305, %v4443, %v4444
        %v4446 = vrot.slane %v4342, 5
        %v4447 = vrot.slane %v4446, 4
        %v4448 = vrot.slane %v4343, 5
        %v4449 = vsel %vm1305, %v4447, %v4448
        %v4450 = vrot.slane %v4448, 4
        %v4451 = vrot.slane %v4344, 5
        %v4452 = vsel %vm1305, %v4450, %v4451
        %v4453 = vrot.slane %v4345, 5
        %v4454 = vrot.slane %v4453, 4
        %v4455 = vrot.slane %v4346, 5
        %v4456 = vsel %vm1305, %v4454, %v4455
        %v4457 = vrot.slane %v4455, 4
        %v4458 = vrot.slane %v4347, 5
        %v4459 = vsel %vm1305, %v4457, %v4458
        %v4460 = vrot.slane %v4348, 5
        %v4461 = vrot.slane %v4460, 4
        %v4462 = vrot.slane %v4349, 5
        %v4463 = vsel %vm1305, %v4461, %v4462
        %v4464 = vrot.slane %v4462, 4
        %v4465 = vrot.slane %v4350, 5
        %v4466 = vsel %vm1305, %v4464, %v4465
        %v4467 = vrot.slane %v4351, 5
        %v4468 = vrot.slane %v4467, 4
        %v4469 = vrot.slane %v4352, 5
        %v4470 = vsel %vm1305, %v4468, %v4469
        %v4471 = vrot.slane %v4469, 4
        %v4472 = vrot.slane %v4353, 5
        %v4473 = vsel %vm1305, %v4471, %v4472
        %v4474 = vrot.slane %v4354, 5
        %v4475 = vrot.slane %v4474, 4
        %v4476 = vrot.slane %v4355, 5
        %v4477 = vsel %vm1305, %v4475, %v4476
        %v4478 = vrot.slane %v4476, 4
        %v4479 = vrot.slane %v4356, 5
        %v4480 = vsel %vm1305, %v4478, %v4479
        %v4481 = vrot.slane %v4357, 5
        %v4482 = vrot.slane %v4481, 4
        %v4483 = vrot.slane %v4358, 5
        %v4484 = vsel %vm1305, %v4482, %v4483
        %v4485 = vrot.slane %v4483, 4
        %v4486 = vrot.slane %v4359, 5
        %v4487 = vsel %vm1305, %v4485, %v4486
        %v4488 = vrot.slane %v4360, 5
        %v4489 = vrot.slane %v4488, 4
        %v4490 = vrot.slane %v4361, 5
        %v4491 = vsel %vm1305, %v4489, %v4490
        %v4492 = vrot.slane %v4490, 4
        %v4493 = vrot.slane %v4362, 5
        %v4494 = vsel %vm1305, %v4492, %v4493
        %v4495 = vrot.slane %v4363, 5
        %v4496 = vrot.slane %v4495, 4
        %v4497 = vrot.slane %v4364, 5
        %v4498 = vsel %vm1305, %v4496, %v4497
        %v4499 = vrot.slane %v4497, 4
        %v4500 = vrot.slane %v4365, 5
        %v4501 = vsel %vm1305, %v4499, %v4500
        %v4502 = vrot.slane %v4366, 5
        %v4503 = vrot.slane %v4502, 4
        %v4504 = vrot.slane %v4367, 5
        %v4505 = vsel %vm1305, %v4503, %v4504
        %v4506 = vrot.slane %v4504, 4
        %v4507 = vrot.slane %v4368, 5
        %v4508 = vsel %vm1305, %v4506, %v4507
        %v4509 = vrot.slane %v4369, 5
        %v4510 = vrot.slane %v4509, 4
        %v4511 = vrot.slane %v4370, 5
        %v4512 = vsel %vm1305, %v4510, %v4511
        %v4513 = vrot.slane %v4511, 4
        %v4514 = vrot.slane %v4371, 5
        %v4515 = vsel %vm1305, %v4513, %v4514
        %v4516 = vrot.slane %v4372, 5
        %v4517 = vrot.slane %v4516, 4
        %v4518 = vrot.slane %v4373, 5
        %v4519 = vsel %vm1305, %v4517, %v4518
        %v4520 = vrot.slane %v4518, 4
        %v4521 = vrot.slane %v4374, 5
        %v4522 = vsel %vm1305, %v4520, %v4521
        %v4523 = vrot.slane %v4375, 5
        %v4524 = vrot.slane %v4523, 4
        %v4525 = vrot.slane %v4376, 5
        %v4526 = vsel %vm1305, %v4524, %v4525
        %v4527 = vrot.slane %v4525, 4
        %v4528 = vrot.slane %v4377, 5
        %v4529 = vsel %vm1305, %v4527, %v4528
        %v4530 = vrot.slane %v4378, 5
        %v4531 = vrot.slane %v4530, 4
        %v4532 = vrot.slane %v4379, 5
        %v4533 = vsel %vm1305, %v4531, %v4532
        %v4534 = vrot.slane %v4532, 4
        %v4535 = vrot.slane %v4380, 5
        %v4536 = vsel %vm1305, %v4534, %v4535
        %v4537 = vrot.slane %v4381, 5
        %v4538 = vrot.slane %v4537, 4
        %v4539 = vrot.slane %v4382, 5
        %v4540 = vsel %vm1305, %v4538, %v4539
        %v4541 = vrot.slane %v4539, 4
        %v4542 = vrot.slane %v4383, 5
        %v4543 = vsel %vm1305, %v4541, %v4542
        %s4544 = scalar_lea.vmem %s1, 16
        %v4545 = vld [vmem:[%s4544] sm:$0x3]
        %v4546 = vunpack.c.l.b16 %v4435
        %v4547 = vunpack.c.l.b16 %v4438
        %v4548 = vunpack.c.l.b16 %v4442
        %v4549 = vunpack.c.l.b16 %v4445
        %v4550 = vunpack.c.l.b16 %v4449
        %v4551 = vunpack.c.l.b16 %v4452
        %v4552 = vunpack.c.l.b16 %v4456
        %v4553 = vunpack.c.l.b16 %v4459
        %v4554 = vunpack.c.l.b16 %v4463
        %v4555 = vunpack.c.l.b16 %v4466
        %v4556 = vunpack.c.l.b16 %v4470
        %v4557 = vunpack.c.l.b16 %v4473
        %v4558 = vunpack.c.l.b16 %v4477
        %v4559 = vunpack.c.l.b16 %v4480
        %v4560 = vunpack.c.l.b16 %v4484
        %v4561 = vunpack.c.l.b16 %v4487
        %v4562 = vunpack.c.l.b16 %v4491
        %v4563 = vunpack.c.l.b16 %v4494
        %v4564 = vunpack.c.l.b16 %v4498
        %v4565 = vunpack.c.l.b16 %v4501
        %v4566 = vunpack.c.l.b16 %v4505
        %v4567 = vunpack.c.l.b16 %v4508
        %v4568 = vunpack.c.l.b16 %v4512
        %v4569 = vunpack.c.l.b16 %v4515
        %v4570 = vunpack.c.l.b16 %v4519
        %v4571 = vunpack.c.l.b16 %v4522
        %v4572 = vunpack.c.l.b16 %v4526
        %v4573 = vunpack.c.l.b16 %v4529
        %v4574 = vunpack.c.l.b16 %v4533
        %v4575 = vunpack.c.l.b16 %v4536
        %v4576 = vunpack.c.l.b16 %v4540
        %v4577 = vunpack.c.l.b16 %v4543
        %v4578 = vpack.c.b16 %v4547, %v4546
        %v4579 = vpack.c.b16 %v4549, %v4548
        %v4580 = vpack.c.b16 %v4551, %v4550
        %v4581 = vpack.c.b16 %v4553, %v4552
        %v4582 = vpack.c.b16 %v4555, %v4554
        %v4583 = vpack.c.b16 %v4557, %v4556
        %v4584 = vpack.c.b16 %v4559, %v4558
        %v4585 = vpack.c.b16 %v4561, %v4560
        %v4586 = vpack.c.b16 %v4563, %v4562
        %v4587 = vpack.c.b16 %v4565, %v4564
        %v4588 = vpack.c.b16 %v4567, %v4566
        %v4589 = vpack.c.b16 %v4569, %v4568
        %v4590 = vpack.c.b16 %v4571, %v4570
        %v4591 = vpack.c.b16 %v4573, %v4572
        %v4592 = vpack.c.b16 %v4575, %v4574
        %v4593 = vpack.c.b16 %v4577, %v4576
        %v4595 = vsel %vm312, %v4578, 0
        %v4598 = vsel %vm312, %v4579, 0
        %v4601 = vsel %vm312, %v4580, 0
        %v4604 = vsel %vm312, %v4581, 0
        %v4607 = vsel %vm312, %v4582, 0
        %v4610 = vsel %vm312, %v4583, 0
        %v4613 = vsel %vm312, %v4584, 0
        %v4616 = vsel %vm312, %v4585, 0
        %v4619 = vsel %vm312, %v4586, 0
        %v4622 = vsel %vm312, %v4587, 0
        %v4625 = vsel %vm312, %v4588, 0
        %v4628 = vsel %vm312, %v4589, 0
        %v4631 = vsel %vm312, %v4590, 0
        %v4634 = vsel %vm312, %v4591, 0
        %v4637 = vsel %vm312, %v4592, 0
        %v4640 = vsel %vm312, %v4593, 0
        %v4643 = vsel %vm361, %v4545, 0
        %4645 = vmatpush.bf16.msra.mxu0 0
        %4646 = vmatpush.bf16.msra.mxu0 0
        %4647 = vmatpush.bf16.msra.mxu0 0
        %4648 = vmatpush.bf16.msra.mxu0 0
        %4649 = vmatpush.bf16.msra.mxu0 0
        %4650 = vmatpush.bf16.msra.mxu0 0
        %4651 = vmatpush.bf16.msra.mxu0 0
        %4652 = vmatpush.bf16.msra.mxu0 %v4643
        %4653 = vmatmul.bf16.gmra.mxu0 %v4595
        %v4654 = vpop.f32.mrf.mxu0
        %v4655 = vadd.f32 0.0, %v4654
        %v4656 = vpop.f32.mrf.mxu0
        %v4657 = vadd.f32 0.0, %v4656
        %4658 = vmatmul.bf16.gmra.mxu0 %v4598
        %v4659 = vpop.f32.mrf.mxu0
        %v4660 = vadd.f32 0.0, %v4659
        %v4661 = vpop.f32.mrf.mxu0
        %v4662 = vadd.f32 0.0, %v4661
        %4663 = vmatmul.bf16.gmra.mxu0 %v4601
        %v4664 = vpop.f32.mrf.mxu0
        %v4665 = vadd.f32 0.0, %v4664
        %v4666 = vpop.f32.mrf.mxu0
        %v4667 = vadd.f32 0.0, %v4666
        %4668 = vmatmul.bf16.gmra.mxu0 %v4604
        %v4669 = vpop.f32.mrf.mxu0
        %v4670 = vadd.f32 0.0, %v4669
        %v4671 = vpop.f32.mrf.mxu0
        %v4672 = vadd.f32 0.0, %v4671
        %4673 = vmatmul.bf16.gmra.mxu0 %v4607
        %v4674 = vpop.f32.mrf.mxu0
        %v4675 = vadd.f32 0.0, %v4674
        %v4676 = vpop.f32.mrf.mxu0
        %v4677 = vadd.f32 0.0, %v4676
        %4678 = vmatmul.bf16.gmra.mxu0 %v4610
        %v4679 = vpop.f32.mrf.mxu0
        %v4680 = vadd.f32 0.0, %v4679
        %v4681 = vpop.f32.mrf.mxu0
        %v4682 = vadd.f32 0.0, %v4681
        %4683 = vmatmul.bf16.gmra.mxu0 %v4613
        %v4684 = vpop.f32.mrf.mxu0
        %v4685 = vadd.f32 0.0, %v4684
        %v4686 = vpop.f32.mrf.mxu0
        %v4687 = vadd.f32 0.0, %v4686
        %4688 = vmatmul.bf16.gmra.mxu0 %v4616
        %v4689 = vpop.f32.mrf.mxu0
        %v4690 = vadd.f32 0.0, %v4689
        %v4691 = vpop.f32.mrf.mxu0
        %v4692 = vadd.f32 0.0, %v4691
        %4693 = vmatmul.bf16.gmra.mxu0 %v4619
        %v4694 = vpop.f32.mrf.mxu0
        %v4695 = vadd.f32 0.0, %v4694
        %v4696 = vpop.f32.mrf.mxu0
        %v4697 = vadd.f32 0.0, %v4696
        %4698 = vmatmul.bf16.gmra.mxu0 %v4622
        %v4699 = vpop.f32.mrf.mxu0
        %v4700 = vadd.f32 0.0, %v4699
        %v4701 = vpop.f32.mrf.mxu0
        %v4702 = vadd.f32 0.0, %v4701
        %4703 = vmatmul.bf16.gmra.mxu0 %v4625
        %v4704 = vpop.f32.mrf.mxu0
        %v4705 = vadd.f32 0.0, %v4704
        %v4706 = vpop.f32.mrf.mxu0
        %v4707 = vadd.f32 0.0, %v4706
        %4708 = vmatmul.bf16.gmra.mxu0 %v4628
        %v4709 = vpop.f32.mrf.mxu0
        %v4710 = vadd.f32 0.0, %v4709
        %v4711 = vpop.f32.mrf.mxu0
        %v4712 = vadd.f32 0.0, %v4711
        %4713 = vmatmul.bf16.gmra.mxu0 %v4631
        %v4714 = vpop.f32.mrf.mxu0
        %v4715 = vadd.f32 0.0, %v4714
        %v4716 = vpop.f32.mrf.mxu0
        %v4717 = vadd.f32 0.0, %v4716
        %4718 = vmatmul.bf16.gmra.mxu0 %v4634
        %v4719 = vpop.f32.mrf.mxu0
        %v4720 = vadd.f32 0.0, %v4719
        %v4721 = vpop.f32.mrf.mxu0
        %v4722 = vadd.f32 0.0, %v4721
        %4723 = vmatmul.bf16.gmra.mxu0 %v4637
        %v4724 = vpop.f32.mrf.mxu0
        %v4725 = vadd.f32 0.0, %v4724
        %v4726 = vpop.f32.mrf.mxu0
        %v4727 = vadd.f32 0.0, %v4726
        %4728 = vmatmul.bf16.gmra.mxu0 %v4640
        %v4729 = vpop.f32.mrf.mxu0
        %v4730 = vadd.f32 0.0, %v4729
        %v4731 = vpop.f32.mrf.mxu0
        %v4732 = vadd.f32 0.0, %v4731
        %4733 = vdwg.mxu0
        %v4734 = vld [vmem:[#allocation2] sm:$0xff]
        %v4735 = vld [vmem:[#allocation2 + $0x8] sm:$0xff]
        %v4736 = vld [vmem:[#allocation2 + $0x10] sm:$0xff]
        %v4737 = vld [vmem:[#allocation2 + $0x18] sm:$0xff]
        %v4738 = vld [vmem:[#allocation2 + $0x20] sm:$0xff]
        %v4739 = vld [vmem:[#allocation2 + $0x28] sm:$0xff]
        %v4740 = vld [vmem:[#allocation2 + $0x30] sm:$0xff]
        %v4741 = vld [vmem:[#allocation2 + $0x38] sm:$0xff]
        %v4742 = vld [vmem:[#allocation2 + $0x40] sm:$0xff]
        %v4743 = vld [vmem:[#allocation2 + $0x48] sm:$0xff]
        %v4744 = vld [vmem:[#allocation2 + $0x50] sm:$0xff]
        %v4745 = vld [vmem:[#allocation2 + $0x58] sm:$0xff]
        %v4746 = vld [vmem:[#allocation2 + $0x60] sm:$0xff]
        %v4747 = vld [vmem:[#allocation2 + $0x68] sm:$0xff]
        %v4748 = vld [vmem:[#allocation2 + $0x70] sm:$0xff]
        %v4749 = vld [vmem:[#allocation2 + $0x78] sm:$0xff]
        %v4750 = vld [vmem:[#allocation2 + $0x80] sm:$0xff]
        %v4751 = vld [vmem:[#allocation2 + $0x88] sm:$0xff]
        %v4752 = vld [vmem:[#allocation2 + $0x90] sm:$0xff]
        %v4753 = vld [vmem:[#allocation2 + $0x98] sm:$0xff]
        %v4754 = vld [vmem:[#allocation2 + $0xa0] sm:$0xff]
        %v4755 = vld [vmem:[#allocation2 + $0xa8] sm:$0xff]
        %v4756 = vld [vmem:[#allocation2 + $0xb0] sm:$0xff]
        %v4757 = vld [vmem:[#allocation2 + $0xb8] sm:$0xff]
        %v4758 = vld [vmem:[#allocation2 + $0xc0] sm:$0xff]
        %v4759 = vld [vmem:[#allocation2 + $0xc8] sm:$0xff]
        %v4760 = vld [vmem:[#allocation2 + $0xd0] sm:$0xff]
        %v4761 = vld [vmem:[#allocation2 + $0xd8] sm:$0xff]
        %v4762 = vld [vmem:[#allocation2 + $0xe0] sm:$0xff]
        %v4763 = vld [vmem:[#allocation2 + $0xe8] sm:$0xff]
        %v4764 = vld [vmem:[#allocation2 + $0xf0] sm:$0xff]
        %v4765 = vld [vmem:[#allocation2 + $0xf8] sm:$0xff]
        %v4766 = vadd.f32 %v4734, %v4655
        %v4767 = vadd.f32 %v4735, %v4657
        %v4768 = vadd.f32 %v4736, %v4660
        %v4769 = vadd.f32 %v4737, %v4662
        %v4770 = vadd.f32 %v4738, %v4665
        %v4771 = vadd.f32 %v4739, %v4667
        %v4772 = vadd.f32 %v4740, %v4670
        %v4773 = vadd.f32 %v4741, %v4672
        %v4774 = vadd.f32 %v4742, %v4675
        %v4775 = vadd.f32 %v4743, %v4677
        %v4776 = vadd.f32 %v4744, %v4680
        %v4777 = vadd.f32 %v4745, %v4682
        %v4778 = vadd.f32 %v4746, %v4685
        %v4779 = vadd.f32 %v4747, %v4687
        %v4780 = vadd.f32 %v4748, %v4690
        %v4781 = vadd.f32 %v4749, %v4692
        %v4782 = vadd.f32 %v4750, %v4695
        %v4783 = vadd.f32 %v4751, %v4697
        %v4784 = vadd.f32 %v4752, %v4700
        %v4785 = vadd.f32 %v4753, %v4702
        %v4786 = vadd.f32 %v4754, %v4705
        %v4787 = vadd.f32 %v4755, %v4707
        %v4788 = vadd.f32 %v4756, %v4710
        %v4789 = vadd.f32 %v4757, %v4712
        %v4790 = vadd.f32 %v4758, %v4715
        %v4791 = vadd.f32 %v4759, %v4717
        %v4792 = vadd.f32 %v4760, %v4720
        %v4793 = vadd.f32 %v4761, %v4722
        %v4794 = vadd.f32 %v4762, %v4725
        %v4795 = vadd.f32 %v4763, %v4727
        %v4796 = vadd.f32 %v4764, %v4730
        %v4797 = vadd.f32 %v4765, %v4732
        %4798 = vst [vmem:[#allocation2] sm:$0xff] %v4766
        %4799 = vst [vmem:[#allocation2 + $0x8] sm:$0xff] %v4767
        %4800 = vst [vmem:[#allocation2 + $0x10] sm:$0xff] %v4768
        %4801 = vst [vmem:[#allocation2 + $0x18] sm:$0xff] %v4769
        %4802 = vst [vmem:[#allocation2 + $0x20] sm:$0xff] %v4770
        %4803 = vst [vmem:[#allocation2 + $0x28] sm:$0xff] %v4771
        %4804 = vst [vmem:[#allocation2 + $0x30] sm:$0xff] %v4772
        %4805 = vst [vmem:[#allocation2 + $0x38] sm:$0xff] %v4773
        %4806 = vst [vmem:[#allocation2 + $0x40] sm:$0xff] %v4774
        %4807 = vst [vmem:[#allocation2 + $0x48] sm:$0xff] %v4775
        %4808 = vst [vmem:[#allocation2 + $0x50] sm:$0xff] %v4776
        %4809 = vst [vmem:[#allocation2 + $0x58] sm:$0xff] %v4777
        %4810 = vst [vmem:[#allocation2 + $0x60] sm:$0xff] %v4778
        %4811 = vst [vmem:[#allocation2 + $0x68] sm:$0xff] %v4779
        %4812 = vst [vmem:[#allocation2 + $0x70] sm:$0xff] %v4780
        %4813 = vst [vmem:[#allocation2 + $0x78] sm:$0xff] %v4781
        %4814 = vst [vmem:[#allocation2 + $0x80] sm:$0xff] %v4782
        %4815 = vst [vmem:[#allocation2 + $0x88] sm:$0xff] %v4783
        %4816 = vst [vmem:[#allocation2 + $0x90] sm:$0xff] %v4784
        %4817 = vst [vmem:[#allocation2 + $0x98] sm:$0xff] %v4785
        %4818 = vst [vmem:[#allocation2 + $0xa0] sm:$0xff] %v4786
        %4819 = vst [vmem:[#allocation2 + $0xa8] sm:$0xff] %v4787
        %4820 = vst [vmem:[#allocation2 + $0xb0] sm:$0xff] %v4788
        %4821 = vst [vmem:[#allocation2 + $0xb8] sm:$0xff] %v4789
        %4822 = vst [vmem:[#allocation2 + $0xc0] sm:$0xff] %v4790
        %4823 = vst [vmem:[#allocation2 + $0xc8] sm:$0xff] %v4791
        %4824 = vst [vmem:[#allocation2 + $0xd0] sm:$0xff] %v4792
        %4825 = vst [vmem:[#allocation2 + $0xd8] sm:$0xff] %v4793
        %4826 = vst [vmem:[#allocation2 + $0xe0] sm:$0xff] %v4794
        %4827 = vst [vmem:[#allocation2 + $0xe8] sm:$0xff] %v4795
        %4828 = vst [vmem:[#allocation2 + $0xf0] sm:$0xff] %v4796
        %4829 = vst [vmem:[#allocation2 + $0xf8] sm:$0xff] %v4797
        %v4830 = vld [vmem:[#allocation2] sm:$0xff]
        %v4831 = vld [vmem:[#allocation2 + $0x8] sm:$0xff]
        %v4832 = vld [vmem:[#allocation2 + $0x10] sm:$0xff]
        %v4833 = vld [vmem:[#allocation2 + $0x18] sm:$0xff]
        %v4834 = vld [vmem:[#allocation2 + $0x20] sm:$0xff]
        %v4835 = vld [vmem:[#allocation2 + $0x28] sm:$0xff]
        %v4836 = vld [vmem:[#allocation2 + $0x30] sm:$0xff]
        %v4837 = vld [vmem:[#allocation2 + $0x38] sm:$0xff]
        %v4838 = vld [vmem:[#allocation2 + $0x40] sm:$0xff]
        %v4839 = vld [vmem:[#allocation2 + $0x48] sm:$0xff]
        %v4840 = vld [vmem:[#allocation2 + $0x50] sm:$0xff]
        %v4841 = vld [vmem:[#allocation2 + $0x58] sm:$0xff]
        %v4842 = vld [vmem:[#allocation2 + $0x60] sm:$0xff]
        %v4843 = vld [vmem:[#allocation2 + $0x68] sm:$0xff]
        %v4844 = vld [vmem:[#allocation2 + $0x70] sm:$0xff]
        %v4845 = vld [vmem:[#allocation2 + $0x78] sm:$0xff]
        %v4846 = vld [vmem:[#allocation2 + $0x80] sm:$0xff]
        %v4847 = vld [vmem:[#allocation2 + $0x88] sm:$0xff]
        %v4848 = vld [vmem:[#allocation2 + $0x90] sm:$0xff]
        %v4849 = vld [vmem:[#allocation2 + $0x98] sm:$0xff]
        %v4850 = vld [vmem:[#allocation2 + $0xa0] sm:$0xff]
        %v4851 = vld [vmem:[#allocation2 + $0xa8] sm:$0xff]
        %v4852 = vld [vmem:[#allocation2 + $0xb0] sm:$0xff]
        %v4853 = vld [vmem:[#allocation2 + $0xb8] sm:$0xff]
        %v4854 = vld [vmem:[#allocation2 + $0xc0] sm:$0xff]
        %v4855 = vld [vmem:[#allocation2 + $0xc8] sm:$0xff]
        %v4856 = vld [vmem:[#allocation2 + $0xd0] sm:$0xff]
        %v4857 = vld [vmem:[#allocation2 + $0xd8] sm:$0xff]
        %v4858 = vld [vmem:[#allocation2 + $0xe0] sm:$0xff]
        %v4859 = vld [vmem:[#allocation2 + $0xe8] sm:$0xff]
        %v4860 = vld [vmem:[#allocation2 + $0xf0] sm:$0xff]
        %v4861 = vld [vmem:[#allocation2 + $0xf8] sm:$0xff]
        %v4862 = vld [vmem:[%s2] sm:$0x1]
        %v4864 = vperm.slane %v4862, 0
        %v4866 = vadd.f32 %v4830, %v4864
        %v4867 = vadd.f32 %v4831, %v4864
        %v4868 = vadd.f32 %v4832, %v4864
        %v4869 = vadd.f32 %v4833, %v4864
        %v4870 = vadd.f32 %v4834, %v4864
        %v4871 = vadd.f32 %v4835, %v4864
        %v4872 = vadd.f32 %v4836, %v4864
        %v4873 = vadd.f32 %v4837, %v4864
        %v4874 = vadd.f32 %v4838, %v4864
        %v4875 = vadd.f32 %v4839, %v4864
        %v4876 = vadd.f32 %v4840, %v4864
        %v4877 = vadd.f32 %v4841, %v4864
        %v4878 = vadd.f32 %v4842, %v4864
        %v4879 = vadd.f32 %v4843, %v4864
        %v4880 = vadd.f32 %v4844, %v4864
        %v4881 = vadd.f32 %v4845, %v4864
        %v4882 = vadd.f32 %v4846, %v4864
        %v4883 = vadd.f32 %v4847, %v4864
        %v4884 = vadd.f32 %v4848, %v4864
        %v4885 = vadd.f32 %v4849, %v4864
        %v4886 = vadd.f32 %v4850, %v4864
        %v4887 = vadd.f32 %v4851, %v4864
        %v4888 = vadd.f32 %v4852, %v4864
        %v4889 = vadd.f32 %v4853, %v4864
        %v4890 = vadd.f32 %v4854, %v4864
        %v4891 = vadd.f32 %v4855, %v4864
        %v4892 = vadd.f32 %v4856, %v4864
        %v4893 = vadd.f32 %v4857, %v4864
        %v4894 = vadd.f32 %v4858, %v4864
        %v4895 = vadd.f32 %v4859, %v4864
        %v4896 = vadd.f32 %v4860, %v4864
        %v4897 = vadd.f32 %v4861, %v4864
        %v4898 = vpack.c.bf16 %v4866, %v4866
        %v4899 = vpack.c.bf16 %v4867, %v4867
        %v4900 = vpack.c.bf16 %v4868, %v4868
        %v4901 = vpack.c.bf16 %v4869, %v4869
        %v4902 = vpack.c.bf16 %v4870, %v4870
        %v4903 = vpack.c.bf16 %v4871, %v4871
        %v4904 = vpack.c.bf16 %v4872, %v4872
        %v4905 = vpack.c.bf16 %v4873, %v4873
        %v4906 = vpack.c.bf16 %v4874, %v4874
        %v4907 = vpack.c.bf16 %v4875, %v4875
        %v4908 = vpack.c.bf16 %v4876, %v4876
        %v4909 = vpack.c.bf16 %v4877, %v4877
        %v4910 = vpack.c.bf16 %v4878, %v4878
        %v4911 = vpack.c.bf16 %v4879, %v4879
        %v4912 = vpack.c.bf16 %v4880, %v4880
        %v4913 = vpack.c.bf16 %v4881, %v4881
        %v4914 = vpack.c.bf16 %v4882, %v4882
        %v4915 = vpack.c.bf16 %v4883, %v4883
        %v4916 = vpack.c.bf16 %v4884, %v4884
        %v4917 = vpack.c.bf16 %v4885, %v4885
        %v4918 = vpack.c.bf16 %v4886, %v4886
        %v4919 = vpack.c.bf16 %v4887, %v4887
        %v4920 = vpack.c.bf16 %v4888, %v4888
        %v4921 = vpack.c.bf16 %v4889, %v4889
        %v4922 = vpack.c.bf16 %v4890, %v4890
        %v4923 = vpack.c.bf16 %v4891, %v4891
        %v4924 = vpack.c.bf16 %v4892, %v4892
        %v4925 = vpack.c.bf16 %v4893, %v4893
        %v4926 = vpack.c.bf16 %v4894, %v4894
        %v4927 = vpack.c.bf16 %v4895, %v4895
        %v4928 = vpack.c.bf16 %v4896, %v4896
        %v4929 = vpack.c.bf16 %v4897, %v4897
        %4930 = vst [vmem:[%s187] sm:$0xf] %v4898
        %4931 = vst [vmem:[%s187 + $0x4] sm:$0xf] %v4899
        %4932 = vst [vmem:[%s187 + $0x8] sm:$0xf] %v4900
        %4933 = vst [vmem:[%s187 + $0xc] sm:$0xf] %v4901
        %4934 = vst [vmem:[%s187 + $0x10] sm:$0xf] %v4902
        %4935 = vst [vmem:[%s187 + $0x14] sm:$0xf] %v4903
        %4936 = vst [vmem:[%s187 + $0x18] sm:$0xf] %v4904
        %4937 = vst [vmem:[%s187 + $0x1c] sm:$0xf] %v4905
        %4938 = vst [vmem:[%s187 + $0x20] sm:$0xf] %v4906
        %4939 = vst [vmem:[%s187 + $0x24] sm:$0xf] %v4907
        %4940 = vst [vmem:[%s187 + $0x28] sm:$0xf] %v4908
        %4941 = vst [vmem:[%s187 + $0x2c] sm:$0xf] %v4909
        %4942 = vst [vmem:[%s187 + $0x30] sm:$0xf] %v4910
        %4943 = vst [vmem:[%s187 + $0x34] sm:$0xf] %v4911
        %4944 = vst [vmem:[%s187 + $0x38] sm:$0xf] %v4912
        %4945 = vst [vmem:[%s187 + $0x3c] sm:$0xf] %v4913
        %4946 = vst [vmem:[%s187 + $0x40] sm:$0xf] %v4914
        %4947 = vst [vmem:[%s187 + $0x44] sm:$0xf] %v4915
        %4948 = vst [vmem:[%s187 + $0x48] sm:$0xf] %v4916
        %4949 = vst [vmem:[%s187 + $0x4c] sm:$0xf] %v4917
        %4950 = vst [vmem:[%s187 + $0x50] sm:$0xf] %v4918
        %4951 = vst [vmem:[%s187 + $0x54] sm:$0xf] %v4919
        %4952 = vst [vmem:[%s187 + $0x58] sm:$0xf] %v4920
        %4953 = vst [vmem:[%s187 + $0x5c] sm:$0xf] %v4921
        %4954 = vst [vmem:[%s187 + $0x60] sm:$0xf] %v4922
        %4955 = vst [vmem:[%s187 + $0x64] sm:$0xf] %v4923
        %4956 = vst [vmem:[%s187 + $0x68] sm:$0xf] %v4924
        %4957 = vst [vmem:[%s187 + $0x6c] sm:$0xf] %v4925
        %4958 = vst [vmem:[%s187 + $0x70] sm:$0xf] %v4926
        %4959 = vst [vmem:[%s187 + $0x74] sm:$0xf] %v4927
        %4960 = vst [vmem:[%s187 + $0x78] sm:$0xf] %v4928
        %4961 = vst [vmem:[%s187 + $0x7c] sm:$0xf] %v4929
        %s4962 = sand.u32 %s109, 1
        %s4963 = scalar_lea.sflag [#allocation4], %s4962
        %s4964 = sand.u32 %s109, 1
        %s4965 = smul.addr %s4964, 128
        %s4966 = scalar_lea.vmem [#allocation3], %s4965
        // Predicated region
        $region33: #{tpu_custom_call.1} parent=31 // pred_check
          %p4967 = pneg %p119
        $region34: #{tpu_custom_call.1} parent=31 // pred_check_branch
          %4969 = sbr.rel (%p4967) target = $region36
        $region35: #{tpu_custom_call.1} parent=31 // pred_region
          %s4970 = smul.u32 32, %s22
          %4972 = vsyncadd %s4963, 0
          %s4973 = smul.addr %s21, 32
          %s4974 = sadd.s32 %s4970, %s4973
          %s4975 = smul.addr %s4974, 4
          %s4976 = scalar_lea.hbm %s3, %s4975
          %s4977 = sshll.u32 %s4966, 4
          %s4978 = int_to_ptr.vmem [resolvable:$true] %s4977
          %s4979 = sshll.u32 %s4976, 4
          %s4980 = int_to_ptr.hbm [resolvable:$true] %s4979
          %4985 = dma.vmem_to_hbm [thread:$0]  %s4978, 2048, %s4980, %s4963, 64, 64, 4
        $region36: #{tpu_custom_call.1} parent=31 // pred_fallthru
          _
      $region32: #{tpu_custom_call.1} parent=5 // pred_fallthru
        _
      %p4986 = scmp.le.s32.totalorder 2, %s12
      // Predicated region
      $region37: #{tpu_custom_call.1} parent=5 // pred_check
        %p4987 = pneg %p4986
      $region38: #{tpu_custom_call.1} parent=5 // pred_check_branch
        %4989 = sbr.rel (%p4987) target = $region40
      $region39: #{tpu_custom_call.1} parent=5 // pred_region
        %s4990 = ssub.s32 %s12, 2
        // Predicated region
        $region41: #{tpu_custom_call.1} parent=39 // pred_check
          %p4991 = pneg %p125
        $region42: #{tpu_custom_call.1} parent=39 // pred_check_branch
          %4993 = sbr.rel (%p4991) target = $region44
        $region43: #{tpu_custom_call.1} parent=39 // pred_region
          %s4994 = sand.u32 %s110, 1
          %s4995 = scalar_lea.sflag [#allocation4], %s4994
          %s4996 = sand.u32 %s110, 1
          %s4997 = smul.addr %s4996, 128
          %s4998 = scalar_lea.vmem [#allocation3], %s4997
          %5000 = dma.done %s4995, 2048
        $region44: #{tpu_custom_call.1} parent=39 // pred_fallthru
          _
      $region40: #{tpu_custom_call.1} parent=5 // pred_fallthru
        _
    $region6: #{tpu_custom_call.1} parent=1 // loop_footer
      %s16 = sadd.s32 1, %s12
    $region7: #{tpu_custom_call.1} parent=1 // loop_footer_branch
      %11 = sbr.rel target = $region3
    $region8: #{tpu_custom_call.1} parent=1 // loop_exit
      _
    %5001 = vsyncpa [#allocation4], 1
    %s5002 = scalar_lea.sflag [#allocation4], 1
    %5003 = vsyncpa %s5002, 1

</llo_original>
